<compile_context>
chip_gen: v6e
topology: v6e:2x2x1
jax: 0.10.0
libtpu: 0.0.40
codegen_flags: <defaults>
</compile_context>

<pallas_src>
import functools

import jax
import jax.numpy as jnp
from jax.experimental import pallas as pl
from jax.experimental.pallas import tpu as pltpu


# (a, u) -> taps kh of the original 3x3 kernel with (a + kh + 1)//2 == a + u.
# (Same table is used for columns with (b, v) -> kw.)
_FOLD_TAPS = {
    (0, 0): (0,), (0, 1): (1, 2),
    (1, 0): (0, 1), (1, 1): (2,),
}


def _upsample_conv_kernel(xps_ref, w_ref, b_ref, o_ref, *, th, w_src):
    """One (batch, source-row-tile) step of the fused nearest-2x-upsample + 3x3 conv.

    xps_ref: (1, H+2, W+2, C)   zero-padded source image (pre-upsample), resident
    w_ref:   (16, C, C)         folded sub-pixel weights, index ((a*2+b)*2+u)*2+v
    b_ref:   (1, C)             bias (f32)
    o_ref:   (1, 4, th, W, C)   sub-pixel planes s = a*2+b for `th` source rows
    """
    t = pl.program_id(1)
    row0 = t * th
    cout = o_ref.shape[-1]

    bias = b_ref[...].astype(jnp.float32)                    # (1, C)

    slabs = {}

    def slab(dr, dc):
        # (th, W, C) window of xps: dynamic row start (outer dim), static col
        # shift (sublane dim), flattened to (th*W, C) for the MXU matmul.
        if (dr, dc) not in slabs:
            v = xps_ref[0, pl.ds(row0 + dr, th), pl.ds(dc, w_src), :]
            slabs[(dr, dc)] = v.reshape(th * w_src, v.shape[-1])
        return slabs[(dr, dc)]

    for a in range(2):
        for b in range(2):
            acc = None
            for u in range(2):
                for v in range(2):
                    wk = w_ref[((a * 2 + b) * 2 + u) * 2 + v, :, :]   # (C, C)
                    p = jnp.dot(slab(a + u, b + v), wk,
                                preferred_element_type=jnp.float32)
                    acc = p if acc is None else acc + p
            acc = acc + bias
            o_ref[0, a * 2 + b, :, :, :] = (
                acc.reshape(th, w_src, cout).astype(o_ref.dtype))


def _fold_weights(weight_oihw):
    """(C_out, C_in, 3, 3) -> (16, C_in, C_out) folded sub-pixel weights."""
    # fold in f32 for accuracy regardless of operand dtype
    w = jnp.transpose(weight_oihw.astype(jnp.float32), (2, 3, 1, 0))  # (3,3,Cin,Cout)
    mats = []
    for a in range(2):
        for b in range(2):
            for u in range(2):
                for v in range(2):
                    acc = 0.0
                    for kh in _FOLD_TAPS[(a, u)]:
                        for kw in _FOLD_TAPS[(b, v)]:
                            acc = acc + w[kh, kw]
                    mats.append(acc)
    return jnp.stack(mats, axis=0)                                    # (16, Cin, Cout)


def _pick_row_tile(h, w, c, itemsize):
    """Largest divisor of H whose 4-sub-pixel output tile stays ~<= 2 MiB."""
    budget = 2 * 1024 * 1024
    best = 1
    for th in range(1, h + 1):
        if h % th:
            continue
        if 4 * th * w * c * itemsize <= budget:
            best = th
    return best


@functools.partial(jax.jit, static_argnames=("with_conv",))
def upsample_forward(x_nchw, weight_oihw, bias, with_conv=True):
    """x_nchw: (N, C, H, W) -> (N, C, 2H, 2W), matching the PyTorch module."""
    if not with_conv:
        # pure nearest-neighbour 2x upsample (data movement only)
        return jnp.repeat(jnp.repeat(x_nchw, 2, axis=2), 2, axis=3)

    N, C, H, W = x_nchw.shape
    dtype = x_nchw.dtype
    itemsize = x_nchw.dtype.itemsize

    # Boundary layout change on the SMALL pre-upsample image; the conv's SAME
    # padding of the upsampled image folds exactly onto a 1-px zero pad of the
    # source grid.
    x_nhwc = jnp.transpose(x_nchw, (0, 2, 3, 1))                      # (N,H,W,C)
    xps = jnp.pad(x_nhwc, ((0, 0), (1, 1), (1, 1), (0, 0)))           # (N,H+2,W+2,C)

    w_fold = _fold_weights(weight_oihw).astype(dtype)                 # (16,C,C)
    b2 = bias.reshape(1, C).astype(jnp.float32)

    th = _pick_row_tile(H, W, C, itemsize)
    grid = (N, H // th)

    in_bytes = (H + 2) * (W + 2) * C * itemsize
    out_tile_bytes = 4 * th * W * C * itemsize
    w_bytes = 16 * C * C * itemsize
    vmem_est = 2 * (in_bytes + out_tile_bytes + w_bytes) + 16 * th * W * C * 4
    vmem_limit = int(min(max(2 * vmem_est, 32 * 1024 * 1024), 64 * 1024 * 1024))

    kernel = functools.partial(_upsample_conv_kernel, th=th, w_src=W)

    out5 = pl.pallas_call(
        kernel,
        out_shape=jax.ShapeDtypeStruct((N, 4, H, W, C), dtype),
        grid_spec=pltpu.PrefetchScalarGridSpec(
            num_scalar_prefetch=0,
            grid=grid,
            in_specs=[
                pl.BlockSpec((1, H + 2, W + 2, C), lambda n, t: (n, 0, 0, 0)),
                pl.BlockSpec((16, C, C), lambda n, t: (0, 0, 0)),
                pl.BlockSpec((1, C), lambda n, t: (0, 0)),
            ],
            out_specs=pl.BlockSpec((1, 4, th, W, C), lambda n, t: (n, 0, t, 0, 0)),
        ),
        compiler_params=pltpu.CompilerParams(
            dimension_semantics=("parallel", "parallel"),
            vmem_limit_bytes=vmem_limit),
        cost_estimate=pl.CostEstimate(
            flops=2 * 16 * N * H * W * C * C,
            transcendentals=0,
            bytes_accessed=N * (in_bytes + 4 * H * W * C * itemsize) + w_bytes + 4 * C),
    )(xps, w_fold, b2)

    # out5[n, a*2+b, i, j, c] == y_nhwc[n, 2i+a, 2j+b, c]
    # Single boundary transpose back to torch's NCHW (folds the sub-pixel
    # interleave and the NHWC->NCHW conversion into one pass).
    out6 = out5.reshape(N, 2, 2, H, W, C)
    out = jnp.transpose(out6, (0, 5, 3, 1, 4, 2)).reshape(N, C, 2 * H, 2 * W)
    # TODO(synk): if the surrounding model consumes channels-last activations,
    # return the sub-pixel planes directly and drop this boundary transpose.
    return out


def _init_conv_params(key, in_channels):
    # Deterministic synthetic init mimicking torch Conv2d default (uniform, 1/sqrt(fan_in))
    kw_key, kb_key = jax.random.split(key)
    fan_in = in_channels * 3 * 3
    bound = 1.0 / (fan_in ** 0.5)
    weight = jax.random.uniform(
        kw_key, (in_channels, in_channels, 3, 3), jnp.float32, -bound, bound)
    bias = jax.random.uniform(kb_key, (in_channels,), jnp.float32, -bound, bound)
    return weight, bias


if __name__ == "__main__":
    key = jax.random.PRNGKey(0)
    kx, kp = jax.random.split(key)

    N, C, H, W = 2, 4, 16, 16
    x = jax.random.normal(kx, (N, C, H, W), jnp.float32)
    weight, bias = _init_conv_params(kp, C)

    # fused Pallas path (f32 operands)
    y = jax.block_until_ready(upsample_forward(x, weight, bias, with_conv=True))
    assert y.shape == (N, C, 2 * H, 2 * W), y.shape

    # Reference: XLA conv on the nearest-upsampled input.
    x_up_ref = jnp.repeat(jnp.repeat(x, 2, axis=2), 2, axis=3)
    y_ref = jax.lax.conv_general_dilated(
        x_up_ref, weight, window_strides=(1, 1), padding=((1, 1), (1, 1)),
        dimension_numbers=("NCHW", "OIHW", "NCHW")) + bias[None, :, None, None]
    err = float(jnp.max(jnp.abs(y - y_ref)))
    assert err < 1e-4, f"f32 max abs error {err}"

    # bf16 operand path (f32 accumulation inside the kernel), loose tolerance.
    y_bf16 = jax.block_until_ready(
        upsample_forward(x.astype(jnp.bfloat16), weight.astype(jnp.bfloat16),
                         bias.astype(jnp.bfloat16), with_conv=True))
    err_bf16 = float(jnp.max(jnp.abs(y_bf16.astype(jnp.float32) - y_ref)))
    assert err_bf16 < 1e-1, f"bf16 max abs error {err_bf16}"

    # with_conv=False path (pure nearest upsample).
    y_nc = jax.block_until_ready(upsample_forward(x, weight, bias, with_conv=False))
    assert y_nc.shape == (N, C, 2 * H, 2 * W)
    assert float(jnp.max(jnp.abs(y_nc - x_up_ref))) == 0.0

    print("KERNEL_OK")
</pallas_src>

<mosaic_0001>
module attributes {stable_mosaic.version = 11 : i64} {
  func.func @_upsample_conv_kernel(%arg0: i32, %arg1: i32, %arg2: memref<1x18x18x4xf32, #tpu.memory_space<vmem>>, %arg3: memref<16x4x4xf32, #tpu.memory_space<vmem>>, %arg4: memref<1x4xf32, #tpu.memory_space<vmem>>, %arg5: memref<1x4x16x16x4xf32, #tpu.memory_space<vmem>>) attributes {dimension_semantics = [#tpu.dimension_semantics<parallel>, #tpu.dimension_semantics<parallel>], iteration_bounds = array<i64: 2, 1>, scalar_prefetch = 0 : i64, scratch_operands = 0 : i64, tpu.core_type = #tpu.core_type<tc>, window_params = [{transform_indices = @transform_0, window_bounds = array<i64: 1, 18, 18, 4>}, {pipeline_mode = #tpu.pipeline_mode<synchronous>, transform_indices = @transform_1, window_bounds = array<i64: 16, 4, 4>}, {pipeline_mode = #tpu.pipeline_mode<synchronous>, transform_indices = @transform_2, window_bounds = array<i64: 1, 4>}, {transform_indices = @transform_3, window_bounds = array<i64: 1, 4, 16, 16, 4>}]} {
    %c16_i32 = arith.constant 16 : i32
    %0 = arith.muli %arg1, %c16_i32 : i32
    %c0 = arith.constant 0 : index
    %c0_0 = arith.constant 0 : index
    %1 = vector.load %arg4[%c0, %c0_0] : memref<1x4xf32, #tpu.memory_space<vmem>>, vector<1x4xf32>
    %c0_1 = arith.constant 0 : index
    %c0_2 = arith.constant 0 : index
    %c0_3 = arith.constant 0 : index
    %2 = vector.load %arg3[%c0_1, %c0_2, %c0_3] : memref<16x4x4xf32, #tpu.memory_space<vmem>>, vector<1x4x4xf32>
    %3 = vector.shape_cast %2 : vector<1x4x4xf32> to vector<4x4xf32>
    %c0_i32 = arith.constant 0 : i32
    %4 = arith.addi %0, %c0_i32 : i32
    %c0_4 = arith.constant 0 : index
    %5 = arith.index_cast %4 : i32 to index
    %c0_5 = arith.constant 0 : index
    %c0_6 = arith.constant 0 : index
    %6 = vector.load %arg2[%c0_4, %5, %c0_5, %c0_6] : memref<1x18x18x4xf32, #tpu.memory_space<vmem>>, vector<1x16x16x4xf32>
    %7 = vector.shape_cast %6 : vector<1x16x16x4xf32> to vector<16x16x4xf32>
    %8 = vector.shape_cast %7 : vector<16x16x4xf32> to vector<256x4xf32>
    %cst = arith.constant dense<0.000000e+00> : vector<256x4xf32>
    %9 = tpu.matmul %8, %3, %cst {dimension_numbers = #tpu.dot_dimension_numbers<[1], [0], [0], [1], [0, 0, 1, 1], [], []>} : vector<256x4xf32>, vector<4x4xf32>, vector<256x4xf32> -> vector<256x4xf32>
    %c1 = arith.constant 1 : index
    %c0_7 = arith.constant 0 : index
    %c0_8 = arith.constant 0 : index
    %10 = vector.load %arg3[%c1, %c0_7, %c0_8] : memref<16x4x4xf32, #tpu.memory_space<vmem>>, vector<1x4x4xf32>
    %11 = vector.shape_cast %10 : vector<1x4x4xf32> to vector<4x4xf32>
    %c0_i32_9 = arith.constant 0 : i32
    %12 = arith.addi %0, %c0_i32_9 : i32
    %c0_10 = arith.constant 0 : index
    %13 = arith.index_cast %12 : i32 to index
    %c1_11 = arith.constant 1 : index
    %c0_12 = arith.constant 0 : index
    %14 = vector.load %arg2[%c0_10, %13, %c1_11, %c0_12] : memref<1x18x18x4xf32, #tpu.memory_space<vmem>>, vector<1x16x16x4xf32>
    %15 = vector.shape_cast %14 : vector<1x16x16x4xf32> to vector<16x16x4xf32>
    %16 = vector.shape_cast %15 : vector<16x16x4xf32> to vector<256x4xf32>
    %cst_13 = arith.constant dense<0.000000e+00> : vector<256x4xf32>
    %17 = tpu.matmul %16, %11, %cst_13 {dimension_numbers = #tpu.dot_dimension_numbers<[1], [0], [0], [1], [0, 0, 1, 1], [], []>} : vector<256x4xf32>, vector<4x4xf32>, vector<256x4xf32> -> vector<256x4xf32>
    %18 = arith.addf %9, %17 : vector<256x4xf32>
    %c2 = arith.constant 2 : index
    %c0_14 = arith.constant 0 : index
    %c0_15 = arith.constant 0 : index
    %19 = vector.load %arg3[%c2, %c0_14, %c0_15] : memref<16x4x4xf32, #tpu.memory_space<vmem>>, vector<1x4x4xf32>
    %20 = vector.shape_cast %19 : vector<1x4x4xf32> to vector<4x4xf32>
    %c1_i32 = arith.constant 1 : i32
    %21 = arith.addi %0, %c1_i32 : i32
    %c0_16 = arith.constant 0 : index
    %22 = arith.index_cast %21 : i32 to index
    %c0_17 = arith.constant 0 : index
    %c0_18 = arith.constant 0 : index
    %23 = vector.load %arg2[%c0_16, %22, %c0_17, %c0_18] : memref<1x18x18x4xf32, #tpu.memory_space<vmem>>, vector<1x16x16x4xf32>
    %24 = vector.shape_cast %23 : vector<1x16x16x4xf32> to vector<16x16x4xf32>
    %25 = vector.shape_cast %24 : vector<16x16x4xf32> to vector<256x4xf32>
    %cst_19 = arith.constant dense<0.000000e+00> : vector<256x4xf32>
    %26 = tpu.matmul %25, %20, %cst_19 {dimension_numbers = #tpu.dot_dimension_numbers<[1], [0], [0], [1], [0, 0, 1, 1], [], []>} : vector<256x4xf32>, vector<4x4xf32>, vector<256x4xf32> -> vector<256x4xf32>
    %27 = arith.addf %18, %26 : vector<256x4xf32>
    %c3 = arith.constant 3 : index
    %c0_20 = arith.constant 0 : index
    %c0_21 = arith.constant 0 : index
    %28 = vector.load %arg3[%c3, %c0_20, %c0_21] : memref<16x4x4xf32, #tpu.memory_space<vmem>>, vector<1x4x4xf32>
    %29 = vector.shape_cast %28 : vector<1x4x4xf32> to vector<4x4xf32>
    %c1_i32_22 = arith.constant 1 : i32
    %30 = arith.addi %0, %c1_i32_22 : i32
    %c0_23 = arith.constant 0 : index
    %31 = arith.index_cast %30 : i32 to index
    %c1_24 = arith.constant 1 : index
    %c0_25 = arith.constant 0 : index
    %32 = vector.load %arg2[%c0_23, %31, %c1_24, %c0_25] : memref<1x18x18x4xf32, #tpu.memory_space<vmem>>, vector<1x16x16x4xf32>
    %33 = vector.shape_cast %32 : vector<1x16x16x4xf32> to vector<16x16x4xf32>
    %34 = vector.shape_cast %33 : vector<16x16x4xf32> to vector<256x4xf32>
    %cst_26 = arith.constant dense<0.000000e+00> : vector<256x4xf32>
    %35 = tpu.matmul %34, %29, %cst_26 {dimension_numbers = #tpu.dot_dimension_numbers<[1], [0], [0], [1], [0, 0, 1, 1], [], []>} : vector<256x4xf32>, vector<4x4xf32>, vector<256x4xf32> -> vector<256x4xf32>
    %36 = arith.addf %27, %35 : vector<256x4xf32>
    %37 = vector.broadcast %1 : vector<1x4xf32> to vector<256x4xf32>
    %38 = arith.addf %36, %37 : vector<256x4xf32>
    %39 = vector.shape_cast %38 : vector<256x4xf32> to vector<16x16x4xf32>
    %c0_27 = arith.constant 0 : index
    %c0_28 = arith.constant 0 : index
    %c0_29 = arith.constant 0 : index
    %c0_30 = arith.constant 0 : index
    %c0_31 = arith.constant 0 : index
    %40 = vector.load %arg5[%c0_27, %c0_28, %c0_29, %c0_30, %c0_31] : memref<1x4x16x16x4xf32, #tpu.memory_space<vmem>>, vector<1x1x16x16x4xf32>
    %41 = vector.shape_cast %40 : vector<1x1x16x16x4xf32> to vector<16x16x4xf32>
    %42 = vector.shape_cast %39 : vector<16x16x4xf32> to vector<1x1x16x16x4xf32>
    tpu.vector_store %arg5[%c0_27, %c0_28, %c0_29, %c0_30, %c0_31], %42 {strides = array<i32>} : memref<1x4x16x16x4xf32, #tpu.memory_space<vmem>>, vector<1x1x16x16x4xf32>,
    %c4 = arith.constant 4 : index
    %c0_32 = arith.constant 0 : index
    %c0_33 = arith.constant 0 : index
    %43 = vector.load %arg3[%c4, %c0_32, %c0_33] : memref<16x4x4xf32, #tpu.memory_space<vmem>>, vector<1x4x4xf32>
    %44 = vector.shape_cast %43 : vector<1x4x4xf32> to vector<4x4xf32>
    %cst_34 = arith.constant dense<0.000000e+00> : vector<256x4xf32>
    %45 = tpu.matmul %16, %44, %cst_34 {dimension_numbers = #tpu.dot_dimension_numbers<[1], [0], [0], [1], [0, 0, 1, 1], [], []>} : vector<256x4xf32>, vector<4x4xf32>, vector<256x4xf32> -> vector<256x4xf32>
    %c5 = arith.constant 5 : index
    %c0_35 = arith.constant 0 : index
    %c0_36 = arith.constant 0 : index
    %46 = vector.load %arg3[%c5, %c0_35, %c0_36] : memref<16x4x4xf32, #tpu.memory_space<vmem>>, vector<1x4x4xf32>
    %47 = vector.shape_cast %46 : vector<1x4x4xf32> to vector<4x4xf32>
    %c0_i32_37 = arith.constant 0 : i32
    %48 = arith.addi %0, %c0_i32_37 : i32
    %c0_38 = arith.constant 0 : index
    %49 = arith.index_cast %48 : i32 to index
    %c2_39 = arith.constant 2 : index
    %c0_40 = arith.constant 0 : index
    %50 = vector.load %arg2[%c0_38, %49, %c2_39, %c0_40] : memref<1x18x18x4xf32, #tpu.memory_space<vmem>>, vector<1x16x16x4xf32>
    %51 = vector.shape_cast %50 : vector<1x16x16x4xf32> to vector<16x16x4xf32>
    %52 = vector.shape_cast %51 : vector<16x16x4xf32> to vector<256x4xf32>
    %cst_41 = arith.constant dense<0.000000e+00> : vector<256x4xf32>
    %53 = tpu.matmul %52, %47, %cst_41 {dimension_numbers = #tpu.dot_dimension_numbers<[1], [0], [0], [1], [0, 0, 1, 1], [], []>} : vector<256x4xf32>, vector<4x4xf32>, vector<256x4xf32> -> vector<256x4xf32>
    %54 = arith.addf %45, %53 : vector<256x4xf32>
    %c6 = arith.constant 6 : index
    %c0_42 = arith.constant 0 : index
    %c0_43 = arith.constant 0 : index
    %55 = vector.load %arg3[%c6, %c0_42, %c0_43] : memref<16x4x4xf32, #tpu.memory_space<vmem>>, vector<1x4x4xf32>
    %56 = vector.shape_cast %55 : vector<1x4x4xf32> to vector<4x4xf32>
    %cst_44 = arith.constant dense<0.000000e+00> : vector<256x4xf32>
    %57 = tpu.matmul %34, %56, %cst_44 {dimension_numbers = #tpu.dot_dimension_numbers<[1], [0], [0], [1], [0, 0, 1, 1], [], []>} : vector<256x4xf32>, vector<4x4xf32>, vector<256x4xf32> -> vector<256x4xf32>
    %58 = arith.addf %54, %57 : vector<256x4xf32>
    %c7 = arith.constant 7 : index
    %c0_45 = arith.constant 0 : index
    %c0_46 = arith.constant 0 : index
    %59 = vector.load %arg3[%c7, %c0_45, %c0_46] : memref<16x4x4xf32, #tpu.memory_space<vmem>>, vector<1x4x4xf32>
    %60 = vector.shape_cast %59 : vector<1x4x4xf32> to vector<4x4xf32>
    %c1_i32_47 = arith.constant 1 : i32
    %61 = arith.addi %0, %c1_i32_47 : i32
    %c0_48 = arith.constant 0 : index
    %62 = arith.index_cast %61 : i32 to index
    %c2_49 = arith.constant 2 : index
    %c0_50 = arith.constant 0 : index
    %63 = vector.load %arg2[%c0_48, %62, %c2_49, %c0_50] : memref<1x18x18x4xf32, #tpu.memory_space<vmem>>, vector<1x16x16x4xf32>
    %64 = vector.shape_cast %63 : vector<1x16x16x4xf32> to vector<16x16x4xf32>
    %65 = vector.shape_cast %64 : vector<16x16x4xf32> to vector<256x4xf32>
    %cst_51 = arith.constant dense<0.000000e+00> : vector<256x4xf32>
    %66 = tpu.matmul %65, %60, %cst_51 {dimension_numbers = #tpu.dot_dimension_numbers<[1], [0], [0], [1], [0, 0, 1, 1], [], []>} : vector<256x4xf32>, vector<4x4xf32>, vector<256x4xf32> -> vector<256x4xf32>
    %67 = arith.addf %58, %66 : vector<256x4xf32>
    %68 = vector.broadcast %1 : vector<1x4xf32> to vector<256x4xf32>
    %69 = arith.addf %67, %68 : vector<256x4xf32>
    %70 = vector.shape_cast %69 : vector<256x4xf32> to vector<16x16x4xf32>
    %c0_52 = arith.constant 0 : index
    %c1_53 = arith.constant 1 : index
    %c0_54 = arith.constant 0 : index
    %c0_55 = arith.constant 0 : index
    %c0_56 = arith.constant 0 : index
    %71 = vector.load %arg5[%c0_52, %c1_53, %c0_54, %c0_55, %c0_56] : memref<1x4x16x16x4xf32, #tpu.memory_space<vmem>>, vector<1x1x16x16x4xf32>
    %72 = vector.shape_cast %71 : vector<1x1x16x16x4xf32> to vector<16x16x4xf32>
    %73 = vector.shape_cast %70 : vector<16x16x4xf32> to vector<1x1x16x16x4xf32>
    tpu.vector_store %arg5[%c0_52, %c1_53, %c0_54, %c0_55, %c0_56], %73 {strides = array<i32>} : memref<1x4x16x16x4xf32, #tpu.memory_space<vmem>>, vector<1x1x16x16x4xf32>,
    %c8 = arith.constant 8 : index
    %c0_57 = arith.constant 0 : index
    %c0_58 = arith.constant 0 : index
    %74 = vector.load %arg3[%c8, %c0_57, %c0_58] : memref<16x4x4xf32, #tpu.memory_space<vmem>>, vector<1x4x4xf32>
    %75 = vector.shape_cast %74 : vector<1x4x4xf32> to vector<4x4xf32>
    %cst_59 = arith.constant dense<0.000000e+00> : vector<256x4xf32>
    %76 = tpu.matmul %25, %75, %cst_59 {dimension_numbers = #tpu.dot_dimension_numbers<[1], [0], [0], [1], [0, 0, 1, 1], [], []>} : vector<256x4xf32>, vector<4x4xf32>, vector<256x4xf32> -> vector<256x4xf32>
    %c9 = arith.constant 9 : index
    %c0_60 = arith.constant 0 : index
    %c0_61 = arith.constant 0 : index
    %77 = vector.load %arg3[%c9, %c0_60, %c0_61] : memref<16x4x4xf32, #tpu.memory_space<vmem>>, vector<1x4x4xf32>
    %78 = vector.shape_cast %77 : vector<1x4x4xf32> to vector<4x4xf32>
    %cst_62 = arith.constant dense<0.000000e+00> : vector<256x4xf32>
    %79 = tpu.matmul %34, %78, %cst_62 {dimension_numbers = #tpu.dot_dimension_numbers<[1], [0], [0], [1], [0, 0, 1, 1], [], []>} : vector<256x4xf32>, vector<4x4xf32>, vector<256x4xf32> -> vector<256x4xf32>
    %80 = arith.addf %76, %79 : vector<256x4xf32>
    %c10 = arith.constant 10 : index
    %c0_63 = arith.constant 0 : index
    %c0_64 = arith.constant 0 : index
    %81 = vector.load %arg3[%c10, %c0_63, %c0_64] : memref<16x4x4xf32, #tpu.memory_space<vmem>>, vector<1x4x4xf32>
    %82 = vector.shape_cast %81 : vector<1x4x4xf32> to vector<4x4xf32>
    %c2_i32 = arith.constant 2 : i32
    %83 = arith.addi %0, %c2_i32 : i32
    %c0_65 = arith.constant 0 : index
    %84 = arith.index_cast %83 : i32 to index
    %c0_66 = arith.constant 0 : index
    %c0_67 = arith.constant 0 : index
    %85 = vector.load %arg2[%c0_65, %84, %c0_66, %c0_67] : memref<1x18x18x4xf32, #tpu.memory_space<vmem>>, vector<1x16x16x4xf32>
    %86 = vector.shape_cast %85 : vector<1x16x16x4xf32> to vector<16x16x4xf32>
    %87 = vector.shape_cast %86 : vector<16x16x4xf32> to vector<256x4xf32>
    %cst_68 = arith.constant dense<0.000000e+00> : vector<256x4xf32>
    %88 = tpu.matmul %87, %82, %cst_68 {dimension_numbers = #tpu.dot_dimension_numbers<[1], [0], [0], [1], [0, 0, 1, 1], [], []>} : vector<256x4xf32>, vector<4x4xf32>, vector<256x4xf32> -> vector<256x4xf32>
    %89 = arith.addf %80, %88 : vector<256x4xf32>
    %c11 = arith.constant 11 : index
    %c0_69 = arith.constant 0 : index
    %c0_70 = arith.constant 0 : index
    %90 = vector.load %arg3[%c11, %c0_69, %c0_70] : memref<16x4x4xf32, #tpu.memory_space<vmem>>, vector<1x4x4xf32>
    %91 = vector.shape_cast %90 : vector<1x4x4xf32> to vector<4x4xf32>
    %c2_i32_71 = arith.constant 2 : i32
    %92 = arith.addi %0, %c2_i32_71 : i32
    %c0_72 = arith.constant 0 : index
    %93 = arith.index_cast %92 : i32 to index
    %c1_73 = arith.constant 1 : index
    %c0_74 = arith.constant 0 : index
    %94 = vector.load %arg2[%c0_72, %93, %c1_73, %c0_74] : memref<1x18x18x4xf32, #tpu.memory_space<vmem>>, vector<1x16x16x4xf32>
    %95 = vector.shape_cast %94 : vector<1x16x16x4xf32> to vector<16x16x4xf32>
    %96 = vector.shape_cast %95 : vector<16x16x4xf32> to vector<256x4xf32>
    %cst_75 = arith.constant dense<0.000000e+00> : vector<256x4xf32>
    %97 = tpu.matmul %96, %91, %cst_75 {dimension_numbers = #tpu.dot_dimension_numbers<[1], [0], [0], [1], [0, 0, 1, 1], [], []>} : vector<256x4xf32>, vector<4x4xf32>, vector<256x4xf32> -> vector<256x4xf32>
    %98 = arith.addf %89, %97 : vector<256x4xf32>
    %99 = vector.broadcast %1 : vector<1x4xf32> to vector<256x4xf32>
    %100 = arith.addf %98, %99 : vector<256x4xf32>
    %101 = vector.shape_cast %100 : vector<256x4xf32> to vector<16x16x4xf32>
    %c0_76 = arith.constant 0 : index
    %c2_77 = arith.constant 2 : index
    %c0_78 = arith.constant 0 : index
    %c0_79 = arith.constant 0 : index
    %c0_80 = arith.constant 0 : index
    %102 = vector.load %arg5[%c0_76, %c2_77, %c0_78, %c0_79, %c0_80] : memref<1x4x16x16x4xf32, #tpu.memory_space<vmem>>, vector<1x1x16x16x4xf32>
    %103 = vector.shape_cast %102 : vector<1x1x16x16x4xf32> to vector<16x16x4xf32>
    %104 = vector.shape_cast %101 : vector<16x16x4xf32> to vector<1x1x16x16x4xf32>
    tpu.vector_store %arg5[%c0_76, %c2_77, %c0_78, %c0_79, %c0_80], %104 {strides = array<i32>} : memref<1x4x16x16x4xf32, #tpu.memory_space<vmem>>, vector<1x1x16x16x4xf32>,
    %c12 = arith.constant 12 : index
    %c0_81 = arith.constant 0 : index
    %c0_82 = arith.constant 0 : index
    %105 = vector.load %arg3[%c12, %c0_81, %c0_82] : memref<16x4x4xf32, #tpu.memory_space<vmem>>, vector<1x4x4xf32>
    %106 = vector.shape_cast %105 : vector<1x4x4xf32> to vector<4x4xf32>
    %cst_83 = arith.constant dense<0.000000e+00> : vector<256x4xf32>
    %107 = tpu.matmul %34, %106, %cst_83 {dimension_numbers = #tpu.dot_dimension_numbers<[1], [0], [0], [1], [0, 0, 1, 1], [], []>} : vector<256x4xf32>, vector<4x4xf32>, vector<256x4xf32> -> vector<256x4xf32>
    %c13 = arith.constant 13 : index
    %c0_84 = arith.constant 0 : index
    %c0_85 = arith.constant 0 : index
    %108 = vector.load %arg3[%c13, %c0_84, %c0_85] : memref<16x4x4xf32, #tpu.memory_space<vmem>>, vector<1x4x4xf32>
    %109 = vector.shape_cast %108 : vector<1x4x4xf32> to vector<4x4xf32>
    %cst_86 = arith.constant dense<0.000000e+00> : vector<256x4xf32>
    %110 = tpu.matmul %65, %109, %cst_86 {dimension_numbers = #tpu.dot_dimension_numbers<[1], [0], [0], [1], [0, 0, 1, 1], [], []>} : vector<256x4xf32>, vector<4x4xf32>, vector<256x4xf32> -> vector<256x4xf32>
    %111 = arith.addf %107, %110 : vector<256x4xf32>
    %c14 = arith.constant 14 : index
    %c0_87 = arith.constant 0 : index
    %c0_88 = arith.constant 0 : index
    %112 = vector.load %arg3[%c14, %c0_87, %c0_88] : memref<16x4x4xf32, #tpu.memory_space<vmem>>, vector<1x4x4xf32>
    %113 = vector.shape_cast %112 : vector<1x4x4xf32> to vector<4x4xf32>
    %cst_89 = arith.constant dense<0.000000e+00> : vector<256x4xf32>
    %114 = tpu.matmul %96, %113, %cst_89 {dimension_numbers = #tpu.dot_dimension_numbers<[1], [0], [0], [1], [0, 0, 1, 1], [], []>} : vector<256x4xf32>, vector<4x4xf32>, vector<256x4xf32> -> vector<256x4xf32>
    %115 = arith.addf %111, %114 : vector<256x4xf32>
    %c15 = arith.constant 15 : index
    %c0_90 = arith.constant 0 : index
    %c0_91 = arith.constant 0 : index
    %116 = vector.load %arg3[%c15, %c0_90, %c0_91] : memref<16x4x4xf32, #tpu.memory_space<vmem>>, vector<1x4x4xf32>
    %117 = vector.shape_cast %116 : vector<1x4x4xf32> to vector<4x4xf32>
    %c2_i32_92 = arith.constant 2 : i32
    %118 = arith.addi %0, %c2_i32_92 : i32
    %c0_93 = arith.constant 0 : index
    %119 = arith.index_cast %118 : i32 to index
    %c2_94 = arith.constant 2 : index
    %c0_95 = arith.constant 0 : index
    %120 = vector.load %arg2[%c0_93, %119, %c2_94, %c0_95] : memref<1x18x18x4xf32, #tpu.memory_space<vmem>>, vector<1x16x16x4xf32>
    %121 = vector.shape_cast %120 : vector<1x16x16x4xf32> to vector<16x16x4xf32>
    %122 = vector.shape_cast %121 : vector<16x16x4xf32> to vector<256x4xf32>
    %cst_96 = arith.constant dense<0.000000e+00> : vector<256x4xf32>
    %123 = tpu.matmul %122, %117, %cst_96 {dimension_numbers = #tpu.dot_dimension_numbers<[1], [0], [0], [1], [0, 0, 1, 1], [], []>} : vector<256x4xf32>, vector<4x4xf32>, vector<256x4xf32> -> vector<256x4xf32>
    %124 = arith.addf %115, %123 : vector<256x4xf32>
    %125 = vector.broadcast %1 : vector<1x4xf32> to vector<256x4xf32>
    %126 = arith.addf %124, %125 : vector<256x4xf32>
    %127 = vector.shape_cast %126 : vector<256x4xf32> to vector<16x16x4xf32>
    %c0_97 = arith.constant 0 : index
    %c3_98 = arith.constant 3 : index
    %c0_99 = arith.constant 0 : index
    %c0_100 = arith.constant 0 : index
    %c0_101 = arith.constant 0 : index
    %128 = vector.load %arg5[%c0_97, %c3_98, %c0_99, %c0_100, %c0_101] : memref<1x4x16x16x4xf32, #tpu.memory_space<vmem>>, vector<1x1x16x16x4xf32>
    %129 = vector.shape_cast %128 : vector<1x1x16x16x4xf32> to vector<16x16x4xf32>
    %130 = vector.shape_cast %127 : vector<16x16x4xf32> to vector<1x1x16x16x4xf32>
    tpu.vector_store %arg5[%c0_97, %c3_98, %c0_99, %c0_100, %c0_101], %130 {strides = array<i32>} : memref<1x4x16x16x4xf32, #tpu.memory_space<vmem>>, vector<1x1x16x16x4xf32>,
    return
  }
  func.func @transform_0(%arg0: i32, %arg1: i32) -> (i32, i32, i32, i32) {
    %c0_i32 = arith.constant 0 : i32
    %c0_i32_0 = arith.constant 0 : i32
    %c0_i32_1 = arith.constant 0 : i32
    %c0_i32_2 = arith.constant 0 : i32
    return %arg0, %c0_i32, %c0_i32_0, %c0_i32_1 : i32, i32, i32, i32
  }
  func.func @transform_1(%arg0: i32, %arg1: i32) -> (i32, i32, i32) {
    %c0_i32 = arith.constant 0 : i32
    %c0_i32_0 = arith.constant 0 : i32
    %c0_i32_1 = arith.constant 0 : i32
    %c0_i32_2 = arith.constant 0 : i32
    return %c0_i32, %c0_i32_0, %c0_i32_1 : i32, i32, i32
  }
  func.func @transform_2(%arg0: i32, %arg1: i32) -> (i32, i32) {
    %c0_i32 = arith.constant 0 : i32
    %c0_i32_0 = arith.constant 0 : i32
    %c0_i32_1 = arith.constant 0 : i32
    return %c0_i32, %c0_i32_0 : i32, i32
  }
  func.func @transform_3(%arg0: i32, %arg1: i32) -> (i32, i32, i32, i32, i32) {
    %c0_i32 = arith.constant 0 : i32
    %c0_i32_0 = arith.constant 0 : i32
    %c0_i32_1 = arith.constant 0 : i32
    %c0_i32_2 = arith.constant 0 : i32
    return %arg0, %c0_i32, %arg1, %c0_i32_0, %c0_i32_1 : i32, i32, i32, i32, i32
  }
}

</mosaic_0001>

<llo_original>
// kernel: upsample_forward.1
$region0: #{upsample_forward.1}
  #allocation0 [shape = 'u32[]', space=smem, size = 0x4, offset = 0x4, fixed_abs, tag = 'smem constant byte address 0x4 - core index']
  #allocation1 [shape = 'u32[144,128]{1,0:T(1,128)}', space=vmem, size = 0x12000, scoped, tag = 'internal scratch']
  %s0 = inlined_call_operand.vmem [shape: f32[2,18,18,4], index: 0, kind: input, shape index: {}]
  %s1 = inlined_call_operand.vmem [shape: f32[16,4,4], index: 1, kind: input, shape index: {}]
  %s2 = inlined_call_operand.vmem [shape: f32[1,4], index: 2, kind: input, shape index: {}]
  %s3 = inlined_call_operand.vmem [shape: f32[2,4,16,16,4], index: 3, kind: output, shape index: {}]
  %s4 = sld [smem:[#allocation0]]
  $region45: #{upsample_forward.1} parent=0
    _
  %s6 = ssub.s32 1, %s4
  %s7 = scalar_select 0, %s6, %s4
  loop: start=0, step=1, limit=4
  $region2: #{upsample_forward.1} parent=0 // loop_pre_header
    _
  $region3: #{upsample_forward.1} parent=0 // loop_header
    %s9 = sphi 0, %s13
    %p10 = scmp.ge.s32.totalorder %s9, 4
    %s16 = sphi 0, %s28
    %s17 = sphi 0, %s24
    %s18 = sphi 0, %s16
    %s19 = sphi 0, %s17
    %s20 = sphi 0, %s18
    %s21 = sphi 0, %s19
    %s31 = sphi 0, %s33
    %s34 = sphi 0, %s31
    %s35 = sphi 0, %s34
    %s51 = sphi 0, %s35
    %s55 = sphi 0, %s55
    %s57 = sphi 0, %s55
    %s58 = sphi 0, %s57
    %s72 = sphi 0, %s58
    %s76 = sphi 0, %s76
    %s78 = sphi 0, %s76
    %s79 = sphi 0, %s78
    %s93 = sphi 0, %s79
    %s101 = sphi 0, %s103
    %s104 = sphi 0, %s101
    %s105 = sphi 0, %s104
    %s121 = sphi 0, %s105
  $region4: #{upsample_forward.1} parent=0 // loop_header_branch
    %12 = sbr.rel (%p10) target = $region8
  $region5: #{upsample_forward.1} parent=0 // loop_body
    %s14 = ssub.s32 %s9, 1
    %s15 = ssub.s32 %s9, 2
    %s22 = sadd.s32 1, %s17
    %p23 = scmp.ge.s32.totalorder %s22, 1
    %s24 = scalar_select %p23, 0, %s22
    %s25 = sadd.s32 1, %s16
    %s26 = scalar_select %p23, %s25, %s16
    %p27 = scmp.ge.s32.totalorder %s26, 2
    %s28 = scalar_select %p27, 0, %s26
    %s29 = ssub.s32 %s16, %s28
    %p30 = scmp.eq.s32.totalorder %s29, 0
    %s32 = sadd.s32 %s31, 1
    %s33 = scalar_select %p30, %s31, %s32
    %p36 = pneg %p30
    %p37 = scmp.eq.s32.totalorder %s9, 1
    %p38 = por %p36, %p37
    %p39 = scmp.ne.s32.totalorder %s31, %s34
    %p40 = scmp.eq.s32.totalorder %s9, 0
    %p41 = por %p39, %p40
    %p42 = scmp.ne.s32.totalorder %s31, %s34
    %p43 = scmp.eq.s32.totalorder %s14, 1
    %p44 = por %p42, %p43
    %p45 = scmp.ne.s32.totalorder %s34, %s35
    %p46 = scmp.eq.s32.totalorder %s14, 0
    %p47 = por %p45, %p46
    %p48 = scmp.ne.s32.totalorder %s34, %s35
    %p49 = scmp.eq.s32.totalorder %s15, 1
    %p50 = por %p48, %p49
    %p52 = scmp.ne.s32.totalorder %s35, %s51
    %p53 = scmp.eq.s32.totalorder %s15, 0
    %p54 = por %p52, %p53
    %s56 = sadd.s32 %s55, 1
    %p59 = scmp.eq.s32.totalorder %s9, 1
    %p60 = scmp.ne.s32.totalorder %s55, %s57
    %p61 = scmp.eq.s32.totalorder %s9, 0
    %p62 = por %p60, %p61
    %p63 = scmp.ne.s32.totalorder %s55, %s57
    %p64 = scmp.eq.s32.totalorder %s14, 1
    %p65 = por %p63, %p64
    %p66 = scmp.ne.s32.totalorder %s57, %s58
    %p67 = scmp.eq.s32.totalorder %s14, 0
    %p68 = por %p66, %p67
    %p69 = scmp.ne.s32.totalorder %s57, %s58
    %p70 = scmp.eq.s32.totalorder %s15, 1
    %p71 = por %p69, %p70
    %p73 = scmp.ne.s32.totalorder %s58, %s72
    %p74 = scmp.eq.s32.totalorder %s15, 0
    %p75 = por %p73, %p74
    %s77 = sadd.s32 %s76, 1
    %p80 = scmp.eq.s32.totalorder %s9, 1
    %p81 = scmp.ne.s32.totalorder %s76, %s78
    %p82 = scmp.eq.s32.totalorder %s9, 0
    %p83 = por %p81, %p82
    %p84 = scmp.ne.s32.totalorder %s76, %s78
    %p85 = scmp.eq.s32.totalorder %s14, 1
    %p86 = por %p84, %p85
    %p87 = scmp.ne.s32.totalorder %s78, %s79
    %p88 = scmp.eq.s32.totalorder %s14, 0
    %p89 = por %p87, %p88
    %p90 = scmp.ne.s32.totalorder %s78, %s79
    %p91 = scmp.eq.s32.totalorder %s15, 1
    %p92 = por %p90, %p91
    %p94 = scmp.ne.s32.totalorder %s79, %s93
    %p95 = scmp.eq.s32.totalorder %s15, 0
    %p96 = por %p94, %p95
    %s97 = ssub.s32 %s16, %s28
    %s98 = ssub.s32 %s17, %s24
    %s99 = sor.u32 %s97, %s98
    %p100 = scmp.eq.s32.totalorder %s99, 0
    %s102 = sadd.s32 %s101, 1
    %s103 = scalar_select %p100, %s101, %s102
    %p106 = pneg %p100
    %p107 = scmp.eq.s32.totalorder %s9, 1
    %p108 = por %p106, %p107
    %p109 = scmp.ne.s32.totalorder %s101, %s104
    %p110 = scmp.eq.s32.totalorder %s9, 0
    %p111 = por %p109, %p110
    %p112 = scmp.ne.s32.totalorder %s101, %s104
    %p113 = scmp.eq.s32.totalorder %s14, 1
    %p114 = por %p112, %p113
    %p115 = scmp.ne.s32.totalorder %s104, %s105
    %p116 = scmp.eq.s32.totalorder %s14, 0
    %p117 = por %p115, %p116
    %p118 = scmp.ne.s32.totalorder %s104, %s105
    %p119 = scmp.eq.s32.totalorder %s15, 1
    %p120 = por %p118, %p119
    %p122 = scmp.ne.s32.totalorder %s105, %s121
    %p123 = scmp.eq.s32.totalorder %s15, 0
    %p124 = por %p122, %p123
    %p125 = scmp.le.s32.totalorder 1, %s9
    %p126 = scmp.lt.s32.totalorder %s9, 3
    %p127 = pnand %p125, %p126
    %p128 = pneg %p127
    // Predicated region
    $region9: #{upsample_forward.1} parent=5 // pred_check
      _
    $region10: #{upsample_forward.1} parent=5 // pred_check_branch
      %130 = sbr.rel (%p127) target = $region12
    $region11: #{upsample_forward.1} parent=5 // pred_region
      %s131 = ssub.s32 %s9, 1
      // Predicated region
      $region13: #{upsample_forward.1} parent=11 // pred_check
        %p132 = pneg %p68
      $region14: #{upsample_forward.1} parent=11 // pred_check_branch
        %134 = sbr.rel (%p132) target = $region16
      $region15: #{upsample_forward.1} parent=11 // pred_region
        _
      $region16: #{upsample_forward.1} parent=11 // pred_fallthru
        _
      // Predicated region
      $region17: #{upsample_forward.1} parent=11 // pred_check
        %p135 = pneg %p89
      $region18: #{upsample_forward.1} parent=11 // pred_check_branch
        %137 = sbr.rel (%p135) target = $region20
      $region19: #{upsample_forward.1} parent=11 // pred_region
        _
      $region20: #{upsample_forward.1} parent=11 // pred_fallthru
        _
    $region12: #{upsample_forward.1} parent=5 // pred_fallthru
      _
    %p138 = scmp.lt.s32.totalorder %s9, 2
    // Predicated region
    $region21: #{upsample_forward.1} parent=5 // pred_check
      %p139 = pneg %p138
    $region22: #{upsample_forward.1} parent=5 // pred_check_branch
      %141 = sbr.rel (%p139) target = $region24
    $region23: #{upsample_forward.1} parent=5 // pred_region
      // Predicated region
      $region25: #{upsample_forward.1} parent=23 // pred_check
        %p142 = pneg %p41
      $region26: #{upsample_forward.1} parent=23 // pred_check_branch
        %144 = sbr.rel (%p142) target = $region28
      $region27: #{upsample_forward.1} parent=23 // pred_region
        %p145 = scmp.lt.s32.totalorder %s16, 1
        %s146 = scalar_select %p145, %s16, 1
        %s147 = smul.addr %s146, 54
        %s148 = smul.addr %s147, 8
        %s149 = scalar_lea.vmem %s0, %s148
      $region28: #{upsample_forward.1} parent=23 // pred_fallthru
        _
    $region24: #{upsample_forward.1} parent=5 // pred_fallthru
      _
    %p150 = scmp.le.s32.totalorder 1, %s9
    %p151 = scmp.lt.s32.totalorder %s9, 3
    %p152 = pnand %p150, %p151
    %p153 = pneg %p152
    // Predicated region
    $region29: #{upsample_forward.1} parent=5 // pred_check
      _
    $region30: #{upsample_forward.1} parent=5 // pred_check_branch
      %155 = sbr.rel (%p152) target = $region32
    $region31: #{upsample_forward.1} parent=5 // pred_region
      %s156 = ssub.s32 %s9, 1
      %p157 = scmp.lt.s32.totalorder %s18, 1
      %s158 = scalar_select %p157, %s18, 1
      %s159 = smul.addr %s158, 54
      %s160 = smul.addr %s159, 8
      %s161 = scalar_lea.vmem %s0, %s160
      %p162 = pneg %p47
      %p163 = pneg %p44
      %p164 = pneg %p68
      %p165 = pneg %p65
      %p166 = pneg %p89
      %p167 = pneg %p86
      %p168 = pneg %p117
      %p169 = pneg %p114
      %s170 = smul.u32 16, %s19
      %p171 = scmp.lt.s32.totalorder %s18, 1
      %s172 = scalar_select %p171, %s18, 1
      %p173 = scmp.lt.s32.totalorder %s170, 15
      %s174 = scalar_select %p173, %s170, 15
      %s175 = smul.addr %s174, 2
      %s176 = smul.addr %s172, 128
      %s177 = sadd.s32 %s175, %s176
      %s178 = smul.addr %s177, 8
      %s179 = scalar_lea.vmem %s3, %s178
      %p180 = scmp.lt.s32.totalorder %s18, 1
      %s181 = scalar_select %p180, %s18, 1
      %s182 = smul.addr %s181, 54
      %s183 = smul.addr %s182, 8
      %s184 = scalar_lea.vmem %s0, %s183
      %s185 = smul.u32 16, %s19
      %p186 = scmp.lt.s32.totalorder %s18, 1
      %s187 = scalar_select %p186, %s18, 1
      %p188 = scmp.lt.s32.totalorder %s185, 15
      %s189 = scalar_select %p188, %s185, 15
      %s190 = smul.addr %s189, 2
      %s191 = smul.addr %s187, 128
      %s192 = sadd.s32 %s190, %s191
      %s193 = smul.addr %s192, 8
      %s194 = scalar_lea.vmem %s3, %s193
      %s195 = smul.u32 16, %s19
      %s196 = smul.u32 %s19, 16
      %v197 = vld [vmem:[%s2] sm:$0x1]
      %v198 = vld [vmem:[%s1] sm:$0xf]
      %s199 = smul.u32 %s196, 24
      %s200 = scalar_lea.vmem %s184, %s199
      %v201 = vld [vmem:[%s200] sm:$0xff]
      %v202 = vld [vmem:[%s200 + $0x8] sm:$0xff]
      %v203 = vld [vmem:[%s200 + $0x18] sm:$0xff]
      %v204 = vld [vmem:[%s200 + $0x20] sm:$0xff]
      %v205 = vld [vmem:[%s200 + $0x30] sm:$0xff]
      %v206 = vld [vmem:[%s200 + $0x38] sm:$0xff]
      %v207 = vld [vmem:[%s200 + $0x48] sm:$0xff]
      %v208 = vld [vmem:[%s200 + $0x50] sm:$0xff]
      %v209 = vld [vmem:[%s200 + $0x60] sm:$0xff]
      %v210 = vld [vmem:[%s200 + $0x68] sm:$0xff]
      %v211 = vld [vmem:[%s200 + $0x78] sm:$0xff]
      %v212 = vld [vmem:[%s200 + $0x80] sm:$0xff]
      %v213 = vld [vmem:[%s200 + $0x90] sm:$0xff]
      %v214 = vld [vmem:[%s200 + $0x98] sm:$0xff]
      %v215 = vld [vmem:[%s200 + $0xa8] sm:$0xff]
      %v216 = vld [vmem:[%s200 + $0xb0] sm:$0xff]
      %v217 = vld [vmem:[%s200 + $0xc0] sm:$0xff]
      %v218 = vld [vmem:[%s200 + $0xc8] sm:$0xff]
      %v219 = vld [vmem:[%s200 + $0xd8] sm:$0xff]
      %v220 = vld [vmem:[%s200 + $0xe0] sm:$0xff]
      %v221 = vld [vmem:[%s200 + $0xf0] sm:$0xff]
      %v222 = vld [vmem:[%s200 + $0xf8] sm:$0xff]
      %v223 = vld [vmem:[%s200 + $0x108] sm:$0xff]
      %v224 = vld [vmem:[%s200 + $0x110] sm:$0xff]
      %v225 = vld [vmem:[%s200 + $0x120] sm:$0xff]
      %v226 = vld [vmem:[%s200 + $0x128] sm:$0xff]
      %v227 = vld [vmem:[%s200 + $0x138] sm:$0xff]
      %v228 = vld [vmem:[%s200 + $0x140] sm:$0xff]
      %v229 = vld [vmem:[%s200 + $0x150] sm:$0xff]
      %v230 = vld [vmem:[%s200 + $0x158] sm:$0xff]
      %v231 = vld [vmem:[%s200 + $0x168] sm:$0xff]
      %v232 = vld [vmem:[%s200 + $0x170] sm:$0xff]
      %s233 = scalar_lea.vmem %s1, 4
      %v234 = vld [vmem:[%s233] sm:$0xf]
      %v235 = vld [vmem:[%s200 + $0x1] sm:$0xff]
      %v236 = vld [vmem:[%s200 + $0x9] sm:$0xff]
      %v237 = vld [vmem:[%s200 + $0x19] sm:$0xff]
      %v238 = vld [vmem:[%s200 + $0x21] sm:$0xff]
      %v239 = vld [vmem:[%s200 + $0x31] sm:$0xff]
      %v240 = vld [vmem:[%s200 + $0x39] sm:$0xff]
      %v241 = vld [vmem:[%s200 + $0x49] sm:$0xff]
      %v242 = vld [vmem:[%s200 + $0x51] sm:$0xff]
      %v243 = vld [vmem:[%s200 + $0x61] sm:$0xff]
      %v244 = vld [vmem:[%s200 + $0x69] sm:$0xff]
      %v245 = vld [vmem:[%s200 + $0x79] sm:$0xff]
      %v246 = vld [vmem:[%s200 + $0x81] sm:$0xff]
      %v247 = vld [vmem:[%s200 + $0x91] sm:$0xff]
      %v248 = vld [vmem:[%s200 + $0x99] sm:$0xff]
      %v249 = vld [vmem:[%s200 + $0xa9] sm:$0xff]
      %v250 = vld [vmem:[%s200 + $0xb1] sm:$0xff]
      %v251 = vld [vmem:[%s200 + $0xc1] sm:$0xff]
      %v252 = vld [vmem:[%s200 + $0xc9] sm:$0xff]
      %v253 = vld [vmem:[%s200 + $0xd9] sm:$0xff]
      %v254 = vld [vmem:[%s200 + $0xe1] sm:$0xff]
      %v255 = vld [vmem:[%s200 + $0xf1] sm:$0xff]
      %v256 = vld [vmem:[%s200 + $0xf9] sm:$0xff]
      %v257 = vld [vmem:[%s200 + $0x109] sm:$0xff]
      %v258 = vld [vmem:[%s200 + $0x111] sm:$0xff]
      %v259 = vld [vmem:[%s200 + $0x121] sm:$0xff]
      %v260 = vld [vmem:[%s200 + $0x129] sm:$0xff]
      %v261 = vld [vmem:[%s200 + $0x139] sm:$0xff]
      %v262 = vld [vmem:[%s200 + $0x141] sm:$0xff]
      %v263 = vld [vmem:[%s200 + $0x151] sm:$0xff]
      %v264 = vld [vmem:[%s200 + $0x159] sm:$0xff]
      %v265 = vld [vmem:[%s200 + $0x169] sm:$0xff]
      %v266 = vld [vmem:[%s200 + $0x171] sm:$0xff]
      %vm267 = vcmask 31744
      %v269 = vsel %vm267, %v235, 0
      %v272 = vsel %vm267, %v236, 0
      %v275 = vsel %vm267, %v237, 0
      %v278 = vsel %vm267, %v238, 0
      %v281 = vsel %vm267, %v239, 0
      %v284 = vsel %vm267, %v240, 0
      %v287 = vsel %vm267, %v241, 0
      %v290 = vsel %vm267, %v242, 0
      %v293 = vsel %vm267, %v243, 0
      %v296 = vsel %vm267, %v244, 0
      %v299 = vsel %vm267, %v245, 0
      %v302 = vsel %vm267, %v246, 0
      %v305 = vsel %vm267, %v247, 0
      %v308 = vsel %vm267, %v248, 0
      %v311 = vsel %vm267, %v249, 0
      %v314 = vsel %vm267, %v250, 0
      %v317 = vsel %vm267, %v251, 0
      %v320 = vsel %vm267, %v252, 0
      %v323 = vsel %vm267, %v253, 0
      %v326 = vsel %vm267, %v254, 0
      %v329 = vsel %vm267, %v255, 0
      %v332 = vsel %vm267, %v256, 0
      %v335 = vsel %vm267, %v257, 0
      %v338 = vsel %vm267, %v258, 0
      %v341 = vsel %vm267, %v259, 0
      %v344 = vsel %vm267, %v260, 0
      %v347 = vsel %vm267, %v261, 0
      %v350 = vsel %vm267, %v262, 0
      %v353 = vsel %vm267, %v263, 0
      %v356 = vsel %vm267, %v264, 0
      %v359 = vsel %vm267, %v265, 0
      %v362 = vsel %vm267, %v266, 0
      %vm364 = vcmask 1043456
      %v366 = vsel %vm364, %v234, 0
      %368 = vmatprep.subr.mxu0 0.0
      %369 = vmatpush1.msra.mxu0 0.0
      %370 = vmatprep.subr.mxu0 0.0
      %371 = vmatpush1.msra.mxu0 0.0
      %372 = vmatprep.subr.mxu0 0.0
      %373 = vmatpush1.msra.mxu0 0.0
      %374 = vmatprep.subr.mxu0 0.0
      %375 = vmatpush1.msra.mxu0 0.0
      %376 = vmatprep.subr.mxu0 0.0
      %377 = vmatpush1.msra.mxu0 0.0
      %378 = vmatprep.subr.mxu0 0.0
      %379 = vmatpush1.msra.mxu0 0.0
      %380 = vmatprep.subr.mxu0 0.0
      %381 = vmatpush1.msra.mxu0 0.0
      %382 = vmatprep.subr.mxu0 0.0
      %383 = vmatpush1.msra.mxu0 0.0
      %384 = vmatprep.subr.mxu0 0.0
      %385 = vmatpush1.msra.mxu0 0.0
      %386 = vmatprep.subr.mxu0 0.0
      %387 = vmatpush1.msra.mxu0 0.0
      %388 = vmatprep.subr.mxu0 0.0
      %389 = vmatpush1.msra.mxu0 0.0
      %390 = vmatprep.subr.mxu0 0.0
      %391 = vmatpush1.msra.mxu0 0.0
      %392 = vmatprep.subr.mxu0 0.0
      %393 = vmatpush1.msra.mxu0 0.0
      %394 = vmatprep.subr.mxu0 0.0
      %395 = vmatpush1.msra.mxu0 0.0
      %396 = vmatprep.subr.mxu0 0.0
      %397 = vmatpush1.msra.mxu0 0.0
      %398 = vmatprep.subr.mxu0 0.0
      %399 = vmatpush1.msra.mxu0 %v366
      %400 = vmatprep.subr.mxu0 0.0
      %401 = vmatpush2.msra.mxu0 0.0
      %402 = vmatprep.subr.mxu0 0.0
      %403 = vmatpush2.msra.mxu0 0.0
      %404 = vmatprep.subr.mxu0 0.0
      %405 = vmatpush2.msra.mxu0 0.0
      %406 = vmatprep.subr.mxu0 0.0
      %407 = vmatpush2.msra.mxu0 0.0
      %408 = vmatprep.subr.mxu0 0.0
      %409 = vmatpush2.msra.mxu0 0.0
      %410 = vmatprep.subr.mxu0 0.0
      %411 = vmatpush2.msra.mxu0 0.0
      %412 = vmatprep.subr.mxu0 0.0
      %413 = vmatpush2.msra.mxu0 0.0
      %414 = vmatprep.subr.mxu0 0.0
      %415 = vmatpush2.msra.mxu0 0.0
      %416 = vmatprep.subr.mxu0 0.0
      %417 = vmatpush2.msra.mxu0 0.0
      %418 = vmatprep.subr.mxu0 0.0
      %419 = vmatpush2.msra.mxu0 0.0
      %420 = vmatprep.subr.mxu0 0.0
      %421 = vmatpush2.msra.mxu0 0.0
      %422 = vmatprep.subr.mxu0 0.0
      %423 = vmatpush2.msra.mxu0 0.0
      %424 = vmatprep.subr.mxu0 0.0
      %425 = vmatpush2.msra.mxu0 0.0
      %426 = vmatprep.subr.mxu0 0.0
      %427 = vmatpush2.msra.mxu0 0.0
      %428 = vmatprep.subr.mxu0 0.0
      %429 = vmatpush2.msra.mxu0 0.0
      %430 = vmatprep.subr.mxu0 0.0
      %431 = vmatpush2.msra.mxu0 0.0
      %432 = vmatprep.mubr.f32.mxu0 0.0
      %433 = vmatmul.mubr.f32.gmra.mxu0 %v269
      %v434 = vpop.f32.mrf.mxu0
      %v435 = vadd.f32 0.0, %v434
      %v436 = vpop.f32.mrf.mxu0
      %437 = vmatprep.mubr.f32.mxu0 0.0
      %438 = vmatmul.mubr.f32.gmra.mxu0 %v272
      %v439 = vpop.f32.mrf.mxu0
      %v440 = vadd.f32 0.0, %v439
      %v441 = vpop.f32.mrf.mxu0
      %442 = vmatprep.mubr.f32.mxu0 0.0
      %443 = vmatmul.mubr.f32.gmra.mxu0 %v275
      %v444 = vpop.f32.mrf.mxu0
      %v445 = vadd.f32 0.0, %v444
      %v446 = vpop.f32.mrf.mxu0
      %447 = vmatprep.mubr.f32.mxu0 0.0
      %448 = vmatmul.mubr.f32.gmra.mxu0 %v278
      %v449 = vpop.f32.mrf.mxu0
      %v450 = vadd.f32 0.0, %v449
      %v451 = vpop.f32.mrf.mxu0
      %452 = vmatprep.mubr.f32.mxu0 0.0
      %453 = vmatmul.mubr.f32.gmra.mxu0 %v281
      %v454 = vpop.f32.mrf.mxu0
      %v455 = vadd.f32 0.0, %v454
      %v456 = vpop.f32.mrf.mxu0
      %457 = vmatprep.mubr.f32.mxu0 0.0
      %458 = vmatmul.mubr.f32.gmra.mxu0 %v284
      %v459 = vpop.f32.mrf.mxu0
      %v460 = vadd.f32 0.0, %v459
      %v461 = vpop.f32.mrf.mxu0
      %462 = vmatprep.mubr.f32.mxu0 0.0
      %463 = vmatmul.mubr.f32.gmra.mxu0 %v287
      %v464 = vpop.f32.mrf.mxu0
      %v465 = vadd.f32 0.0, %v464
      %v466 = vpop.f32.mrf.mxu0
      %467 = vmatprep.mubr.f32.mxu0 0.0
      %468 = vmatmul.mubr.f32.gmra.mxu0 %v290
      %v469 = vpop.f32.mrf.mxu0
      %v470 = vadd.f32 0.0, %v469
      %v471 = vpop.f32.mrf.mxu0
      %472 = vmatprep.mubr.f32.mxu0 0.0
      %473 = vmatmul.mubr.f32.gmra.mxu0 %v293
      %v474 = vpop.f32.mrf.mxu0
      %v475 = vadd.f32 0.0, %v474
      %v476 = vpop.f32.mrf.mxu0
      %477 = vmatprep.mubr.f32.mxu0 0.0
      %478 = vmatmul.mubr.f32.gmra.mxu0 %v296
      %v479 = vpop.f32.mrf.mxu0
      %v480 = vadd.f32 0.0, %v479
      %v481 = vpop.f32.mrf.mxu0
      %482 = vmatprep.mubr.f32.mxu0 0.0
      %483 = vmatmul.mubr.f32.gmra.mxu0 %v299
      %v484 = vpop.f32.mrf.mxu0
      %v485 = vadd.f32 0.0, %v484
      %v486 = vpop.f32.mrf.mxu0
      %487 = vmatprep.mubr.f32.mxu0 0.0
      %488 = vmatmul.mubr.f32.gmra.mxu0 %v302
      %v489 = vpop.f32.mrf.mxu0
      %v490 = vadd.f32 0.0, %v489
      %v491 = vpop.f32.mrf.mxu0
      %492 = vmatprep.mubr.f32.mxu0 0.0
      %493 = vmatmul.mubr.f32.gmra.mxu0 %v305
      %v494 = vpop.f32.mrf.mxu0
      %v495 = vadd.f32 0.0, %v494
      %v496 = vpop.f32.mrf.mxu0
      %497 = vmatprep.mubr.f32.mxu0 0.0
      %498 = vmatmul.mubr.f32.gmra.mxu0 %v308
      %v499 = vpop.f32.mrf.mxu0
      %v500 = vadd.f32 0.0, %v499
      %v501 = vpop.f32.mrf.mxu0
      %502 = vmatprep.mubr.f32.mxu0 0.0
      %503 = vmatmul.mubr.f32.gmra.mxu0 %v311
      %v504 = vpop.f32.mrf.mxu0
      %v505 = vadd.f32 0.0, %v504
      %v506 = vpop.f32.mrf.mxu0
      %507 = vmatprep.mubr.f32.mxu0 0.0
      %508 = vmatmul.mubr.f32.gmra.mxu0 %v314
      %v509 = vpop.f32.mrf.mxu0
      %v510 = vadd.f32 0.0, %v509
      %v511 = vpop.f32.mrf.mxu0
      %512 = vmatprep.mubr.f32.mxu0 0.0
      %513 = vmatmul.mubr.f32.gmra.mxu0 %v317
      %v514 = vpop.f32.mrf.mxu0
      %v515 = vadd.f32 0.0, %v514
      %v516 = vpop.f32.mrf.mxu0
      %517 = vmatprep.mubr.f32.mxu0 0.0
      %518 = vmatmul.mubr.f32.gmra.mxu0 %v320
      %v519 = vpop.f32.mrf.mxu0
      %v520 = vadd.f32 0.0, %v519
      %v521 = vpop.f32.mrf.mxu0
      %522 = vmatprep.mubr.f32.mxu0 0.0
      %523 = vmatmul.mubr.f32.gmra.mxu0 %v323
      %v524 = vpop.f32.mrf.mxu0
      %v525 = vadd.f32 0.0, %v524
      %v526 = vpop.f32.mrf.mxu0
      %527 = vmatprep.mubr.f32.mxu0 0.0
      %528 = vmatmul.mubr.f32.gmra.mxu0 %v326
      %v529 = vpop.f32.mrf.mxu0
      %v530 = vadd.f32 0.0, %v529
      %v531 = vpop.f32.mrf.mxu0
      %532 = vmatprep.mubr.f32.mxu0 0.0
      %533 = vmatmul.mubr.f32.gmra.mxu0 %v329
      %v534 = vpop.f32.mrf.mxu0
      %v535 = vadd.f32 0.0, %v534
      %v536 = vpop.f32.mrf.mxu0
      %537 = vmatprep.mubr.f32.mxu0 0.0
      %538 = vmatmul.mubr.f32.gmra.mxu0 %v332
      %v539 = vpop.f32.mrf.mxu0
      %v540 = vadd.f32 0.0, %v539
      %v541 = vpop.f32.mrf.mxu0
      %542 = vmatprep.mubr.f32.mxu0 0.0
      %543 = vmatmul.mubr.f32.gmra.mxu0 %v335
      %v544 = vpop.f32.mrf.mxu0
      %v545 = vadd.f32 0.0, %v544
      %v546 = vpop.f32.mrf.mxu0
      %547 = vmatprep.mubr.f32.mxu0 0.0
      %548 = vmatmul.mubr.f32.gmra.mxu0 %v338
      %v549 = vpop.f32.mrf.mxu0
      %v550 = vadd.f32 0.0, %v549
      %v551 = vpop.f32.mrf.mxu0
      %552 = vmatprep.mubr.f32.mxu0 0.0
      %553 = vmatmul.mubr.f32.gmra.mxu0 %v341
      %v554 = vpop.f32.mrf.mxu0
      %v555 = vadd.f32 0.0, %v554
      %v556 = vpop.f32.mrf.mxu0
      %557 = vmatprep.mubr.f32.mxu0 0.0
      %558 = vmatmul.mubr.f32.gmra.mxu0 %v344
      %v559 = vpop.f32.mrf.mxu0
      %v560 = vadd.f32 0.0, %v559
      %v561 = vpop.f32.mrf.mxu0
      %562 = vmatprep.mubr.f32.mxu0 0.0
      %563 = vmatmul.mubr.f32.gmra.mxu0 %v347
      %v564 = vpop.f32.mrf.mxu0
      %v565 = vadd.f32 0.0, %v564
      %v566 = vpop.f32.mrf.mxu0
      %567 = vmatprep.mubr.f32.mxu0 0.0
      %568 = vmatmul.mubr.f32.gmra.mxu0 %v350
      %v569 = vpop.f32.mrf.mxu0
      %v570 = vadd.f32 0.0, %v569
      %v571 = vpop.f32.mrf.mxu0
      %572 = vmatprep.mubr.f32.mxu0 0.0
      %573 = vmatmul.mubr.f32.gmra.mxu0 %v353
      %v574 = vpop.f32.mrf.mxu0
      %v575 = vadd.f32 0.0, %v574
      %v576 = vpop.f32.mrf.mxu0
      %577 = vmatprep.mubr.f32.mxu0 0.0
      %578 = vmatmul.mubr.f32.gmra.mxu0 %v356
      %v579 = vpop.f32.mrf.mxu0
      %v580 = vadd.f32 0.0, %v579
      %v581 = vpop.f32.mrf.mxu0
      %582 = vmatprep.mubr.f32.mxu0 0.0
      %583 = vmatmul.mubr.f32.gmra.mxu0 %v359
      %v584 = vpop.f32.mrf.mxu0
      %v585 = vadd.f32 0.0, %v584
      %v586 = vpop.f32.mrf.mxu0
      %587 = vmatprep.mubr.f32.mxu0 0.0
      %588 = vmatmul.mubr.f32.gmra.mxu0 %v362
      %v589 = vpop.f32.mrf.mxu0
      %v590 = vadd.f32 0.0, %v589
      %v591 = vpop.f32.mrf.mxu0
      %592 = vdwg.mxu0
      %v594 = vsel %vm267, %v201, 0
      %v597 = vsel %vm267, %v202, 0
      %v600 = vsel %vm267, %v203, 0
      %v603 = vsel %vm267, %v204, 0
      %v606 = vsel %vm267, %v205, 0
      %v609 = vsel %vm267, %v206, 0
      %v612 = vsel %vm267, %v207, 0
      %v615 = vsel %vm267, %v208, 0
      %v618 = vsel %vm267, %v209, 0
      %v621 = vsel %vm267, %v210, 0
      %v624 = vsel %vm267, %v211, 0
      %v627 = vsel %vm267, %v212, 0
      %v630 = vsel %vm267, %v213, 0
      %v633 = vsel %vm267, %v214, 0
      %v636 = vsel %vm267, %v215, 0
      %v639 = vsel %vm267, %v216, 0
      %v642 = vsel %vm267, %v217, 0
      %v645 = vsel %vm267, %v218, 0
      %v648 = vsel %vm267, %v219, 0
      %v651 = vsel %vm267, %v220, 0
      %v654 = vsel %vm267, %v221, 0
      %v657 = vsel %vm267, %v222, 0
      %v660 = vsel %vm267, %v223, 0
      %v663 = vsel %vm267, %v224, 0
      %v666 = vsel %vm267, %v225, 0
      %v669 = vsel %vm267, %v226, 0
      %v672 = vsel %vm267, %v227, 0
      %v675 = vsel %vm267, %v228, 0
      %v678 = vsel %vm267, %v229, 0
      %v681 = vsel %vm267, %v230, 0
      %v684 = vsel %vm267, %v231, 0
      %v687 = vsel %vm267, %v232, 0
      %v690 = vsel %vm364, %v198, 0
      %692 = vmatprep.subr.mxu0 0.0
      %693 = vmatpush1.msra.mxu0 0.0
      %694 = vmatprep.subr.mxu0 0.0
      %695 = vmatpush1.msra.mxu0 0.0
      %696 = vmatprep.subr.mxu0 0.0
      %697 = vmatpush1.msra.mxu0 0.0
      %698 = vmatprep.subr.mxu0 0.0
      %699 = vmatpush1.msra.mxu0 0.0
      %700 = vmatprep.subr.mxu0 0.0
      %701 = vmatpush1.msra.mxu0 0.0
      %702 = vmatprep.subr.mxu0 0.0
      %703 = vmatpush1.msra.mxu0 0.0
      %704 = vmatprep.subr.mxu0 0.0
      %705 = vmatpush1.msra.mxu0 0.0
      %706 = vmatprep.subr.mxu0 0.0
      %707 = vmatpush1.msra.mxu0 0.0
      %708 = vmatprep.subr.mxu0 0.0
      %709 = vmatpush1.msra.mxu0 0.0
      %710 = vmatprep.subr.mxu0 0.0
      %711 = vmatpush1.msra.mxu0 0.0
      %712 = vmatprep.subr.mxu0 0.0
      %713 = vmatpush1.msra.mxu0 0.0
      %714 = vmatprep.subr.mxu0 0.0
      %715 = vmatpush1.msra.mxu0 0.0
      %716 = vmatprep.subr.mxu0 0.0
      %717 = vmatpush1.msra.mxu0 0.0
      %718 = vmatprep.subr.mxu0 0.0
      %719 = vmatpush1.msra.mxu0 0.0
      %720 = vmatprep.subr.mxu0 0.0
      %721 = vmatpush1.msra.mxu0 0.0
      %722 = vmatprep.subr.mxu0 0.0
      %723 = vmatpush1.msra.mxu0 %v690
      %724 = vmatprep.subr.mxu0 0.0
      %725 = vmatpush2.msra.mxu0 0.0
      %726 = vmatprep.subr.mxu0 0.0
      %727 = vmatpush2.msra.mxu0 0.0
      %728 = vmatprep.subr.mxu0 0.0
      %729 = vmatpush2.msra.mxu0 0.0
      %730 = vmatprep.subr.mxu0 0.0
      %731 = vmatpush2.msra.mxu0 0.0
      %732 = vmatprep.subr.mxu0 0.0
      %733 = vmatpush2.msra.mxu0 0.0
      %734 = vmatprep.subr.mxu0 0.0
      %735 = vmatpush2.msra.mxu0 0.0
      %736 = vmatprep.subr.mxu0 0.0
      %737 = vmatpush2.msra.mxu0 0.0
      %738 = vmatprep.subr.mxu0 0.0
      %739 = vmatpush2.msra.mxu0 0.0
      %740 = vmatprep.subr.mxu0 0.0
      %741 = vmatpush2.msra.mxu0 0.0
      %742 = vmatprep.subr.mxu0 0.0
      %743 = vmatpush2.msra.mxu0 0.0
      %744 = vmatprep.subr.mxu0 0.0
      %745 = vmatpush2.msra.mxu0 0.0
      %746 = vmatprep.subr.mxu0 0.0
      %747 = vmatpush2.msra.mxu0 0.0
      %748 = vmatprep.subr.mxu0 0.0
      %749 = vmatpush2.msra.mxu0 0.0
      %750 = vmatprep.subr.mxu0 0.0
      %751 = vmatpush2.msra.mxu0 0.0
      %752 = vmatprep.subr.mxu0 0.0
      %753 = vmatpush2.msra.mxu0 0.0
      %754 = vmatprep.subr.mxu0 0.0
      %755 = vmatpush2.msra.mxu0 0.0
      %756 = vmatprep.mubr.f32.mxu0 0.0
      %757 = vmatmul.mubr.f32.gmra.mxu0 %v594
      %v758 = vpop.f32.mrf.mxu0
      %v759 = vadd.f32 %v435, %v758
      %v760 = vpop.f32.mrf.mxu0
      %761 = vmatprep.mubr.f32.mxu0 0.0
      %762 = vmatmul.mubr.f32.gmra.mxu0 %v597
      %v763 = vpop.f32.mrf.mxu0
      %v764 = vadd.f32 %v440, %v763
      %v765 = vpop.f32.mrf.mxu0
      %766 = vmatprep.mubr.f32.mxu0 0.0
      %767 = vmatmul.mubr.f32.gmra.mxu0 %v600
      %v768 = vpop.f32.mrf.mxu0
      %v769 = vadd.f32 %v445, %v768
      %v770 = vpop.f32.mrf.mxu0
      %771 = vmatprep.mubr.f32.mxu0 0.0
      %772 = vmatmul.mubr.f32.gmra.mxu0 %v603
      %v773 = vpop.f32.mrf.mxu0
      %v774 = vadd.f32 %v450, %v773
      %v775 = vpop.f32.mrf.mxu0
      %776 = vmatprep.mubr.f32.mxu0 0.0
      %777 = vmatmul.mubr.f32.gmra.mxu0 %v606
      %v778 = vpop.f32.mrf.mxu0
      %v779 = vadd.f32 %v455, %v778
      %v780 = vpop.f32.mrf.mxu0
      %781 = vmatprep.mubr.f32.mxu0 0.0
      %782 = vmatmul.mubr.f32.gmra.mxu0 %v609
      %v783 = vpop.f32.mrf.mxu0
      %v784 = vadd.f32 %v460, %v783
      %v785 = vpop.f32.mrf.mxu0
      %786 = vmatprep.mubr.f32.mxu0 0.0
      %787 = vmatmul.mubr.f32.gmra.mxu0 %v612
      %v788 = vpop.f32.mrf.mxu0
      %v789 = vadd.f32 %v465, %v788
      %v790 = vpop.f32.mrf.mxu0
      %791 = vmatprep.mubr.f32.mxu0 0.0
      %792 = vmatmul.mubr.f32.gmra.mxu0 %v615
      %v793 = vpop.f32.mrf.mxu0
      %v794 = vadd.f32 %v470, %v793
      %v795 = vpop.f32.mrf.mxu0
      %796 = vmatprep.mubr.f32.mxu0 0.0
      %797 = vmatmul.mubr.f32.gmra.mxu0 %v618
      %v798 = vpop.f32.mrf.mxu0
      %v799 = vadd.f32 %v475, %v798
      %v800 = vpop.f32.mrf.mxu0
      %801 = vmatprep.mubr.f32.mxu0 0.0
      %802 = vmatmul.mubr.f32.gmra.mxu0 %v621
      %v803 = vpop.f32.mrf.mxu0
      %v804 = vadd.f32 %v480, %v803
      %v805 = vpop.f32.mrf.mxu0
      %806 = vmatprep.mubr.f32.mxu0 0.0
      %807 = vmatmul.mubr.f32.gmra.mxu0 %v624
      %v808 = vpop.f32.mrf.mxu0
      %v809 = vadd.f32 %v485, %v808
      %v810 = vpop.f32.mrf.mxu0
      %811 = vmatprep.mubr.f32.mxu0 0.0
      %812 = vmatmul.mubr.f32.gmra.mxu0 %v627
      %v813 = vpop.f32.mrf.mxu0
      %v814 = vadd.f32 %v490, %v813
      %v815 = vpop.f32.mrf.mxu0
      %816 = vmatprep.mubr.f32.mxu0 0.0
      %817 = vmatmul.mubr.f32.gmra.mxu0 %v630
      %v818 = vpop.f32.mrf.mxu0
      %v819 = vadd.f32 %v495, %v818
      %v820 = vpop.f32.mrf.mxu0
      %821 = vmatprep.mubr.f32.mxu0 0.0
      %822 = vmatmul.mubr.f32.gmra.mxu0 %v633
      %v823 = vpop.f32.mrf.mxu0
      %v824 = vadd.f32 %v500, %v823
      %v825 = vpop.f32.mrf.mxu0
      %826 = vmatprep.mubr.f32.mxu0 0.0
      %827 = vmatmul.mubr.f32.gmra.mxu0 %v636
      %v828 = vpop.f32.mrf.mxu0
      %v829 = vadd.f32 %v505, %v828
      %v830 = vpop.f32.mrf.mxu0
      %831 = vmatprep.mubr.f32.mxu0 0.0
      %832 = vmatmul.mubr.f32.gmra.mxu0 %v639
      %v833 = vpop.f32.mrf.mxu0
      %v834 = vadd.f32 %v510, %v833
      %v835 = vpop.f32.mrf.mxu0
      %836 = vmatprep.mubr.f32.mxu0 0.0
      %837 = vmatmul.mubr.f32.gmra.mxu0 %v642
      %v838 = vpop.f32.mrf.mxu0
      %v839 = vadd.f32 %v515, %v838
      %v840 = vpop.f32.mrf.mxu0
      %841 = vmatprep.mubr.f32.mxu0 0.0
      %842 = vmatmul.mubr.f32.gmra.mxu0 %v645
      %v843 = vpop.f32.mrf.mxu0
      %v844 = vadd.f32 %v520, %v843
      %v845 = vpop.f32.mrf.mxu0
      %846 = vmatprep.mubr.f32.mxu0 0.0
      %847 = vmatmul.mubr.f32.gmra.mxu0 %v648
      %v848 = vpop.f32.mrf.mxu0
      %v849 = vadd.f32 %v525, %v848
      %v850 = vpop.f32.mrf.mxu0
      %851 = vmatprep.mubr.f32.mxu0 0.0
      %852 = vmatmul.mubr.f32.gmra.mxu0 %v651
      %v853 = vpop.f32.mrf.mxu0
      %v854 = vadd.f32 %v530, %v853
      %v855 = vpop.f32.mrf.mxu0
      %856 = vmatprep.mubr.f32.mxu0 0.0
      %857 = vmatmul.mubr.f32.gmra.mxu0 %v654
      %v858 = vpop.f32.mrf.mxu0
      %v859 = vadd.f32 %v535, %v858
      %v860 = vpop.f32.mrf.mxu0
      %861 = vmatprep.mubr.f32.mxu0 0.0
      %862 = vmatmul.mubr.f32.gmra.mxu0 %v657
      %v863 = vpop.f32.mrf.mxu0
      %v864 = vadd.f32 %v540, %v863
      %v865 = vpop.f32.mrf.mxu0
      %866 = vmatprep.mubr.f32.mxu0 0.0
      %867 = vmatmul.mubr.f32.gmra.mxu0 %v660
      %v868 = vpop.f32.mrf.mxu0
      %v869 = vadd.f32 %v545, %v868
      %v870 = vpop.f32.mrf.mxu0
      %871 = vmatprep.mubr.f32.mxu0 0.0
      %872 = vmatmul.mubr.f32.gmra.mxu0 %v663
      %v873 = vpop.f32.mrf.mxu0
      %v874 = vadd.f32 %v550, %v873
      %v875 = vpop.f32.mrf.mxu0
      %876 = vmatprep.mubr.f32.mxu0 0.0
      %877 = vmatmul.mubr.f32.gmra.mxu0 %v666
      %v878 = vpop.f32.mrf.mxu0
      %v879 = vadd.f32 %v555, %v878
      %v880 = vpop.f32.mrf.mxu0
      %881 = vmatprep.mubr.f32.mxu0 0.0
      %882 = vmatmul.mubr.f32.gmra.mxu0 %v669
      %v883 = vpop.f32.mrf.mxu0
      %v884 = vadd.f32 %v560, %v883
      %v885 = vpop.f32.mrf.mxu0
      %886 = vmatprep.mubr.f32.mxu0 0.0
      %887 = vmatmul.mubr.f32.gmra.mxu0 %v672
      %v888 = vpop.f32.mrf.mxu0
      %v889 = vadd.f32 %v565, %v888
      %v890 = vpop.f32.mrf.mxu0
      %891 = vmatprep.mubr.f32.mxu0 0.0
      %892 = vmatmul.mubr.f32.gmra.mxu0 %v675
      %v893 = vpop.f32.mrf.mxu0
      %v894 = vadd.f32 %v570, %v893
      %v895 = vpop.f32.mrf.mxu0
      %896 = vmatprep.mubr.f32.mxu0 0.0
      %897 = vmatmul.mubr.f32.gmra.mxu0 %v678
      %v898 = vpop.f32.mrf.mxu0
      %v899 = vadd.f32 %v575, %v898
      %v900 = vpop.f32.mrf.mxu0
      %901 = vmatprep.mubr.f32.mxu0 0.0
      %902 = vmatmul.mubr.f32.gmra.mxu0 %v681
      %v903 = vpop.f32.mrf.mxu0
      %v904 = vadd.f32 %v580, %v903
      %v905 = vpop.f32.mrf.mxu0
      %906 = vmatprep.mubr.f32.mxu0 0.0
      %907 = vmatmul.mubr.f32.gmra.mxu0 %v684
      %v908 = vpop.f32.mrf.mxu0
      %v909 = vadd.f32 %v585, %v908
      %v910 = vpop.f32.mrf.mxu0
      %911 = vmatprep.mubr.f32.mxu0 0.0
      %912 = vmatmul.mubr.f32.gmra.mxu0 %v687
      %v913 = vpop.f32.mrf.mxu0
      %v914 = vadd.f32 %v590, %v913
      %v915 = vpop.f32.mrf.mxu0
      %916 = vdwg.mxu0
      %s917 = scalar_lea.vmem %s1, 8
      %v918 = vld [vmem:[%s917] sm:$0xf]
      %s919 = sadd.s32 %s196, 1
      %s920 = smul.u32 %s919, 24
      %s921 = scalar_lea.vmem %s184, %s920
      %v922 = vld [vmem:[%s921] sm:$0xff]
      %v923 = vld [vmem:[%s921 + $0x8] sm:$0xff]
      %v924 = vld [vmem:[%s921 + $0x18] sm:$0xff]
      %v925 = vld [vmem:[%s921 + $0x20] sm:$0xff]
      %v926 = vld [vmem:[%s921 + $0x30] sm:$0xff]
      %v927 = vld [vmem:[%s921 + $0x38] sm:$0xff]
      %v928 = vld [vmem:[%s921 + $0x48] sm:$0xff]
      %v929 = vld [vmem:[%s921 + $0x50] sm:$0xff]
      %v930 = vld [vmem:[%s921 + $0x60] sm:$0xff]
      %v931 = vld [vmem:[%s921 + $0x68] sm:$0xff]
      %v932 = vld [vmem:[%s921 + $0x78] sm:$0xff]
      %v933 = vld [vmem:[%s921 + $0x80] sm:$0xff]
      %v934 = vld [vmem:[%s921 + $0x90] sm:$0xff]
      %v935 = vld [vmem:[%s921 + $0x98] sm:$0xff]
      %v936 = vld [vmem:[%s921 + $0xa8] sm:$0xff]
      %v937 = vld [vmem:[%s921 + $0xb0] sm:$0xff]
      %v938 = vld [vmem:[%s921 + $0xc0] sm:$0xff]
      %v939 = vld [vmem:[%s921 + $0xc8] sm:$0xff]
      %v940 = vld [vmem:[%s921 + $0xd8] sm:$0xff]
      %v941 = vld [vmem:[%s921 + $0xe0] sm:$0xff]
      %v942 = vld [vmem:[%s921 + $0xf0] sm:$0xff]
      %v943 = vld [vmem:[%s921 + $0xf8] sm:$0xff]
      %v944 = vld [vmem:[%s921 + $0x108] sm:$0xff]
      %v945 = vld [vmem:[%s921 + $0x110] sm:$0xff]
      %v946 = vld [vmem:[%s921 + $0x120] sm:$0xff]
      %v947 = vld [vmem:[%s921 + $0x128] sm:$0xff]
      %v948 = vld [vmem:[%s921 + $0x138] sm:$0xff]
      %v949 = vld [vmem:[%s921 + $0x140] sm:$0xff]
      %v950 = vld [vmem:[%s921 + $0x150] sm:$0xff]
      %v951 = vld [vmem:[%s921 + $0x158] sm:$0xff]
      %v952 = vld [vmem:[%s921 + $0x168] sm:$0xff]
      %v953 = vld [vmem:[%s921 + $0x170] sm:$0xff]
      %v955 = vsel %vm267, %v922, 0
      %v958 = vsel %vm267, %v923, 0
      %v961 = vsel %vm267, %v924, 0
      %v964 = vsel %vm267, %v925, 0
      %v967 = vsel %vm267, %v926, 0
      %v970 = vsel %vm267, %v927, 0
      %v973 = vsel %vm267, %v928, 0
      %v976 = vsel %vm267, %v929, 0
      %v979 = vsel %vm267, %v930, 0
      %v982 = vsel %vm267, %v931, 0
      %v985 = vsel %vm267, %v932, 0
      %v988 = vsel %vm267, %v933, 0
      %v991 = vsel %vm267, %v934, 0
      %v994 = vsel %vm267, %v935, 0
      %v997 = vsel %vm267, %v936, 0
      %v1000 = vsel %vm267, %v937, 0
      %v1003 = vsel %vm267, %v938, 0
      %v1006 = vsel %vm267, %v939, 0
      %v1009 = vsel %vm267, %v940, 0
      %v1012 = vsel %vm267, %v941, 0
      %v1015 = vsel %vm267, %v942, 0
      %v1018 = vsel %vm267, %v943, 0
      %v1021 = vsel %vm267, %v944, 0
      %v1024 = vsel %vm267, %v945, 0
      %v1027 = vsel %vm267, %v946, 0
      %v1030 = vsel %vm267, %v947, 0
      %v1033 = vsel %vm267, %v948, 0
      %v1036 = vsel %vm267, %v949, 0
      %v1039 = vsel %vm267, %v950, 0
      %v1042 = vsel %vm267, %v951, 0
      %v1045 = vsel %vm267, %v952, 0
      %v1048 = vsel %vm267, %v953, 0
      %v1051 = vsel %vm364, %v918, 0
      %1053 = vmatprep.subr.mxu0 0.0
      %1054 = vmatpush1.msra.mxu0 0.0
      %1055 = vmatprep.subr.mxu0 0.0
      %1056 = vmatpush1.msra.mxu0 0.0
      %1057 = vmatprep.subr.mxu0 0.0
      %1058 = vmatpush1.msra.mxu0 0.0
      %1059 = vmatprep.subr.mxu0 0.0
      %1060 = vmatpush1.msra.mxu0 0.0
      %1061 = vmatprep.subr.mxu0 0.0
      %1062 = vmatpush1.msra.mxu0 0.0
      %1063 = vmatprep.subr.mxu0 0.0
      %1064 = vmatpush1.msra.mxu0 0.0
      %1065 = vmatprep.subr.mxu0 0.0
      %1066 = vmatpush1.msra.mxu0 0.0
      %1067 = vmatprep.subr.mxu0 0.0
      %1068 = vmatpush1.msra.mxu0 0.0
      %1069 = vmatprep.subr.mxu0 0.0
      %1070 = vmatpush1.msra.mxu0 0.0
      %1071 = vmatprep.subr.mxu0 0.0
      %1072 = vmatpush1.msra.mxu0 0.0
      %1073 = vmatprep.subr.mxu0 0.0
      %1074 = vmatpush1.msra.mxu0 0.0
      %1075 = vmatprep.subr.mxu0 0.0
      %1076 = vmatpush1.msra.mxu0 0.0
      %1077 = vmatprep.subr.mxu0 0.0
      %1078 = vmatpush1.msra.mxu0 0.0
      %1079 = vmatprep.subr.mxu0 0.0
      %1080 = vmatpush1.msra.mxu0 0.0
      %1081 = vmatprep.subr.mxu0 0.0
      %1082 = vmatpush1.msra.mxu0 0.0
      %1083 = vmatprep.subr.mxu0 0.0
      %1084 = vmatpush1.msra.mxu0 %v1051
      %1085 = vmatprep.subr.mxu0 0.0
      %1086 = vmatpush2.msra.mxu0 0.0
      %1087 = vmatprep.subr.mxu0 0.0
      %1088 = vmatpush2.msra.mxu0 0.0
      %1089 = vmatprep.subr.mxu0 0.0
      %1090 = vmatpush2.msra.mxu0 0.0
      %1091 = vmatprep.subr.mxu0 0.0
      %1092 = vmatpush2.msra.mxu0 0.0
      %1093 = vmatprep.subr.mxu0 0.0
      %1094 = vmatpush2.msra.mxu0 0.0
      %1095 = vmatprep.subr.mxu0 0.0
      %1096 = vmatpush2.msra.mxu0 0.0
      %1097 = vmatprep.subr.mxu0 0.0
      %1098 = vmatpush2.msra.mxu0 0.0
      %1099 = vmatprep.subr.mxu0 0.0
      %1100 = vmatpush2.msra.mxu0 0.0
      %1101 = vmatprep.subr.mxu0 0.0
      %1102 = vmatpush2.msra.mxu0 0.0
      %1103 = vmatprep.subr.mxu0 0.0
      %1104 = vmatpush2.msra.mxu0 0.0
      %1105 = vmatprep.subr.mxu0 0.0
      %1106 = vmatpush2.msra.mxu0 0.0
      %1107 = vmatprep.subr.mxu0 0.0
      %1108 = vmatpush2.msra.mxu0 0.0
      %1109 = vmatprep.subr.mxu0 0.0
      %1110 = vmatpush2.msra.mxu0 0.0
      %1111 = vmatprep.subr.mxu0 0.0
      %1112 = vmatpush2.msra.mxu0 0.0
      %1113 = vmatprep.subr.mxu0 0.0
      %1114 = vmatpush2.msra.mxu0 0.0
      %1115 = vmatprep.subr.mxu0 0.0
      %1116 = vmatpush2.msra.mxu0 0.0
      %1117 = vmatprep.mubr.f32.mxu0 0.0
      %1118 = vmatmul.mubr.f32.gmra.mxu0 %v955
      %v1119 = vpop.f32.mrf.mxu0
      %v1120 = vadd.f32 0.0, %v1119
      %v1121 = vpop.f32.mrf.mxu0
      %1122 = vmatprep.mubr.f32.mxu0 0.0
      %1123 = vmatmul.mubr.f32.gmra.mxu0 %v958
      %v1124 = vpop.f32.mrf.mxu0
      %v1125 = vadd.f32 0.0, %v1124
      %v1126 = vpop.f32.mrf.mxu0
      %1127 = vmatprep.mubr.f32.mxu0 0.0
      %1128 = vmatmul.mubr.f32.gmra.mxu0 %v961
      %v1129 = vpop.f32.mrf.mxu0
      %v1130 = vadd.f32 0.0, %v1129
      %v1131 = vpop.f32.mrf.mxu0
      %1132 = vmatprep.mubr.f32.mxu0 0.0
      %1133 = vmatmul.mubr.f32.gmra.mxu0 %v964
      %v1134 = vpop.f32.mrf.mxu0
      %v1135 = vadd.f32 0.0, %v1134
      %v1136 = vpop.f32.mrf.mxu0
      %1137 = vmatprep.mubr.f32.mxu0 0.0
      %1138 = vmatmul.mubr.f32.gmra.mxu0 %v967
      %v1139 = vpop.f32.mrf.mxu0
      %v1140 = vadd.f32 0.0, %v1139
      %v1141 = vpop.f32.mrf.mxu0
      %1142 = vmatprep.mubr.f32.mxu0 0.0
      %1143 = vmatmul.mubr.f32.gmra.mxu0 %v970
      %v1144 = vpop.f32.mrf.mxu0
      %v1145 = vadd.f32 0.0, %v1144
      %v1146 = vpop.f32.mrf.mxu0
      %1147 = vmatprep.mubr.f32.mxu0 0.0
      %1148 = vmatmul.mubr.f32.gmra.mxu0 %v973
      %v1149 = vpop.f32.mrf.mxu0
      %v1150 = vadd.f32 0.0, %v1149
      %v1151 = vpop.f32.mrf.mxu0
      %1152 = vmatprep.mubr.f32.mxu0 0.0
      %1153 = vmatmul.mubr.f32.gmra.mxu0 %v976
      %v1154 = vpop.f32.mrf.mxu0
      %v1155 = vadd.f32 0.0, %v1154
      %v1156 = vpop.f32.mrf.mxu0
      %1157 = vmatprep.mubr.f32.mxu0 0.0
      %1158 = vmatmul.mubr.f32.gmra.mxu0 %v979
      %v1159 = vpop.f32.mrf.mxu0
      %v1160 = vadd.f32 0.0, %v1159
      %v1161 = vpop.f32.mrf.mxu0
      %1162 = vmatprep.mubr.f32.mxu0 0.0
      %1163 = vmatmul.mubr.f32.gmra.mxu0 %v982
      %v1164 = vpop.f32.mrf.mxu0
      %v1165 = vadd.f32 0.0, %v1164
      %v1166 = vpop.f32.mrf.mxu0
      %1167 = vmatprep.mubr.f32.mxu0 0.0
      %1168 = vmatmul.mubr.f32.gmra.mxu0 %v985
      %v1169 = vpop.f32.mrf.mxu0
      %v1170 = vadd.f32 0.0, %v1169
      %v1171 = vpop.f32.mrf.mxu0
      %1172 = vmatprep.mubr.f32.mxu0 0.0
      %1173 = vmatmul.mubr.f32.gmra.mxu0 %v988
      %v1174 = vpop.f32.mrf.mxu0
      %v1175 = vadd.f32 0.0, %v1174
      %v1176 = vpop.f32.mrf.mxu0
      %1177 = vmatprep.mubr.f32.mxu0 0.0
      %1178 = vmatmul.mubr.f32.gmra.mxu0 %v991
      %v1179 = vpop.f32.mrf.mxu0
      %v1180 = vadd.f32 0.0, %v1179
      %v1181 = vpop.f32.mrf.mxu0
      %1182 = vmatprep.mubr.f32.mxu0 0.0
      %1183 = vmatmul.mubr.f32.gmra.mxu0 %v994
      %v1184 = vpop.f32.mrf.mxu0
      %v1185 = vadd.f32 0.0, %v1184
      %v1186 = vpop.f32.mrf.mxu0
      %1187 = vmatprep.mubr.f32.mxu0 0.0
      %1188 = vmatmul.mubr.f32.gmra.mxu0 %v997
      %v1189 = vpop.f32.mrf.mxu0
      %v1190 = vadd.f32 0.0, %v1189
      %v1191 = vpop.f32.mrf.mxu0
      %1192 = vmatprep.mubr.f32.mxu0 0.0
      %1193 = vmatmul.mubr.f32.gmra.mxu0 %v1000
      %v1194 = vpop.f32.mrf.mxu0
      %v1195 = vadd.f32 0.0, %v1194
      %v1196 = vpop.f32.mrf.mxu0
      %1197 = vmatprep.mubr.f32.mxu0 0.0
      %1198 = vmatmul.mubr.f32.gmra.mxu0 %v1003
      %v1199 = vpop.f32.mrf.mxu0
      %v1200 = vadd.f32 0.0, %v1199
      %v1201 = vpop.f32.mrf.mxu0
      %1202 = vmatprep.mubr.f32.mxu0 0.0
      %1203 = vmatmul.mubr.f32.gmra.mxu0 %v1006
      %v1204 = vpop.f32.mrf.mxu0
      %v1205 = vadd.f32 0.0, %v1204
      %v1206 = vpop.f32.mrf.mxu0
      %1207 = vmatprep.mubr.f32.mxu0 0.0
      %1208 = vmatmul.mubr.f32.gmra.mxu0 %v1009
      %v1209 = vpop.f32.mrf.mxu0
      %v1210 = vadd.f32 0.0, %v1209
      %v1211 = vpop.f32.mrf.mxu0
      %1212 = vmatprep.mubr.f32.mxu0 0.0
      %1213 = vmatmul.mubr.f32.gmra.mxu0 %v1012
      %v1214 = vpop.f32.mrf.mxu0
      %v1215 = vadd.f32 0.0, %v1214
      %v1216 = vpop.f32.mrf.mxu0
      %1217 = vmatprep.mubr.f32.mxu0 0.0
      %1218 = vmatmul.mubr.f32.gmra.mxu0 %v1015
      %v1219 = vpop.f32.mrf.mxu0
      %v1220 = vadd.f32 0.0, %v1219
      %v1221 = vpop.f32.mrf.mxu0
      %1222 = vmatprep.mubr.f32.mxu0 0.0
      %1223 = vmatmul.mubr.f32.gmra.mxu0 %v1018
      %v1224 = vpop.f32.mrf.mxu0
      %v1225 = vadd.f32 0.0, %v1224
      %v1226 = vpop.f32.mrf.mxu0
      %1227 = vmatprep.mubr.f32.mxu0 0.0
      %1228 = vmatmul.mubr.f32.gmra.mxu0 %v1021
      %v1229 = vpop.f32.mrf.mxu0
      %v1230 = vadd.f32 0.0, %v1229
      %v1231 = vpop.f32.mrf.mxu0
      %1232 = vmatprep.mubr.f32.mxu0 0.0
      %1233 = vmatmul.mubr.f32.gmra.mxu0 %v1024
      %v1234 = vpop.f32.mrf.mxu0
      %v1235 = vadd.f32 0.0, %v1234
      %v1236 = vpop.f32.mrf.mxu0
      %1237 = vmatprep.mubr.f32.mxu0 0.0
      %1238 = vmatmul.mubr.f32.gmra.mxu0 %v1027
      %v1239 = vpop.f32.mrf.mxu0
      %v1240 = vadd.f32 0.0, %v1239
      %v1241 = vpop.f32.mrf.mxu0
      %1242 = vmatprep.mubr.f32.mxu0 0.0
      %1243 = vmatmul.mubr.f32.gmra.mxu0 %v1030
      %v1244 = vpop.f32.mrf.mxu0
      %v1245 = vadd.f32 0.0, %v1244
      %v1246 = vpop.f32.mrf.mxu0
      %1247 = vmatprep.mubr.f32.mxu0 0.0
      %1248 = vmatmul.mubr.f32.gmra.mxu0 %v1033
      %v1249 = vpop.f32.mrf.mxu0
      %v1250 = vadd.f32 0.0, %v1249
      %v1251 = vpop.f32.mrf.mxu0
      %1252 = vmatprep.mubr.f32.mxu0 0.0
      %1253 = vmatmul.mubr.f32.gmra.mxu0 %v1036
      %v1254 = vpop.f32.mrf.mxu0
      %v1255 = vadd.f32 0.0, %v1254
      %v1256 = vpop.f32.mrf.mxu0
      %1257 = vmatprep.mubr.f32.mxu0 0.0
      %1258 = vmatmul.mubr.f32.gmra.mxu0 %v1039
      %v1259 = vpop.f32.mrf.mxu0
      %v1260 = vadd.f32 0.0, %v1259
      %v1261 = vpop.f32.mrf.mxu0
      %1262 = vmatprep.mubr.f32.mxu0 0.0
      %1263 = vmatmul.mubr.f32.gmra.mxu0 %v1042
      %v1264 = vpop.f32.mrf.mxu0
      %v1265 = vadd.f32 0.0, %v1264
      %v1266 = vpop.f32.mrf.mxu0
      %1267 = vmatprep.mubr.f32.mxu0 0.0
      %1268 = vmatmul.mubr.f32.gmra.mxu0 %v1045
      %v1269 = vpop.f32.mrf.mxu0
      %v1270 = vadd.f32 0.0, %v1269
      %v1271 = vpop.f32.mrf.mxu0
      %1272 = vmatprep.mubr.f32.mxu0 0.0
      %1273 = vmatmul.mubr.f32.gmra.mxu0 %v1048
      %v1274 = vpop.f32.mrf.mxu0
      %v1275 = vadd.f32 0.0, %v1274
      %v1276 = vpop.f32.mrf.mxu0
      %1277 = vdwg.mxu0
      %v1278 = vadd.f32 %v759, %v1120
      %v1279 = vadd.f32 %v764, %v1125
      %v1280 = vadd.f32 %v769, %v1130
      %v1281 = vadd.f32 %v774, %v1135
      %v1282 = vadd.f32 %v779, %v1140
      %v1283 = vadd.f32 %v784, %v1145
      %v1284 = vadd.f32 %v789, %v1150
      %v1285 = vadd.f32 %v794, %v1155
      %v1286 = vadd.f32 %v799, %v1160
      %v1287 = vadd.f32 %v804, %v1165
      %v1288 = vadd.f32 %v809, %v1170
      %v1289 = vadd.f32 %v814, %v1175
      %v1290 = vadd.f32 %v819, %v1180
      %v1291 = vadd.f32 %v824, %v1185
      %v1292 = vadd.f32 %v829, %v1190
      %v1293 = vadd.f32 %v834, %v1195
      %v1294 = vadd.f32 %v839, %v1200
      %v1295 = vadd.f32 %v844, %v1205
      %v1296 = vadd.f32 %v849, %v1210
      %v1297 = vadd.f32 %v854, %v1215
      %v1298 = vadd.f32 %v859, %v1220
      %v1299 = vadd.f32 %v864, %v1225
      %v1300 = vadd.f32 %v869, %v1230
      %v1301 = vadd.f32 %v874, %v1235
      %v1302 = vadd.f32 %v879, %v1240
      %v1303 = vadd.f32 %v884, %v1245
      %v1304 = vadd.f32 %v889, %v1250
      %v1305 = vadd.f32 %v894, %v1255
      %v1306 = vadd.f32 %v899, %v1260
      %v1307 = vadd.f32 %v904, %v1265
      %v1308 = vadd.f32 %v909, %v1270
      %v1309 = vadd.f32 %v914, %v1275
      %s1310 = scalar_lea.vmem %s1, 12
      %v1311 = vld [vmem:[%s1310] sm:$0xf]
      %v1312 = vld [vmem:[%s921 + $0x1] sm:$0xff]
      %v1313 = vld [vmem:[%s921 + $0x9] sm:$0xff]
      %v1314 = vld [vmem:[%s921 + $0x19] sm:$0xff]
      %v1315 = vld [vmem:[%s921 + $0x21] sm:$0xff]
      %v1316 = vld [vmem:[%s921 + $0x31] sm:$0xff]
      %v1317 = vld [vmem:[%s921 + $0x39] sm:$0xff]
      %v1318 = vld [vmem:[%s921 + $0x49] sm:$0xff]
      %v1319 = vld [vmem:[%s921 + $0x51] sm:$0xff]
      %v1320 = vld [vmem:[%s921 + $0x61] sm:$0xff]
      %v1321 = vld [vmem:[%s921 + $0x69] sm:$0xff]
      %v1322 = vld [vmem:[%s921 + $0x79] sm:$0xff]
      %v1323 = vld [vmem:[%s921 + $0x81] sm:$0xff]
      %v1324 = vld [vmem:[%s921 + $0x91] sm:$0xff]
      %v1325 = vld [vmem:[%s921 + $0x99] sm:$0xff]
      %v1326 = vld [vmem:[%s921 + $0xa9] sm:$0xff]
      %v1327 = vld [vmem:[%s921 + $0xb1] sm:$0xff]
      %v1328 = vld [vmem:[%s921 + $0xc1] sm:$0xff]
      %v1329 = vld [vmem:[%s921 + $0xc9] sm:$0xff]
      %v1330 = vld [vmem:[%s921 + $0xd9] sm:$0xff]
      %v1331 = vld [vmem:[%s921 + $0xe1] sm:$0xff]
      %v1332 = vld [vmem:[%s921 + $0xf1] sm:$0xff]
      %v1333 = vld [vmem:[%s921 + $0xf9] sm:$0xff]
      %v1334 = vld [vmem:[%s921 + $0x109] sm:$0xff]
      %v1335 = vld [vmem:[%s921 + $0x111] sm:$0xff]
      %v1336 = vld [vmem:[%s921 + $0x121] sm:$0xff]
      %v1337 = vld [vmem:[%s921 + $0x129] sm:$0xff]
      %v1338 = vld [vmem:[%s921 + $0x139] sm:$0xff]
      %v1339 = vld [vmem:[%s921 + $0x141] sm:$0xff]
      %v1340 = vld [vmem:[%s921 + $0x151] sm:$0xff]
      %v1341 = vld [vmem:[%s921 + $0x159] sm:$0xff]
      %v1342 = vld [vmem:[%s921 + $0x169] sm:$0xff]
      %v1343 = vld [vmem:[%s921 + $0x171] sm:$0xff]
      %v1345 = vsel %vm267, %v1312, 0
      %v1348 = vsel %vm267, %v1313, 0
      %v1351 = vsel %vm267, %v1314, 0
      %v1354 = vsel %vm267, %v1315, 0
      %v1357 = vsel %vm267, %v1316, 0
      %v1360 = vsel %vm267, %v1317, 0
      %v1363 = vsel %vm267, %v1318, 0
      %v1366 = vsel %vm267, %v1319, 0
      %v1369 = vsel %vm267, %v1320, 0
      %v1372 = vsel %vm267, %v1321, 0
      %v1375 = vsel %vm267, %v1322, 0
      %v1378 = vsel %vm267, %v1323, 0
      %v1381 = vsel %vm267, %v1324, 0
      %v1384 = vsel %vm267, %v1325, 0
      %v1387 = vsel %vm267, %v1326, 0
      %v1390 = vsel %vm267, %v1327, 0
      %v1393 = vsel %vm267, %v1328, 0
      %v1396 = vsel %vm267, %v1329, 0
      %v1399 = vsel %vm267, %v1330, 0
      %v1402 = vsel %vm267, %v1331, 0
      %v1405 = vsel %vm267, %v1332, 0
      %v1408 = vsel %vm267, %v1333, 0
      %v1411 = vsel %vm267, %v1334, 0
      %v1414 = vsel %vm267, %v1335, 0
      %v1417 = vsel %vm267, %v1336, 0
      %v1420 = vsel %vm267, %v1337, 0
      %v1423 = vsel %vm267, %v1338, 0
      %v1426 = vsel %vm267, %v1339, 0
      %v1429 = vsel %vm267, %v1340, 0
      %v1432 = vsel %vm267, %v1341, 0
      %v1435 = vsel %vm267, %v1342, 0
      %v1438 = vsel %vm267, %v1343, 0
      %v1441 = vsel %vm364, %v1311, 0
      %1443 = vmatprep.subr.mxu0 0.0
      %1444 = vmatpush1.msra.mxu0 0.0
      %1445 = vmatprep.subr.mxu0 0.0
      %1446 = vmatpush1.msra.mxu0 0.0
      %1447 = vmatprep.subr.mxu0 0.0
      %1448 = vmatpush1.msra.mxu0 0.0
      %1449 = vmatprep.subr.mxu0 0.0
      %1450 = vmatpush1.msra.mxu0 0.0
      %1451 = vmatprep.subr.mxu0 0.0
      %1452 = vmatpush1.msra.mxu0 0.0
      %1453 = vmatprep.subr.mxu0 0.0
      %1454 = vmatpush1.msra.mxu0 0.0
      %1455 = vmatprep.subr.mxu0 0.0
      %1456 = vmatpush1.msra.mxu0 0.0
      %1457 = vmatprep.subr.mxu0 0.0
      %1458 = vmatpush1.msra.mxu0 0.0
      %1459 = vmatprep.subr.mxu0 0.0
      %1460 = vmatpush1.msra.mxu0 0.0
      %1461 = vmatprep.subr.mxu0 0.0
      %1462 = vmatpush1.msra.mxu0 0.0
      %1463 = vmatprep.subr.mxu0 0.0
      %1464 = vmatpush1.msra.mxu0 0.0
      %1465 = vmatprep.subr.mxu0 0.0
      %1466 = vmatpush1.msra.mxu0 0.0
      %1467 = vmatprep.subr.mxu0 0.0
      %1468 = vmatpush1.msra.mxu0 0.0
      %1469 = vmatprep.subr.mxu0 0.0
      %1470 = vmatpush1.msra.mxu0 0.0
      %1471 = vmatprep.subr.mxu0 0.0
      %1472 = vmatpush1.msra.mxu0 0.0
      %1473 = vmatprep.subr.mxu0 0.0
      %1474 = vmatpush1.msra.mxu0 %v1441
      %1475 = vmatprep.subr.mxu0 0.0
      %1476 = vmatpush2.msra.mxu0 0.0
      %1477 = vmatprep.subr.mxu0 0.0
      %1478 = vmatpush2.msra.mxu0 0.0
      %1479 = vmatprep.subr.mxu0 0.0
      %1480 = vmatpush2.msra.mxu0 0.0
      %1481 = vmatprep.subr.mxu0 0.0
      %1482 = vmatpush2.msra.mxu0 0.0
      %1483 = vmatprep.subr.mxu0 0.0
      %1484 = vmatpush2.msra.mxu0 0.0
      %1485 = vmatprep.subr.mxu0 0.0
      %1486 = vmatpush2.msra.mxu0 0.0
      %1487 = vmatprep.subr.mxu0 0.0
      %1488 = vmatpush2.msra.mxu0 0.0
      %1489 = vmatprep.subr.mxu0 0.0
      %1490 = vmatpush2.msra.mxu0 0.0
      %1491 = vmatprep.subr.mxu0 0.0
      %1492 = vmatpush2.msra.mxu0 0.0
      %1493 = vmatprep.subr.mxu0 0.0
      %1494 = vmatpush2.msra.mxu0 0.0
      %1495 = vmatprep.subr.mxu0 0.0
      %1496 = vmatpush2.msra.mxu0 0.0
      %1497 = vmatprep.subr.mxu0 0.0
      %1498 = vmatpush2.msra.mxu0 0.0
      %1499 = vmatprep.subr.mxu0 0.0
      %1500 = vmatpush2.msra.mxu0 0.0
      %1501 = vmatprep.subr.mxu0 0.0
      %1502 = vmatpush2.msra.mxu0 0.0
      %1503 = vmatprep.subr.mxu0 0.0
      %1504 = vmatpush2.msra.mxu0 0.0
      %1505 = vmatprep.subr.mxu0 0.0
      %1506 = vmatpush2.msra.mxu0 0.0
      %1507 = vmatprep.mubr.f32.mxu0 0.0
      %1508 = vmatmul.mubr.f32.gmra.mxu0 %v1345
      %v1509 = vpop.f32.mrf.mxu0
      %v1510 = vadd.f32 0.0, %v1509
      %v1511 = vpop.f32.mrf.mxu0
      %1512 = vmatprep.mubr.f32.mxu0 0.0
      %1513 = vmatmul.mubr.f32.gmra.mxu0 %v1348
      %v1514 = vpop.f32.mrf.mxu0
      %v1515 = vadd.f32 0.0, %v1514
      %v1516 = vpop.f32.mrf.mxu0
      %1517 = vmatprep.mubr.f32.mxu0 0.0
      %1518 = vmatmul.mubr.f32.gmra.mxu0 %v1351
      %v1519 = vpop.f32.mrf.mxu0
      %v1520 = vadd.f32 0.0, %v1519
      %v1521 = vpop.f32.mrf.mxu0
      %1522 = vmatprep.mubr.f32.mxu0 0.0
      %1523 = vmatmul.mubr.f32.gmra.mxu0 %v1354
      %v1524 = vpop.f32.mrf.mxu0
      %v1525 = vadd.f32 0.0, %v1524
      %v1526 = vpop.f32.mrf.mxu0
      %1527 = vmatprep.mubr.f32.mxu0 0.0
      %1528 = vmatmul.mubr.f32.gmra.mxu0 %v1357
      %v1529 = vpop.f32.mrf.mxu0
      %v1530 = vadd.f32 0.0, %v1529
      %v1531 = vpop.f32.mrf.mxu0
      %1532 = vmatprep.mubr.f32.mxu0 0.0
      %1533 = vmatmul.mubr.f32.gmra.mxu0 %v1360
      %v1534 = vpop.f32.mrf.mxu0
      %v1535 = vadd.f32 0.0, %v1534
      %v1536 = vpop.f32.mrf.mxu0
      %1537 = vmatprep.mubr.f32.mxu0 0.0
      %1538 = vmatmul.mubr.f32.gmra.mxu0 %v1363
      %v1539 = vpop.f32.mrf.mxu0
      %v1540 = vadd.f32 0.0, %v1539
      %v1541 = vpop.f32.mrf.mxu0
      %1542 = vmatprep.mubr.f32.mxu0 0.0
      %1543 = vmatmul.mubr.f32.gmra.mxu0 %v1366
      %v1544 = vpop.f32.mrf.mxu0
      %v1545 = vadd.f32 0.0, %v1544
      %v1546 = vpop.f32.mrf.mxu0
      %1547 = vmatprep.mubr.f32.mxu0 0.0
      %1548 = vmatmul.mubr.f32.gmra.mxu0 %v1369
      %v1549 = vpop.f32.mrf.mxu0
      %v1550 = vadd.f32 0.0, %v1549
      %v1551 = vpop.f32.mrf.mxu0
      %1552 = vmatprep.mubr.f32.mxu0 0.0
      %1553 = vmatmul.mubr.f32.gmra.mxu0 %v1372
      %v1554 = vpop.f32.mrf.mxu0
      %v1555 = vadd.f32 0.0, %v1554
      %v1556 = vpop.f32.mrf.mxu0
      %1557 = vmatprep.mubr.f32.mxu0 0.0
      %1558 = vmatmul.mubr.f32.gmra.mxu0 %v1375
      %v1559 = vpop.f32.mrf.mxu0
      %v1560 = vadd.f32 0.0, %v1559
      %v1561 = vpop.f32.mrf.mxu0
      %1562 = vmatprep.mubr.f32.mxu0 0.0
      %1563 = vmatmul.mubr.f32.gmra.mxu0 %v1378
      %v1564 = vpop.f32.mrf.mxu0
      %v1565 = vadd.f32 0.0, %v1564
      %v1566 = vpop.f32.mrf.mxu0
      %1567 = vmatprep.mubr.f32.mxu0 0.0
      %1568 = vmatmul.mubr.f32.gmra.mxu0 %v1381
      %v1569 = vpop.f32.mrf.mxu0
      %v1570 = vadd.f32 0.0, %v1569
      %v1571 = vpop.f32.mrf.mxu0
      %1572 = vmatprep.mubr.f32.mxu0 0.0
      %1573 = vmatmul.mubr.f32.gmra.mxu0 %v1384
      %v1574 = vpop.f32.mrf.mxu0
      %v1575 = vadd.f32 0.0, %v1574
      %v1576 = vpop.f32.mrf.mxu0
      %1577 = vmatprep.mubr.f32.mxu0 0.0
      %1578 = vmatmul.mubr.f32.gmra.mxu0 %v1387
      %v1579 = vpop.f32.mrf.mxu0
      %v1580 = vadd.f32 0.0, %v1579
      %v1581 = vpop.f32.mrf.mxu0
      %1582 = vmatprep.mubr.f32.mxu0 0.0
      %1583 = vmatmul.mubr.f32.gmra.mxu0 %v1390
      %v1584 = vpop.f32.mrf.mxu0
      %v1585 = vadd.f32 0.0, %v1584
      %v1586 = vpop.f32.mrf.mxu0
      %1587 = vmatprep.mubr.f32.mxu0 0.0
      %1588 = vmatmul.mubr.f32.gmra.mxu0 %v1393
      %v1589 = vpop.f32.mrf.mxu0
      %v1590 = vadd.f32 0.0, %v1589
      %v1591 = vpop.f32.mrf.mxu0
      %1592 = vmatprep.mubr.f32.mxu0 0.0
      %1593 = vmatmul.mubr.f32.gmra.mxu0 %v1396
      %v1594 = vpop.f32.mrf.mxu0
      %v1595 = vadd.f32 0.0, %v1594
      %v1596 = vpop.f32.mrf.mxu0
      %1597 = vmatprep.mubr.f32.mxu0 0.0
      %1598 = vmatmul.mubr.f32.gmra.mxu0 %v1399
      %v1599 = vpop.f32.mrf.mxu0
      %v1600 = vadd.f32 0.0, %v1599
      %v1601 = vpop.f32.mrf.mxu0
      %1602 = vmatprep.mubr.f32.mxu0 0.0
      %1603 = vmatmul.mubr.f32.gmra.mxu0 %v1402
      %v1604 = vpop.f32.mrf.mxu0
      %v1605 = vadd.f32 0.0, %v1604
      %v1606 = vpop.f32.mrf.mxu0
      %1607 = vmatprep.mubr.f32.mxu0 0.0
      %1608 = vmatmul.mubr.f32.gmra.mxu0 %v1405
      %v1609 = vpop.f32.mrf.mxu0
      %v1610 = vadd.f32 0.0, %v1609
      %v1611 = vpop.f32.mrf.mxu0
      %1612 = vmatprep.mubr.f32.mxu0 0.0
      %1613 = vmatmul.mubr.f32.gmra.mxu0 %v1408
      %v1614 = vpop.f32.mrf.mxu0
      %v1615 = vadd.f32 0.0, %v1614
      %v1616 = vpop.f32.mrf.mxu0
      %1617 = vmatprep.mubr.f32.mxu0 0.0
      %1618 = vmatmul.mubr.f32.gmra.mxu0 %v1411
      %v1619 = vpop.f32.mrf.mxu0
      %v1620 = vadd.f32 0.0, %v1619
      %v1621 = vpop.f32.mrf.mxu0
      %1622 = vmatprep.mubr.f32.mxu0 0.0
      %1623 = vmatmul.mubr.f32.gmra.mxu0 %v1414
      %v1624 = vpop.f32.mrf.mxu0
      %v1625 = vadd.f32 0.0, %v1624
      %v1626 = vpop.f32.mrf.mxu0
      %1627 = vmatprep.mubr.f32.mxu0 0.0
      %1628 = vmatmul.mubr.f32.gmra.mxu0 %v1417
      %v1629 = vpop.f32.mrf.mxu0
      %v1630 = vadd.f32 0.0, %v1629
      %v1631 = vpop.f32.mrf.mxu0
      %1632 = vmatprep.mubr.f32.mxu0 0.0
      %1633 = vmatmul.mubr.f32.gmra.mxu0 %v1420
      %v1634 = vpop.f32.mrf.mxu0
      %v1635 = vadd.f32 0.0, %v1634
      %v1636 = vpop.f32.mrf.mxu0
      %1637 = vmatprep.mubr.f32.mxu0 0.0
      %1638 = vmatmul.mubr.f32.gmra.mxu0 %v1423
      %v1639 = vpop.f32.mrf.mxu0
      %v1640 = vadd.f32 0.0, %v1639
      %v1641 = vpop.f32.mrf.mxu0
      %1642 = vmatprep.mubr.f32.mxu0 0.0
      %1643 = vmatmul.mubr.f32.gmra.mxu0 %v1426
      %v1644 = vpop.f32.mrf.mxu0
      %v1645 = vadd.f32 0.0, %v1644
      %v1646 = vpop.f32.mrf.mxu0
      %1647 = vmatprep.mubr.f32.mxu0 0.0
      %1648 = vmatmul.mubr.f32.gmra.mxu0 %v1429
      %v1649 = vpop.f32.mrf.mxu0
      %v1650 = vadd.f32 0.0, %v1649
      %v1651 = vpop.f32.mrf.mxu0
      %1652 = vmatprep.mubr.f32.mxu0 0.0
      %1653 = vmatmul.mubr.f32.gmra.mxu0 %v1432
      %v1654 = vpop.f32.mrf.mxu0
      %v1655 = vadd.f32 0.0, %v1654
      %v1656 = vpop.f32.mrf.mxu0
      %1657 = vmatprep.mubr.f32.mxu0 0.0
      %1658 = vmatmul.mubr.f32.gmra.mxu0 %v1435
      %v1659 = vpop.f32.mrf.mxu0
      %v1660 = vadd.f32 0.0, %v1659
      %v1661 = vpop.f32.mrf.mxu0
      %1662 = vmatprep.mubr.f32.mxu0 0.0
      %1663 = vmatmul.mubr.f32.gmra.mxu0 %v1438
      %v1664 = vpop.f32.mrf.mxu0
      %v1665 = vadd.f32 0.0, %v1664
      %v1666 = vpop.f32.mrf.mxu0
      %1667 = vdwg.mxu0
      %v1668 = vadd.f32 %v1278, %v1510
      %v1669 = vadd.f32 %v1279, %v1515
      %v1670 = vadd.f32 %v1280, %v1520
      %v1671 = vadd.f32 %v1281, %v1525
      %v1672 = vadd.f32 %v1282, %v1530
      %v1673 = vadd.f32 %v1283, %v1535
      %v1674 = vadd.f32 %v1284, %v1540
      %v1675 = vadd.f32 %v1285, %v1545
      %v1676 = vadd.f32 %v1286, %v1550
      %v1677 = vadd.f32 %v1287, %v1555
      %v1678 = vadd.f32 %v1288, %v1560
      %v1679 = vadd.f32 %v1289, %v1565
      %v1680 = vadd.f32 %v1290, %v1570
      %v1681 = vadd.f32 %v1291, %v1575
      %v1682 = vadd.f32 %v1292, %v1580
      %v1683 = vadd.f32 %v1293, %v1585
      %v1684 = vadd.f32 %v1294, %v1590
      %v1685 = vadd.f32 %v1295, %v1595
      %v1686 = vadd.f32 %v1296, %v1600
      %v1687 = vadd.f32 %v1297, %v1605
      %v1688 = vadd.f32 %v1298, %v1610
      %v1689 = vadd.f32 %v1299, %v1615
      %v1690 = vadd.f32 %v1300, %v1620
      %v1691 = vadd.f32 %v1301, %v1625
      %v1692 = vadd.f32 %v1302, %v1630
      %v1693 = vadd.f32 %v1303, %v1635
      %v1694 = vadd.f32 %v1304, %v1640
      %v1695 = vadd.f32 %v1305, %v1645
      %v1696 = vadd.f32 %v1306, %v1650
      %v1697 = vadd.f32 %v1307, %v1655
      %v1698 = vadd.f32 %v1308, %v1660
      %v1699 = vadd.f32 %v1309, %v1665
      %v1701 = vlaneseq
      %v1702 = vshrl.u32 %v1701, 7
      %v1703 = vsub.s32 0, %v1702
      %v1704 = vrot.slane %v197, %v1703
      %v1706 = vadd.f32 %v1668, %v1704
      %v1707 = vadd.f32 %v1669, %v1704
      %v1708 = vadd.f32 %v1670, %v1704
      %v1709 = vadd.f32 %v1671, %v1704
      %v1710 = vadd.f32 %v1672, %v1704
      %v1711 = vadd.f32 %v1673, %v1704
      %v1712 = vadd.f32 %v1674, %v1704
      %v1713 = vadd.f32 %v1675, %v1704
      %v1714 = vadd.f32 %v1676, %v1704
      %v1715 = vadd.f32 %v1677, %v1704
      %v1716 = vadd.f32 %v1678, %v1704
      %v1717 = vadd.f32 %v1679, %v1704
      %v1718 = vadd.f32 %v1680, %v1704
      %v1719 = vadd.f32 %v1681, %v1704
      %v1720 = vadd.f32 %v1682, %v1704
      %v1721 = vadd.f32 %v1683, %v1704
      %v1722 = vadd.f32 %v1684, %v1704
      %v1723 = vadd.f32 %v1685, %v1704
      %v1724 = vadd.f32 %v1686, %v1704
      %v1725 = vadd.f32 %v1687, %v1704
      %v1726 = vadd.f32 %v1688, %v1704
      %v1727 = vadd.f32 %v1689, %v1704
      %v1728 = vadd.f32 %v1690, %v1704
      %v1729 = vadd.f32 %v1691, %v1704
      %v1730 = vadd.f32 %v1692, %v1704
      %v1731 = vadd.f32 %v1693, %v1704
      %v1732 = vadd.f32 %v1694, %v1704
      %v1733 = vadd.f32 %v1695, %v1704
      %v1734 = vadd.f32 %v1696, %v1704
      %v1735 = vadd.f32 %v1697, %v1704
      %v1736 = vadd.f32 %v1698, %v1704
      %v1737 = vadd.f32 %v1699, %v1704
      %1738 = vst.msk [vmem:[%s194] sm:$0xff] %vm267, %v1706
      %1739 = vst.msk [vmem:[%s194 + $0x8] sm:$0xff] %vm267, %v1707
      %1740 = vst.msk [vmem:[%s194 + $0x10] sm:$0xff] %vm267, %v1708
      %1741 = vst.msk [vmem:[%s194 + $0x18] sm:$0xff] %vm267, %v1709
      %1742 = vst.msk [vmem:[%s194 + $0x20] sm:$0xff] %vm267, %v1710
      %1743 = vst.msk [vmem:[%s194 + $0x28] sm:$0xff] %vm267, %v1711
      %1744 = vst.msk [vmem:[%s194 + $0x30] sm:$0xff] %vm267, %v1712
      %1745 = vst.msk [vmem:[%s194 + $0x38] sm:$0xff] %vm267, %v1713
      %1746 = vst.msk [vmem:[%s194 + $0x40] sm:$0xff] %vm267, %v1714
      %1747 = vst.msk [vmem:[%s194 + $0x48] sm:$0xff] %vm267, %v1715
      %1748 = vst.msk [vmem:[%s194 + $0x50] sm:$0xff] %vm267, %v1716
      %1749 = vst.msk [vmem:[%s194 + $0x58] sm:$0xff] %vm267, %v1717
      %1750 = vst.msk [vmem:[%s194 + $0x60] sm:$0xff] %vm267, %v1718
      %1751 = vst.msk [vmem:[%s194 + $0x68] sm:$0xff] %vm267, %v1719
      %1752 = vst.msk [vmem:[%s194 + $0x70] sm:$0xff] %vm267, %v1720
      %1753 = vst.msk [vmem:[%s194 + $0x78] sm:$0xff] %vm267, %v1721
      %1754 = vst.msk [vmem:[%s194 + $0x80] sm:$0xff] %vm267, %v1722
      %1755 = vst.msk [vmem:[%s194 + $0x88] sm:$0xff] %vm267, %v1723
      %1756 = vst.msk [vmem:[%s194 + $0x90] sm:$0xff] %vm267, %v1724
      %1757 = vst.msk [vmem:[%s194 + $0x98] sm:$0xff] %vm267, %v1725
      %1758 = vst.msk [vmem:[%s194 + $0xa0] sm:$0xff] %vm267, %v1726
      %1759 = vst.msk [vmem:[%s194 + $0xa8] sm:$0xff] %vm267, %v1727
      %1760 = vst.msk [vmem:[%s194 + $0xb0] sm:$0xff] %vm267, %v1728
      %1761 = vst.msk [vmem:[%s194 + $0xb8] sm:$0xff] %vm267, %v1729
      %1762 = vst.msk [vmem:[%s194 + $0xc0] sm:$0xff] %vm267, %v1730
      %1763 = vst.msk [vmem:[%s194 + $0xc8] sm:$0xff] %vm267, %v1731
      %1764 = vst.msk [vmem:[%s194 + $0xd0] sm:$0xff] %vm267, %v1732
      %1765 = vst.msk [vmem:[%s194 + $0xd8] sm:$0xff] %vm267, %v1733
      %1766 = vst.msk [vmem:[%s194 + $0xe0] sm:$0xff] %vm267, %v1734
      %1767 = vst.msk [vmem:[%s194 + $0xe8] sm:$0xff] %vm267, %v1735
      %1768 = vst.msk [vmem:[%s194 + $0xf0] sm:$0xff] %vm267, %v1736
      %1769 = vst.msk [vmem:[%s194 + $0xf8] sm:$0xff] %vm267, %v1737
      %s1770 = scalar_lea.vmem %s1, 16
      %v1771 = vld [vmem:[%s1770] sm:$0xf]
      %s1772 = scalar_lea.vmem %s1, 20
      %v1773 = vld [vmem:[%s1772] sm:$0xf]
      %v1774 = vld [vmem:[%s200 + $0x2] sm:$0xff]
      %v1775 = vld [vmem:[%s200 + $0xa] sm:$0xff]
      %v1776 = vld [vmem:[%s200 + $0x1a] sm:$0xff]
      %v1777 = vld [vmem:[%s200 + $0x22] sm:$0xff]
      %v1778 = vld [vmem:[%s200 + $0x32] sm:$0xff]
      %v1779 = vld [vmem:[%s200 + $0x3a] sm:$0xff]
      %v1780 = vld [vmem:[%s200 + $0x4a] sm:$0xff]
      %v1781 = vld [vmem:[%s200 + $0x52] sm:$0xff]
      %v1782 = vld [vmem:[%s200 + $0x62] sm:$0xff]
      %v1783 = vld [vmem:[%s200 + $0x6a] sm:$0xff]
      %v1784 = vld [vmem:[%s200 + $0x7a] sm:$0xff]
      %v1785 = vld [vmem:[%s200 + $0x82] sm:$0xff]
      %v1786 = vld [vmem:[%s200 + $0x92] sm:$0xff]
      %v1787 = vld [vmem:[%s200 + $0x9a] sm:$0xff]
      %v1788 = vld [vmem:[%s200 + $0xaa] sm:$0xff]
      %v1789 = vld [vmem:[%s200 + $0xb2] sm:$0xff]
      %v1790 = vld [vmem:[%s200 + $0xc2] sm:$0xff]
      %v1791 = vld [vmem:[%s200 + $0xca] sm:$0xff]
      %v1792 = vld [vmem:[%s200 + $0xda] sm:$0xff]
      %v1793 = vld [vmem:[%s200 + $0xe2] sm:$0xff]
      %v1794 = vld [vmem:[%s200 + $0xf2] sm:$0xff]
      %v1795 = vld [vmem:[%s200 + $0xfa] sm:$0xff]
      %v1796 = vld [vmem:[%s200 + $0x10a] sm:$0xff]
      %v1797 = vld [vmem:[%s200 + $0x112] sm:$0xff]
      %v1798 = vld [vmem:[%s200 + $0x122] sm:$0xff]
      %v1799 = vld [vmem:[%s200 + $0x12a] sm:$0xff]
      %v1800 = vld [vmem:[%s200 + $0x13a] sm:$0xff]
      %v1801 = vld [vmem:[%s200 + $0x142] sm:$0xff]
      %v1802 = vld [vmem:[%s200 + $0x152] sm:$0xff]
      %v1803 = vld [vmem:[%s200 + $0x15a] sm:$0xff]
      %v1804 = vld [vmem:[%s200 + $0x16a] sm:$0xff]
      %v1805 = vld [vmem:[%s200 + $0x172] sm:$0xff]
      %v1807 = vsel %vm267, %v1774, 0
      %v1810 = vsel %vm267, %v1775, 0
      %v1813 = vsel %vm267, %v1776, 0
      %v1816 = vsel %vm267, %v1777, 0
      %v1819 = vsel %vm267, %v1778, 0
      %v1822 = vsel %vm267, %v1779, 0
      %v1825 = vsel %vm267, %v1780, 0
      %v1828 = vsel %vm267, %v1781, 0
      %v1831 = vsel %vm267, %v1782, 0
      %v1834 = vsel %vm267, %v1783, 0
      %v1837 = vsel %vm267, %v1784, 0
      %v1840 = vsel %vm267, %v1785, 0
      %v1843 = vsel %vm267, %v1786, 0
      %v1846 = vsel %vm267, %v1787, 0
      %v1849 = vsel %vm267, %v1788, 0
      %v1852 = vsel %vm267, %v1789, 0
      %v1855 = vsel %vm267, %v1790, 0
      %v1858 = vsel %vm267, %v1791, 0
      %v1861 = vsel %vm267, %v1792, 0
      %v1864 = vsel %vm267, %v1793, 0
      %v1867 = vsel %vm267, %v1794, 0
      %v1870 = vsel %vm267, %v1795, 0
      %v1873 = vsel %vm267, %v1796, 0
      %v1876 = vsel %vm267, %v1797, 0
      %v1879 = vsel %vm267, %v1798, 0
      %v1882 = vsel %vm267, %v1799, 0
      %v1885 = vsel %vm267, %v1800, 0
      %v1888 = vsel %vm267, %v1801, 0
      %v1891 = vsel %vm267, %v1802, 0
      %v1894 = vsel %vm267, %v1803, 0
      %v1897 = vsel %vm267, %v1804, 0
      %v1900 = vsel %vm267, %v1805, 0
      %v1903 = vsel %vm364, %v1773, 0
      %1905 = vmatprep.subr.mxu0 0.0
      %1906 = vmatpush1.msra.mxu0 0.0
      %1907 = vmatprep.subr.mxu0 0.0
      %1908 = vmatpush1.msra.mxu0 0.0
      %1909 = vmatprep.subr.mxu0 0.0
      %1910 = vmatpush1.msra.mxu0 0.0
      %1911 = vmatprep.subr.mxu0 0.0
      %1912 = vmatpush1.msra.mxu0 0.0
      %1913 = vmatprep.subr.mxu0 0.0
      %1914 = vmatpush1.msra.mxu0 0.0
      %1915 = vmatprep.subr.mxu0 0.0
      %1916 = vmatpush1.msra.mxu0 0.0
      %1917 = vmatprep.subr.mxu0 0.0
      %1918 = vmatpush1.msra.mxu0 0.0
      %1919 = vmatprep.subr.mxu0 0.0
      %1920 = vmatpush1.msra.mxu0 0.0
      %1921 = vmatprep.subr.mxu0 0.0
      %1922 = vmatpush1.msra.mxu0 0.0
      %1923 = vmatprep.subr.mxu0 0.0
      %1924 = vmatpush1.msra.mxu0 0.0
      %1925 = vmatprep.subr.mxu0 0.0
      %1926 = vmatpush1.msra.mxu0 0.0
      %1927 = vmatprep.subr.mxu0 0.0
      %1928 = vmatpush1.msra.mxu0 0.0
      %1929 = vmatprep.subr.mxu0 0.0
      %1930 = vmatpush1.msra.mxu0 0.0
      %1931 = vmatprep.subr.mxu0 0.0
      %1932 = vmatpush1.msra.mxu0 0.0
      %1933 = vmatprep.subr.mxu0 0.0
      %1934 = vmatpush1.msra.mxu0 0.0
      %1935 = vmatprep.subr.mxu0 0.0
      %1936 = vmatpush1.msra.mxu0 %v1903
      %1937 = vmatprep.subr.mxu0 0.0
      %1938 = vmatpush2.msra.mxu0 0.0
      %1939 = vmatprep.subr.mxu0 0.0
      %1940 = vmatpush2.msra.mxu0 0.0
      %1941 = vmatprep.subr.mxu0 0.0
      %1942 = vmatpush2.msra.mxu0 0.0
      %1943 = vmatprep.subr.mxu0 0.0
      %1944 = vmatpush2.msra.mxu0 0.0
      %1945 = vmatprep.subr.mxu0 0.0
      %1946 = vmatpush2.msra.mxu0 0.0
      %1947 = vmatprep.subr.mxu0 0.0
      %1948 = vmatpush2.msra.mxu0 0.0
      %1949 = vmatprep.subr.mxu0 0.0
      %1950 = vmatpush2.msra.mxu0 0.0
      %1951 = vmatprep.subr.mxu0 0.0
      %1952 = vmatpush2.msra.mxu0 0.0
      %1953 = vmatprep.subr.mxu0 0.0
      %1954 = vmatpush2.msra.mxu0 0.0
      %1955 = vmatprep.subr.mxu0 0.0
      %1956 = vmatpush2.msra.mxu0 0.0
      %1957 = vmatprep.subr.mxu0 0.0
      %1958 = vmatpush2.msra.mxu0 0.0
      %1959 = vmatprep.subr.mxu0 0.0
      %1960 = vmatpush2.msra.mxu0 0.0
      %1961 = vmatprep.subr.mxu0 0.0
      %1962 = vmatpush2.msra.mxu0 0.0
      %1963 = vmatprep.subr.mxu0 0.0
      %1964 = vmatpush2.msra.mxu0 0.0
      %1965 = vmatprep.subr.mxu0 0.0
      %1966 = vmatpush2.msra.mxu0 0.0
      %1967 = vmatprep.subr.mxu0 0.0
      %1968 = vmatpush2.msra.mxu0 0.0
      %1969 = vmatprep.mubr.f32.mxu0 0.0
      %1970 = vmatmul.mubr.f32.gmra.mxu0 %v1807
      %v1971 = vpop.f32.mrf.mxu0
      %v1972 = vadd.f32 0.0, %v1971
      %v1973 = vpop.f32.mrf.mxu0
      %1974 = vmatprep.mubr.f32.mxu0 0.0
      %1975 = vmatmul.mubr.f32.gmra.mxu0 %v1810
      %v1976 = vpop.f32.mrf.mxu0
      %v1977 = vadd.f32 0.0, %v1976
      %v1978 = vpop.f32.mrf.mxu0
      %1979 = vmatprep.mubr.f32.mxu0 0.0
      %1980 = vmatmul.mubr.f32.gmra.mxu0 %v1813
      %v1981 = vpop.f32.mrf.mxu0
      %v1982 = vadd.f32 0.0, %v1981
      %v1983 = vpop.f32.mrf.mxu0
      %1984 = vmatprep.mubr.f32.mxu0 0.0
      %1985 = vmatmul.mubr.f32.gmra.mxu0 %v1816
      %v1986 = vpop.f32.mrf.mxu0
      %v1987 = vadd.f32 0.0, %v1986
      %v1988 = vpop.f32.mrf.mxu0
      %1989 = vmatprep.mubr.f32.mxu0 0.0
      %1990 = vmatmul.mubr.f32.gmra.mxu0 %v1819
      %v1991 = vpop.f32.mrf.mxu0
      %v1992 = vadd.f32 0.0, %v1991
      %v1993 = vpop.f32.mrf.mxu0
      %1994 = vmatprep.mubr.f32.mxu0 0.0
      %1995 = vmatmul.mubr.f32.gmra.mxu0 %v1822
      %v1996 = vpop.f32.mrf.mxu0
      %v1997 = vadd.f32 0.0, %v1996
      %v1998 = vpop.f32.mrf.mxu0
      %1999 = vmatprep.mubr.f32.mxu0 0.0
      %2000 = vmatmul.mubr.f32.gmra.mxu0 %v1825
      %v2001 = vpop.f32.mrf.mxu0
      %v2002 = vadd.f32 0.0, %v2001
      %v2003 = vpop.f32.mrf.mxu0
      %2004 = vmatprep.mubr.f32.mxu0 0.0
      %2005 = vmatmul.mubr.f32.gmra.mxu0 %v1828
      %v2006 = vpop.f32.mrf.mxu0
      %v2007 = vadd.f32 0.0, %v2006
      %v2008 = vpop.f32.mrf.mxu0
      %2009 = vmatprep.mubr.f32.mxu0 0.0
      %2010 = vmatmul.mubr.f32.gmra.mxu0 %v1831
      %v2011 = vpop.f32.mrf.mxu0
      %v2012 = vadd.f32 0.0, %v2011
      %v2013 = vpop.f32.mrf.mxu0
      %2014 = vmatprep.mubr.f32.mxu0 0.0
      %2015 = vmatmul.mubr.f32.gmra.mxu0 %v1834
      %v2016 = vpop.f32.mrf.mxu0
      %v2017 = vadd.f32 0.0, %v2016
      %v2018 = vpop.f32.mrf.mxu0
      %2019 = vmatprep.mubr.f32.mxu0 0.0
      %2020 = vmatmul.mubr.f32.gmra.mxu0 %v1837
      %v2021 = vpop.f32.mrf.mxu0
      %v2022 = vadd.f32 0.0, %v2021
      %v2023 = vpop.f32.mrf.mxu0
      %2024 = vmatprep.mubr.f32.mxu0 0.0
      %2025 = vmatmul.mubr.f32.gmra.mxu0 %v1840
      %v2026 = vpop.f32.mrf.mxu0
      %v2027 = vadd.f32 0.0, %v2026
      %v2028 = vpop.f32.mrf.mxu0
      %2029 = vmatprep.mubr.f32.mxu0 0.0
      %2030 = vmatmul.mubr.f32.gmra.mxu0 %v1843
      %v2031 = vpop.f32.mrf.mxu0
      %v2032 = vadd.f32 0.0, %v2031
      %v2033 = vpop.f32.mrf.mxu0
      %2034 = vmatprep.mubr.f32.mxu0 0.0
      %2035 = vmatmul.mubr.f32.gmra.mxu0 %v1846
      %v2036 = vpop.f32.mrf.mxu0
      %v2037 = vadd.f32 0.0, %v2036
      %v2038 = vpop.f32.mrf.mxu0
      %2039 = vmatprep.mubr.f32.mxu0 0.0
      %2040 = vmatmul.mubr.f32.gmra.mxu0 %v1849
      %v2041 = vpop.f32.mrf.mxu0
      %v2042 = vadd.f32 0.0, %v2041
      %v2043 = vpop.f32.mrf.mxu0
      %2044 = vmatprep.mubr.f32.mxu0 0.0
      %2045 = vmatmul.mubr.f32.gmra.mxu0 %v1852
      %v2046 = vpop.f32.mrf.mxu0
      %v2047 = vadd.f32 0.0, %v2046
      %v2048 = vpop.f32.mrf.mxu0
      %2049 = vmatprep.mubr.f32.mxu0 0.0
      %2050 = vmatmul.mubr.f32.gmra.mxu0 %v1855
      %v2051 = vpop.f32.mrf.mxu0
      %v2052 = vadd.f32 0.0, %v2051
      %v2053 = vpop.f32.mrf.mxu0
      %2054 = vmatprep.mubr.f32.mxu0 0.0
      %2055 = vmatmul.mubr.f32.gmra.mxu0 %v1858
      %v2056 = vpop.f32.mrf.mxu0
      %v2057 = vadd.f32 0.0, %v2056
      %v2058 = vpop.f32.mrf.mxu0
      %2059 = vmatprep.mubr.f32.mxu0 0.0
      %2060 = vmatmul.mubr.f32.gmra.mxu0 %v1861
      %v2061 = vpop.f32.mrf.mxu0
      %v2062 = vadd.f32 0.0, %v2061
      %v2063 = vpop.f32.mrf.mxu0
      %2064 = vmatprep.mubr.f32.mxu0 0.0
      %2065 = vmatmul.mubr.f32.gmra.mxu0 %v1864
      %v2066 = vpop.f32.mrf.mxu0
      %v2067 = vadd.f32 0.0, %v2066
      %v2068 = vpop.f32.mrf.mxu0
      %2069 = vmatprep.mubr.f32.mxu0 0.0
      %2070 = vmatmul.mubr.f32.gmra.mxu0 %v1867
      %v2071 = vpop.f32.mrf.mxu0
      %v2072 = vadd.f32 0.0, %v2071
      %v2073 = vpop.f32.mrf.mxu0
      %2074 = vmatprep.mubr.f32.mxu0 0.0
      %2075 = vmatmul.mubr.f32.gmra.mxu0 %v1870
      %v2076 = vpop.f32.mrf.mxu0
      %v2077 = vadd.f32 0.0, %v2076
      %v2078 = vpop.f32.mrf.mxu0
      %2079 = vmatprep.mubr.f32.mxu0 0.0
      %2080 = vmatmul.mubr.f32.gmra.mxu0 %v1873
      %v2081 = vpop.f32.mrf.mxu0
      %v2082 = vadd.f32 0.0, %v2081
      %v2083 = vpop.f32.mrf.mxu0
      %2084 = vmatprep.mubr.f32.mxu0 0.0
      %2085 = vmatmul.mubr.f32.gmra.mxu0 %v1876
      %v2086 = vpop.f32.mrf.mxu0
      %v2087 = vadd.f32 0.0, %v2086
      %v2088 = vpop.f32.mrf.mxu0
      %2089 = vmatprep.mubr.f32.mxu0 0.0
      %2090 = vmatmul.mubr.f32.gmra.mxu0 %v1879
      %v2091 = vpop.f32.mrf.mxu0
      %v2092 = vadd.f32 0.0, %v2091
      %v2093 = vpop.f32.mrf.mxu0
      %2094 = vmatprep.mubr.f32.mxu0 0.0
      %2095 = vmatmul.mubr.f32.gmra.mxu0 %v1882
      %v2096 = vpop.f32.mrf.mxu0
      %v2097 = vadd.f32 0.0, %v2096
      %v2098 = vpop.f32.mrf.mxu0
      %2099 = vmatprep.mubr.f32.mxu0 0.0
      %2100 = vmatmul.mubr.f32.gmra.mxu0 %v1885
      %v2101 = vpop.f32.mrf.mxu0
      %v2102 = vadd.f32 0.0, %v2101
      %v2103 = vpop.f32.mrf.mxu0
      %2104 = vmatprep.mubr.f32.mxu0 0.0
      %2105 = vmatmul.mubr.f32.gmra.mxu0 %v1888
      %v2106 = vpop.f32.mrf.mxu0
      %v2107 = vadd.f32 0.0, %v2106
      %v2108 = vpop.f32.mrf.mxu0
      %2109 = vmatprep.mubr.f32.mxu0 0.0
      %2110 = vmatmul.mubr.f32.gmra.mxu0 %v1891
      %v2111 = vpop.f32.mrf.mxu0
      %v2112 = vadd.f32 0.0, %v2111
      %v2113 = vpop.f32.mrf.mxu0
      %2114 = vmatprep.mubr.f32.mxu0 0.0
      %2115 = vmatmul.mubr.f32.gmra.mxu0 %v1894
      %v2116 = vpop.f32.mrf.mxu0
      %v2117 = vadd.f32 0.0, %v2116
      %v2118 = vpop.f32.mrf.mxu0
      %2119 = vmatprep.mubr.f32.mxu0 0.0
      %2120 = vmatmul.mubr.f32.gmra.mxu0 %v1897
      %v2121 = vpop.f32.mrf.mxu0
      %v2122 = vadd.f32 0.0, %v2121
      %v2123 = vpop.f32.mrf.mxu0
      %2124 = vmatprep.mubr.f32.mxu0 0.0
      %2125 = vmatmul.mubr.f32.gmra.mxu0 %v1900
      %v2126 = vpop.f32.mrf.mxu0
      %v2127 = vadd.f32 0.0, %v2126
      %v2128 = vpop.f32.mrf.mxu0
      %2129 = vdwg.mxu0
      %v2131 = vsel %vm364, %v1771, 0
      %2133 = vmatprep.subr.mxu0 0.0
      %2134 = vmatpush1.msra.mxu0 0.0
      %2135 = vmatprep.subr.mxu0 0.0
      %2136 = vmatpush1.msra.mxu0 0.0
      %2137 = vmatprep.subr.mxu0 0.0
      %2138 = vmatpush1.msra.mxu0 0.0
      %2139 = vmatprep.subr.mxu0 0.0
      %2140 = vmatpush1.msra.mxu0 0.0
      %2141 = vmatprep.subr.mxu0 0.0
      %2142 = vmatpush1.msra.mxu0 0.0
      %2143 = vmatprep.subr.mxu0 0.0
      %2144 = vmatpush1.msra.mxu0 0.0
      %2145 = vmatprep.subr.mxu0 0.0
      %2146 = vmatpush1.msra.mxu0 0.0
      %2147 = vmatprep.subr.mxu0 0.0
      %2148 = vmatpush1.msra.mxu0 0.0
      %2149 = vmatprep.subr.mxu0 0.0
      %2150 = vmatpush1.msra.mxu0 0.0
      %2151 = vmatprep.subr.mxu0 0.0
      %2152 = vmatpush1.msra.mxu0 0.0
      %2153 = vmatprep.subr.mxu0 0.0
      %2154 = vmatpush1.msra.mxu0 0.0
      %2155 = vmatprep.subr.mxu0 0.0
      %2156 = vmatpush1.msra.mxu0 0.0
      %2157 = vmatprep.subr.mxu0 0.0
      %2158 = vmatpush1.msra.mxu0 0.0
      %2159 = vmatprep.subr.mxu0 0.0
      %2160 = vmatpush1.msra.mxu0 0.0
      %2161 = vmatprep.subr.mxu0 0.0
      %2162 = vmatpush1.msra.mxu0 0.0
      %2163 = vmatprep.subr.mxu0 0.0
      %2164 = vmatpush1.msra.mxu0 %v2131
      %2165 = vmatprep.subr.mxu0 0.0
      %2166 = vmatpush2.msra.mxu0 0.0
      %2167 = vmatprep.subr.mxu0 0.0
      %2168 = vmatpush2.msra.mxu0 0.0
      %2169 = vmatprep.subr.mxu0 0.0
      %2170 = vmatpush2.msra.mxu0 0.0
      %2171 = vmatprep.subr.mxu0 0.0
      %2172 = vmatpush2.msra.mxu0 0.0
      %2173 = vmatprep.subr.mxu0 0.0
      %2174 = vmatpush2.msra.mxu0 0.0
      %2175 = vmatprep.subr.mxu0 0.0
      %2176 = vmatpush2.msra.mxu0 0.0
      %2177 = vmatprep.subr.mxu0 0.0
      %2178 = vmatpush2.msra.mxu0 0.0
      %2179 = vmatprep.subr.mxu0 0.0
      %2180 = vmatpush2.msra.mxu0 0.0
      %2181 = vmatprep.subr.mxu0 0.0
      %2182 = vmatpush2.msra.mxu0 0.0
      %2183 = vmatprep.subr.mxu0 0.0
      %2184 = vmatpush2.msra.mxu0 0.0
      %2185 = vmatprep.subr.mxu0 0.0
      %2186 = vmatpush2.msra.mxu0 0.0
      %2187 = vmatprep.subr.mxu0 0.0
      %2188 = vmatpush2.msra.mxu0 0.0
      %2189 = vmatprep.subr.mxu0 0.0
      %2190 = vmatpush2.msra.mxu0 0.0
      %2191 = vmatprep.subr.mxu0 0.0
      %2192 = vmatpush2.msra.mxu0 0.0
      %2193 = vmatprep.subr.mxu0 0.0
      %2194 = vmatpush2.msra.mxu0 0.0
      %2195 = vmatprep.subr.mxu0 0.0
      %2196 = vmatpush2.msra.mxu0 0.0
      %2197 = vmatprep.mubr.f32.mxu0 0.0
      %2198 = vmatmul.mubr.f32.gmra.mxu0 %v269
      %v2199 = vpop.f32.mrf.mxu0
      %v2200 = vadd.f32 %v1972, %v2199
      %v2201 = vpop.f32.mrf.mxu0
      %2202 = vmatprep.mubr.f32.mxu0 0.0
      %2203 = vmatmul.mubr.f32.gmra.mxu0 %v272
      %v2204 = vpop.f32.mrf.mxu0
      %v2205 = vadd.f32 %v1977, %v2204
      %v2206 = vpop.f32.mrf.mxu0
      %2207 = vmatprep.mubr.f32.mxu0 0.0
      %2208 = vmatmul.mubr.f32.gmra.mxu0 %v275
      %v2209 = vpop.f32.mrf.mxu0
      %v2210 = vadd.f32 %v1982, %v2209
      %v2211 = vpop.f32.mrf.mxu0
      %2212 = vmatprep.mubr.f32.mxu0 0.0
      %2213 = vmatmul.mubr.f32.gmra.mxu0 %v278
      %v2214 = vpop.f32.mrf.mxu0
      %v2215 = vadd.f32 %v1987, %v2214
      %v2216 = vpop.f32.mrf.mxu0
      %2217 = vmatprep.mubr.f32.mxu0 0.0
      %2218 = vmatmul.mubr.f32.gmra.mxu0 %v281
      %v2219 = vpop.f32.mrf.mxu0
      %v2220 = vadd.f32 %v1992, %v2219
      %v2221 = vpop.f32.mrf.mxu0
      %2222 = vmatprep.mubr.f32.mxu0 0.0
      %2223 = vmatmul.mubr.f32.gmra.mxu0 %v284
      %v2224 = vpop.f32.mrf.mxu0
      %v2225 = vadd.f32 %v1997, %v2224
      %v2226 = vpop.f32.mrf.mxu0
      %2227 = vmatprep.mubr.f32.mxu0 0.0
      %2228 = vmatmul.mubr.f32.gmra.mxu0 %v287
      %v2229 = vpop.f32.mrf.mxu0
      %v2230 = vadd.f32 %v2002, %v2229
      %v2231 = vpop.f32.mrf.mxu0
      %2232 = vmatprep.mubr.f32.mxu0 0.0
      %2233 = vmatmul.mubr.f32.gmra.mxu0 %v290
      %v2234 = vpop.f32.mrf.mxu0
      %v2235 = vadd.f32 %v2007, %v2234
      %v2236 = vpop.f32.mrf.mxu0
      %2237 = vmatprep.mubr.f32.mxu0 0.0
      %2238 = vmatmul.mubr.f32.gmra.mxu0 %v293
      %v2239 = vpop.f32.mrf.mxu0
      %v2240 = vadd.f32 %v2012, %v2239
      %v2241 = vpop.f32.mrf.mxu0
      %2242 = vmatprep.mubr.f32.mxu0 0.0
      %2243 = vmatmul.mubr.f32.gmra.mxu0 %v296
      %v2244 = vpop.f32.mrf.mxu0
      %v2245 = vadd.f32 %v2017, %v2244
      %v2246 = vpop.f32.mrf.mxu0
      %2247 = vmatprep.mubr.f32.mxu0 0.0
      %2248 = vmatmul.mubr.f32.gmra.mxu0 %v299
      %v2249 = vpop.f32.mrf.mxu0
      %v2250 = vadd.f32 %v2022, %v2249
      %v2251 = vpop.f32.mrf.mxu0
      %2252 = vmatprep.mubr.f32.mxu0 0.0
      %2253 = vmatmul.mubr.f32.gmra.mxu0 %v302
      %v2254 = vpop.f32.mrf.mxu0
      %v2255 = vadd.f32 %v2027, %v2254
      %v2256 = vpop.f32.mrf.mxu0
      %2257 = vmatprep.mubr.f32.mxu0 0.0
      %2258 = vmatmul.mubr.f32.gmra.mxu0 %v305
      %v2259 = vpop.f32.mrf.mxu0
      %v2260 = vadd.f32 %v2032, %v2259
      %v2261 = vpop.f32.mrf.mxu0
      %2262 = vmatprep.mubr.f32.mxu0 0.0
      %2263 = vmatmul.mubr.f32.gmra.mxu0 %v308
      %v2264 = vpop.f32.mrf.mxu0
      %v2265 = vadd.f32 %v2037, %v2264
      %v2266 = vpop.f32.mrf.mxu0
      %2267 = vmatprep.mubr.f32.mxu0 0.0
      %2268 = vmatmul.mubr.f32.gmra.mxu0 %v311
      %v2269 = vpop.f32.mrf.mxu0
      %v2270 = vadd.f32 %v2042, %v2269
      %v2271 = vpop.f32.mrf.mxu0
      %2272 = vmatprep.mubr.f32.mxu0 0.0
      %2273 = vmatmul.mubr.f32.gmra.mxu0 %v314
      %v2274 = vpop.f32.mrf.mxu0
      %v2275 = vadd.f32 %v2047, %v2274
      %v2276 = vpop.f32.mrf.mxu0
      %2277 = vmatprep.mubr.f32.mxu0 0.0
      %2278 = vmatmul.mubr.f32.gmra.mxu0 %v317
      %v2279 = vpop.f32.mrf.mxu0
      %v2280 = vadd.f32 %v2052, %v2279
      %v2281 = vpop.f32.mrf.mxu0
      %2282 = vmatprep.mubr.f32.mxu0 0.0
      %2283 = vmatmul.mubr.f32.gmra.mxu0 %v320
      %v2284 = vpop.f32.mrf.mxu0
      %v2285 = vadd.f32 %v2057, %v2284
      %v2286 = vpop.f32.mrf.mxu0
      %2287 = vmatprep.mubr.f32.mxu0 0.0
      %2288 = vmatmul.mubr.f32.gmra.mxu0 %v323
      %v2289 = vpop.f32.mrf.mxu0
      %v2290 = vadd.f32 %v2062, %v2289
      %v2291 = vpop.f32.mrf.mxu0
      %2292 = vmatprep.mubr.f32.mxu0 0.0
      %2293 = vmatmul.mubr.f32.gmra.mxu0 %v326
      %v2294 = vpop.f32.mrf.mxu0
      %v2295 = vadd.f32 %v2067, %v2294
      %v2296 = vpop.f32.mrf.mxu0
      %2297 = vmatprep.mubr.f32.mxu0 0.0
      %2298 = vmatmul.mubr.f32.gmra.mxu0 %v329
      %v2299 = vpop.f32.mrf.mxu0
      %v2300 = vadd.f32 %v2072, %v2299
      %v2301 = vpop.f32.mrf.mxu0
      %2302 = vmatprep.mubr.f32.mxu0 0.0
      %2303 = vmatmul.mubr.f32.gmra.mxu0 %v332
      %v2304 = vpop.f32.mrf.mxu0
      %v2305 = vadd.f32 %v2077, %v2304
      %v2306 = vpop.f32.mrf.mxu0
      %2307 = vmatprep.mubr.f32.mxu0 0.0
      %2308 = vmatmul.mubr.f32.gmra.mxu0 %v335
      %v2309 = vpop.f32.mrf.mxu0
      %v2310 = vadd.f32 %v2082, %v2309
      %v2311 = vpop.f32.mrf.mxu0
      %2312 = vmatprep.mubr.f32.mxu0 0.0
      %2313 = vmatmul.mubr.f32.gmra.mxu0 %v338
      %v2314 = vpop.f32.mrf.mxu0
      %v2315 = vadd.f32 %v2087, %v2314
      %v2316 = vpop.f32.mrf.mxu0
      %2317 = vmatprep.mubr.f32.mxu0 0.0
      %2318 = vmatmul.mubr.f32.gmra.mxu0 %v341
      %v2319 = vpop.f32.mrf.mxu0
      %v2320 = vadd.f32 %v2092, %v2319
      %v2321 = vpop.f32.mrf.mxu0
      %2322 = vmatprep.mubr.f32.mxu0 0.0
      %2323 = vmatmul.mubr.f32.gmra.mxu0 %v344
      %v2324 = vpop.f32.mrf.mxu0
      %v2325 = vadd.f32 %v2097, %v2324
      %v2326 = vpop.f32.mrf.mxu0
      %2327 = vmatprep.mubr.f32.mxu0 0.0
      %2328 = vmatmul.mubr.f32.gmra.mxu0 %v347
      %v2329 = vpop.f32.mrf.mxu0
      %v2330 = vadd.f32 %v2102, %v2329
      %v2331 = vpop.f32.mrf.mxu0
      %2332 = vmatprep.mubr.f32.mxu0 0.0
      %2333 = vmatmul.mubr.f32.gmra.mxu0 %v350
      %v2334 = vpop.f32.mrf.mxu0
      %v2335 = vadd.f32 %v2107, %v2334
      %v2336 = vpop.f32.mrf.mxu0
      %2337 = vmatprep.mubr.f32.mxu0 0.0
      %2338 = vmatmul.mubr.f32.gmra.mxu0 %v353
      %v2339 = vpop.f32.mrf.mxu0
      %v2340 = vadd.f32 %v2112, %v2339
      %v2341 = vpop.f32.mrf.mxu0
      %2342 = vmatprep.mubr.f32.mxu0 0.0
      %2343 = vmatmul.mubr.f32.gmra.mxu0 %v356
      %v2344 = vpop.f32.mrf.mxu0
      %v2345 = vadd.f32 %v2117, %v2344
      %v2346 = vpop.f32.mrf.mxu0
      %2347 = vmatprep.mubr.f32.mxu0 0.0
      %2348 = vmatmul.mubr.f32.gmra.mxu0 %v359
      %v2349 = vpop.f32.mrf.mxu0
      %v2350 = vadd.f32 %v2122, %v2349
      %v2351 = vpop.f32.mrf.mxu0
      %2352 = vmatprep.mubr.f32.mxu0 0.0
      %2353 = vmatmul.mubr.f32.gmra.mxu0 %v362
      %v2354 = vpop.f32.mrf.mxu0
      %v2355 = vadd.f32 %v2127, %v2354
      %v2356 = vpop.f32.mrf.mxu0
      %2357 = vdwg.mxu0
      %s2358 = scalar_lea.vmem %s1, 24
      %v2359 = vld [vmem:[%s2358] sm:$0xf]
      %v2361 = vsel %vm364, %v2359, 0
      %2363 = vmatprep.subr.mxu0 0.0
      %2364 = vmatpush1.msra.mxu0 0.0
      %2365 = vmatprep.subr.mxu0 0.0
      %2366 = vmatpush1.msra.mxu0 0.0
      %2367 = vmatprep.subr.mxu0 0.0
      %2368 = vmatpush1.msra.mxu0 0.0
      %2369 = vmatprep.subr.mxu0 0.0
      %2370 = vmatpush1.msra.mxu0 0.0
      %2371 = vmatprep.subr.mxu0 0.0
      %2372 = vmatpush1.msra.mxu0 0.0
      %2373 = vmatprep.subr.mxu0 0.0
      %2374 = vmatpush1.msra.mxu0 0.0
      %2375 = vmatprep.subr.mxu0 0.0
      %2376 = vmatpush1.msra.mxu0 0.0
      %2377 = vmatprep.subr.mxu0 0.0
      %2378 = vmatpush1.msra.mxu0 0.0
      %2379 = vmatprep.subr.mxu0 0.0
      %2380 = vmatpush1.msra.mxu0 0.0
      %2381 = vmatprep.subr.mxu0 0.0
      %2382 = vmatpush1.msra.mxu0 0.0
      %2383 = vmatprep.subr.mxu0 0.0
      %2384 = vmatpush1.msra.mxu0 0.0
      %2385 = vmatprep.subr.mxu0 0.0
      %2386 = vmatpush1.msra.mxu0 0.0
      %2387 = vmatprep.subr.mxu0 0.0
      %2388 = vmatpush1.msra.mxu0 0.0
      %2389 = vmatprep.subr.mxu0 0.0
      %2390 = vmatpush1.msra.mxu0 0.0
      %2391 = vmatprep.subr.mxu0 0.0
      %2392 = vmatpush1.msra.mxu0 0.0
      %2393 = vmatprep.subr.mxu0 0.0
      %2394 = vmatpush1.msra.mxu0 %v2361
      %2395 = vmatprep.subr.mxu0 0.0
      %2396 = vmatpush2.msra.mxu0 0.0
      %2397 = vmatprep.subr.mxu0 0.0
      %2398 = vmatpush2.msra.mxu0 0.0
      %2399 = vmatprep.subr.mxu0 0.0
      %2400 = vmatpush2.msra.mxu0 0.0
      %2401 = vmatprep.subr.mxu0 0.0
      %2402 = vmatpush2.msra.mxu0 0.0
      %2403 = vmatprep.subr.mxu0 0.0
      %2404 = vmatpush2.msra.mxu0 0.0
      %2405 = vmatprep.subr.mxu0 0.0
      %2406 = vmatpush2.msra.mxu0 0.0
      %2407 = vmatprep.subr.mxu0 0.0
      %2408 = vmatpush2.msra.mxu0 0.0
      %2409 = vmatprep.subr.mxu0 0.0
      %2410 = vmatpush2.msra.mxu0 0.0
      %2411 = vmatprep.subr.mxu0 0.0
      %2412 = vmatpush2.msra.mxu0 0.0
      %2413 = vmatprep.subr.mxu0 0.0
      %2414 = vmatpush2.msra.mxu0 0.0
      %2415 = vmatprep.subr.mxu0 0.0
      %2416 = vmatpush2.msra.mxu0 0.0
      %2417 = vmatprep.subr.mxu0 0.0
      %2418 = vmatpush2.msra.mxu0 0.0
      %2419 = vmatprep.subr.mxu0 0.0
      %2420 = vmatpush2.msra.mxu0 0.0
      %2421 = vmatprep.subr.mxu0 0.0
      %2422 = vmatpush2.msra.mxu0 0.0
      %2423 = vmatprep.subr.mxu0 0.0
      %2424 = vmatpush2.msra.mxu0 0.0
      %2425 = vmatprep.subr.mxu0 0.0
      %2426 = vmatpush2.msra.mxu0 0.0
      %2427 = vmatprep.mubr.f32.mxu0 0.0
      %2428 = vmatmul.mubr.f32.gmra.mxu0 %v1345
      %v2429 = vpop.f32.mrf.mxu0
      %v2430 = vadd.f32 0.0, %v2429
      %v2431 = vpop.f32.mrf.mxu0
      %2432 = vmatprep.mubr.f32.mxu0 0.0
      %2433 = vmatmul.mubr.f32.gmra.mxu0 %v1348
      %v2434 = vpop.f32.mrf.mxu0
      %v2435 = vadd.f32 0.0, %v2434
      %v2436 = vpop.f32.mrf.mxu0
      %2437 = vmatprep.mubr.f32.mxu0 0.0
      %2438 = vmatmul.mubr.f32.gmra.mxu0 %v1351
      %v2439 = vpop.f32.mrf.mxu0
      %v2440 = vadd.f32 0.0, %v2439
      %v2441 = vpop.f32.mrf.mxu0
      %2442 = vmatprep.mubr.f32.mxu0 0.0
      %2443 = vmatmul.mubr.f32.gmra.mxu0 %v1354
      %v2444 = vpop.f32.mrf.mxu0
      %v2445 = vadd.f32 0.0, %v2444
      %v2446 = vpop.f32.mrf.mxu0
      %2447 = vmatprep.mubr.f32.mxu0 0.0
      %2448 = vmatmul.mubr.f32.gmra.mxu0 %v1357
      %v2449 = vpop.f32.mrf.mxu0
      %v2450 = vadd.f32 0.0, %v2449
      %v2451 = vpop.f32.mrf.mxu0
      %2452 = vmatprep.mubr.f32.mxu0 0.0
      %2453 = vmatmul.mubr.f32.gmra.mxu0 %v1360
      %v2454 = vpop.f32.mrf.mxu0
      %v2455 = vadd.f32 0.0, %v2454
      %v2456 = vpop.f32.mrf.mxu0
      %2457 = vmatprep.mubr.f32.mxu0 0.0
      %2458 = vmatmul.mubr.f32.gmra.mxu0 %v1363
      %v2459 = vpop.f32.mrf.mxu0
      %v2460 = vadd.f32 0.0, %v2459
      %v2461 = vpop.f32.mrf.mxu0
      %2462 = vmatprep.mubr.f32.mxu0 0.0
      %2463 = vmatmul.mubr.f32.gmra.mxu0 %v1366
      %v2464 = vpop.f32.mrf.mxu0
      %v2465 = vadd.f32 0.0, %v2464
      %v2466 = vpop.f32.mrf.mxu0
      %2467 = vmatprep.mubr.f32.mxu0 0.0
      %2468 = vmatmul.mubr.f32.gmra.mxu0 %v1369
      %v2469 = vpop.f32.mrf.mxu0
      %v2470 = vadd.f32 0.0, %v2469
      %v2471 = vpop.f32.mrf.mxu0
      %2472 = vmatprep.mubr.f32.mxu0 0.0
      %2473 = vmatmul.mubr.f32.gmra.mxu0 %v1372
      %v2474 = vpop.f32.mrf.mxu0
      %v2475 = vadd.f32 0.0, %v2474
      %v2476 = vpop.f32.mrf.mxu0
      %2477 = vmatprep.mubr.f32.mxu0 0.0
      %2478 = vmatmul.mubr.f32.gmra.mxu0 %v1375
      %v2479 = vpop.f32.mrf.mxu0
      %v2480 = vadd.f32 0.0, %v2479
      %v2481 = vpop.f32.mrf.mxu0
      %2482 = vmatprep.mubr.f32.mxu0 0.0
      %2483 = vmatmul.mubr.f32.gmra.mxu0 %v1378
      %v2484 = vpop.f32.mrf.mxu0
      %v2485 = vadd.f32 0.0, %v2484
      %v2486 = vpop.f32.mrf.mxu0
      %2487 = vmatprep.mubr.f32.mxu0 0.0
      %2488 = vmatmul.mubr.f32.gmra.mxu0 %v1381
      %v2489 = vpop.f32.mrf.mxu0
      %v2490 = vadd.f32 0.0, %v2489
      %v2491 = vpop.f32.mrf.mxu0
      %2492 = vmatprep.mubr.f32.mxu0 0.0
      %2493 = vmatmul.mubr.f32.gmra.mxu0 %v1384
      %v2494 = vpop.f32.mrf.mxu0
      %v2495 = vadd.f32 0.0, %v2494
      %v2496 = vpop.f32.mrf.mxu0
      %2497 = vmatprep.mubr.f32.mxu0 0.0
      %2498 = vmatmul.mubr.f32.gmra.mxu0 %v1387
      %v2499 = vpop.f32.mrf.mxu0
      %v2500 = vadd.f32 0.0, %v2499
      %v2501 = vpop.f32.mrf.mxu0
      %2502 = vmatprep.mubr.f32.mxu0 0.0
      %2503 = vmatmul.mubr.f32.gmra.mxu0 %v1390
      %v2504 = vpop.f32.mrf.mxu0
      %v2505 = vadd.f32 0.0, %v2504
      %v2506 = vpop.f32.mrf.mxu0
      %2507 = vmatprep.mubr.f32.mxu0 0.0
      %2508 = vmatmul.mubr.f32.gmra.mxu0 %v1393
      %v2509 = vpop.f32.mrf.mxu0
      %v2510 = vadd.f32 0.0, %v2509
      %v2511 = vpop.f32.mrf.mxu0
      %2512 = vmatprep.mubr.f32.mxu0 0.0
      %2513 = vmatmul.mubr.f32.gmra.mxu0 %v1396
      %v2514 = vpop.f32.mrf.mxu0
      %v2515 = vadd.f32 0.0, %v2514
      %v2516 = vpop.f32.mrf.mxu0
      %2517 = vmatprep.mubr.f32.mxu0 0.0
      %2518 = vmatmul.mubr.f32.gmra.mxu0 %v1399
      %v2519 = vpop.f32.mrf.mxu0
      %v2520 = vadd.f32 0.0, %v2519
      %v2521 = vpop.f32.mrf.mxu0
      %2522 = vmatprep.mubr.f32.mxu0 0.0
      %2523 = vmatmul.mubr.f32.gmra.mxu0 %v1402
      %v2524 = vpop.f32.mrf.mxu0
      %v2525 = vadd.f32 0.0, %v2524
      %v2526 = vpop.f32.mrf.mxu0
      %2527 = vmatprep.mubr.f32.mxu0 0.0
      %2528 = vmatmul.mubr.f32.gmra.mxu0 %v1405
      %v2529 = vpop.f32.mrf.mxu0
      %v2530 = vadd.f32 0.0, %v2529
      %v2531 = vpop.f32.mrf.mxu0
      %2532 = vmatprep.mubr.f32.mxu0 0.0
      %2533 = vmatmul.mubr.f32.gmra.mxu0 %v1408
      %v2534 = vpop.f32.mrf.mxu0
      %v2535 = vadd.f32 0.0, %v2534
      %v2536 = vpop.f32.mrf.mxu0
      %2537 = vmatprep.mubr.f32.mxu0 0.0
      %2538 = vmatmul.mubr.f32.gmra.mxu0 %v1411
      %v2539 = vpop.f32.mrf.mxu0
      %v2540 = vadd.f32 0.0, %v2539
      %v2541 = vpop.f32.mrf.mxu0
      %2542 = vmatprep.mubr.f32.mxu0 0.0
      %2543 = vmatmul.mubr.f32.gmra.mxu0 %v1414
      %v2544 = vpop.f32.mrf.mxu0
      %v2545 = vadd.f32 0.0, %v2544
      %v2546 = vpop.f32.mrf.mxu0
      %2547 = vmatprep.mubr.f32.mxu0 0.0
      %2548 = vmatmul.mubr.f32.gmra.mxu0 %v1417
      %v2549 = vpop.f32.mrf.mxu0
      %v2550 = vadd.f32 0.0, %v2549
      %v2551 = vpop.f32.mrf.mxu0
      %2552 = vmatprep.mubr.f32.mxu0 0.0
      %2553 = vmatmul.mubr.f32.gmra.mxu0 %v1420
      %v2554 = vpop.f32.mrf.mxu0
      %v2555 = vadd.f32 0.0, %v2554
      %v2556 = vpop.f32.mrf.mxu0
      %2557 = vmatprep.mubr.f32.mxu0 0.0
      %2558 = vmatmul.mubr.f32.gmra.mxu0 %v1423
      %v2559 = vpop.f32.mrf.mxu0
      %v2560 = vadd.f32 0.0, %v2559
      %v2561 = vpop.f32.mrf.mxu0
      %2562 = vmatprep.mubr.f32.mxu0 0.0
      %2563 = vmatmul.mubr.f32.gmra.mxu0 %v1426
      %v2564 = vpop.f32.mrf.mxu0
      %v2565 = vadd.f32 0.0, %v2564
      %v2566 = vpop.f32.mrf.mxu0
      %2567 = vmatprep.mubr.f32.mxu0 0.0
      %2568 = vmatmul.mubr.f32.gmra.mxu0 %v1429
      %v2569 = vpop.f32.mrf.mxu0
      %v2570 = vadd.f32 0.0, %v2569
      %v2571 = vpop.f32.mrf.mxu0
      %2572 = vmatprep.mubr.f32.mxu0 0.0
      %2573 = vmatmul.mubr.f32.gmra.mxu0 %v1432
      %v2574 = vpop.f32.mrf.mxu0
      %v2575 = vadd.f32 0.0, %v2574
      %v2576 = vpop.f32.mrf.mxu0
      %2577 = vmatprep.mubr.f32.mxu0 0.0
      %2578 = vmatmul.mubr.f32.gmra.mxu0 %v1435
      %v2579 = vpop.f32.mrf.mxu0
      %v2580 = vadd.f32 0.0, %v2579
      %v2581 = vpop.f32.mrf.mxu0
      %2582 = vmatprep.mubr.f32.mxu0 0.0
      %2583 = vmatmul.mubr.f32.gmra.mxu0 %v1438
      %v2584 = vpop.f32.mrf.mxu0
      %v2585 = vadd.f32 0.0, %v2584
      %v2586 = vpop.f32.mrf.mxu0
      %2587 = vdwg.mxu0
      %v2588 = vadd.f32 %v2200, %v2430
      %v2589 = vadd.f32 %v2205, %v2435
      %v2590 = vadd.f32 %v2210, %v2440
      %v2591 = vadd.f32 %v2215, %v2445
      %v2592 = vadd.f32 %v2220, %v2450
      %v2593 = vadd.f32 %v2225, %v2455
      %v2594 = vadd.f32 %v2230, %v2460
      %v2595 = vadd.f32 %v2235, %v2465
      %v2596 = vadd.f32 %v2240, %v2470
      %v2597 = vadd.f32 %v2245, %v2475
      %v2598 = vadd.f32 %v2250, %v2480
      %v2599 = vadd.f32 %v2255, %v2485
      %v2600 = vadd.f32 %v2260, %v2490
      %v2601 = vadd.f32 %v2265, %v2495
      %v2602 = vadd.f32 %v2270, %v2500
      %v2603 = vadd.f32 %v2275, %v2505
      %v2604 = vadd.f32 %v2280, %v2510
      %v2605 = vadd.f32 %v2285, %v2515
      %v2606 = vadd.f32 %v2290, %v2520
      %v2607 = vadd.f32 %v2295, %v2525
      %v2608 = vadd.f32 %v2300, %v2530
      %v2609 = vadd.f32 %v2305, %v2535
      %v2610 = vadd.f32 %v2310, %v2540
      %v2611 = vadd.f32 %v2315, %v2545
      %v2612 = vadd.f32 %v2320, %v2550
      %v2613 = vadd.f32 %v2325, %v2555
      %v2614 = vadd.f32 %v2330, %v2560
      %v2615 = vadd.f32 %v2335, %v2565
      %v2616 = vadd.f32 %v2340, %v2570
      %v2617 = vadd.f32 %v2345, %v2575
      %v2618 = vadd.f32 %v2350, %v2580
      %v2619 = vadd.f32 %v2355, %v2585
      %s2620 = scalar_lea.vmem %s1, 28
      %v2621 = vld [vmem:[%s2620] sm:$0xf]
      %v2622 = vld [vmem:[%s921 + $0x2] sm:$0xff]
      %v2623 = vld [vmem:[%s921 + $0xa] sm:$0xff]
      %v2624 = vld [vmem:[%s921 + $0x1a] sm:$0xff]
      %v2625 = vld [vmem:[%s921 + $0x22] sm:$0xff]
      %v2626 = vld [vmem:[%s921 + $0x32] sm:$0xff]
      %v2627 = vld [vmem:[%s921 + $0x3a] sm:$0xff]
      %v2628 = vld [vmem:[%s921 + $0x4a] sm:$0xff]
      %v2629 = vld [vmem:[%s921 + $0x52] sm:$0xff]
      %v2630 = vld [vmem:[%s921 + $0x62] sm:$0xff]
      %v2631 = vld [vmem:[%s921 + $0x6a] sm:$0xff]
      %v2632 = vld [vmem:[%s921 + $0x7a] sm:$0xff]
      %v2633 = vld [vmem:[%s921 + $0x82] sm:$0xff]
      %v2634 = vld [vmem:[%s921 + $0x92] sm:$0xff]
      %v2635 = vld [vmem:[%s921 + $0x9a] sm:$0xff]
      %v2636 = vld [vmem:[%s921 + $0xaa] sm:$0xff]
      %v2637 = vld [vmem:[%s921 + $0xb2] sm:$0xff]
      %v2638 = vld [vmem:[%s921 + $0xc2] sm:$0xff]
      %v2639 = vld [vmem:[%s921 + $0xca] sm:$0xff]
      %v2640 = vld [vmem:[%s921 + $0xda] sm:$0xff]
      %v2641 = vld [vmem:[%s921 + $0xe2] sm:$0xff]
      %v2642 = vld [vmem:[%s921 + $0xf2] sm:$0xff]
      %v2643 = vld [vmem:[%s921 + $0xfa] sm:$0xff]
      %v2644 = vld [vmem:[%s921 + $0x10a] sm:$0xff]
      %v2645 = vld [vmem:[%s921 + $0x112] sm:$0xff]
      %v2646 = vld [vmem:[%s921 + $0x122] sm:$0xff]
      %v2647 = vld [vmem:[%s921 + $0x12a] sm:$0xff]
      %v2648 = vld [vmem:[%s921 + $0x13a] sm:$0xff]
      %v2649 = vld [vmem:[%s921 + $0x142] sm:$0xff]
      %v2650 = vld [vmem:[%s921 + $0x152] sm:$0xff]
      %v2651 = vld [vmem:[%s921 + $0x15a] sm:$0xff]
      %v2652 = vld [vmem:[%s921 + $0x16a] sm:$0xff]
      %v2653 = vld [vmem:[%s921 + $0x172] sm:$0xff]
      %v2655 = vsel %vm267, %v2622, 0
      %v2658 = vsel %vm267, %v2623, 0
      %v2661 = vsel %vm267, %v2624, 0
      %v2664 = vsel %vm267, %v2625, 0
      %v2667 = vsel %vm267, %v2626, 0
      %v2670 = vsel %vm267, %v2627, 0
      %v2673 = vsel %vm267, %v2628, 0
      %v2676 = vsel %vm267, %v2629, 0
      %v2679 = vsel %vm267, %v2630, 0
      %v2682 = vsel %vm267, %v2631, 0
      %v2685 = vsel %vm267, %v2632, 0
      %v2688 = vsel %vm267, %v2633, 0
      %v2691 = vsel %vm267, %v2634, 0
      %v2694 = vsel %vm267, %v2635, 0
      %v2697 = vsel %vm267, %v2636, 0
      %v2700 = vsel %vm267, %v2637, 0
      %v2703 = vsel %vm267, %v2638, 0
      %v2706 = vsel %vm267, %v2639, 0
      %v2709 = vsel %vm267, %v2640, 0
      %v2712 = vsel %vm267, %v2641, 0
      %v2715 = vsel %vm267, %v2642, 0
      %v2718 = vsel %vm267, %v2643, 0
      %v2721 = vsel %vm267, %v2644, 0
      %v2724 = vsel %vm267, %v2645, 0
      %v2727 = vsel %vm267, %v2646, 0
      %v2730 = vsel %vm267, %v2647, 0
      %v2733 = vsel %vm267, %v2648, 0
      %v2736 = vsel %vm267, %v2649, 0
      %v2739 = vsel %vm267, %v2650, 0
      %v2742 = vsel %vm267, %v2651, 0
      %v2745 = vsel %vm267, %v2652, 0
      %v2748 = vsel %vm267, %v2653, 0
      %v2751 = vsel %vm364, %v2621, 0
      %2753 = vmatprep.subr.mxu0 0.0
      %2754 = vmatpush1.msra.mxu0 0.0
      %2755 = vmatprep.subr.mxu0 0.0
      %2756 = vmatpush1.msra.mxu0 0.0
      %2757 = vmatprep.subr.mxu0 0.0
      %2758 = vmatpush1.msra.mxu0 0.0
      %2759 = vmatprep.subr.mxu0 0.0
      %2760 = vmatpush1.msra.mxu0 0.0
      %2761 = vmatprep.subr.mxu0 0.0
      %2762 = vmatpush1.msra.mxu0 0.0
      %2763 = vmatprep.subr.mxu0 0.0
      %2764 = vmatpush1.msra.mxu0 0.0
      %2765 = vmatprep.subr.mxu0 0.0
      %2766 = vmatpush1.msra.mxu0 0.0
      %2767 = vmatprep.subr.mxu0 0.0
      %2768 = vmatpush1.msra.mxu0 0.0
      %2769 = vmatprep.subr.mxu0 0.0
      %2770 = vmatpush1.msra.mxu0 0.0
      %2771 = vmatprep.subr.mxu0 0.0
      %2772 = vmatpush1.msra.mxu0 0.0
      %2773 = vmatprep.subr.mxu0 0.0
      %2774 = vmatpush1.msra.mxu0 0.0
      %2775 = vmatprep.subr.mxu0 0.0
      %2776 = vmatpush1.msra.mxu0 0.0
      %2777 = vmatprep.subr.mxu0 0.0
      %2778 = vmatpush1.msra.mxu0 0.0
      %2779 = vmatprep.subr.mxu0 0.0
      %2780 = vmatpush1.msra.mxu0 0.0
      %2781 = vmatprep.subr.mxu0 0.0
      %2782 = vmatpush1.msra.mxu0 0.0
      %2783 = vmatprep.subr.mxu0 0.0
      %2784 = vmatpush1.msra.mxu0 %v2751
      %2785 = vmatprep.subr.mxu0 0.0
      %2786 = vmatpush2.msra.mxu0 0.0
      %2787 = vmatprep.subr.mxu0 0.0
      %2788 = vmatpush2.msra.mxu0 0.0
      %2789 = vmatprep.subr.mxu0 0.0
      %2790 = vmatpush2.msra.mxu0 0.0
      %2791 = vmatprep.subr.mxu0 0.0
      %2792 = vmatpush2.msra.mxu0 0.0
      %2793 = vmatprep.subr.mxu0 0.0
      %2794 = vmatpush2.msra.mxu0 0.0
      %2795 = vmatprep.subr.mxu0 0.0
      %2796 = vmatpush2.msra.mxu0 0.0
      %2797 = vmatprep.subr.mxu0 0.0
      %2798 = vmatpush2.msra.mxu0 0.0
      %2799 = vmatprep.subr.mxu0 0.0
      %2800 = vmatpush2.msra.mxu0 0.0
      %2801 = vmatprep.subr.mxu0 0.0
      %2802 = vmatpush2.msra.mxu0 0.0
      %2803 = vmatprep.subr.mxu0 0.0
      %2804 = vmatpush2.msra.mxu0 0.0
      %2805 = vmatprep.subr.mxu0 0.0
      %2806 = vmatpush2.msra.mxu0 0.0
      %2807 = vmatprep.subr.mxu0 0.0
      %2808 = vmatpush2.msra.mxu0 0.0
      %2809 = vmatprep.subr.mxu0 0.0
      %2810 = vmatpush2.msra.mxu0 0.0
      %2811 = vmatprep.subr.mxu0 0.0
      %2812 = vmatpush2.msra.mxu0 0.0
      %2813 = vmatprep.subr.mxu0 0.0
      %2814 = vmatpush2.msra.mxu0 0.0
      %2815 = vmatprep.subr.mxu0 0.0
      %2816 = vmatpush2.msra.mxu0 0.0
      %2817 = vmatprep.mubr.f32.mxu0 0.0
      %2818 = vmatmul.mubr.f32.gmra.mxu0 %v2655
      %v2819 = vpop.f32.mrf.mxu0
      %v2820 = vadd.f32 0.0, %v2819
      %v2821 = vpop.f32.mrf.mxu0
      %2822 = vmatprep.mubr.f32.mxu0 0.0
      %2823 = vmatmul.mubr.f32.gmra.mxu0 %v2658
      %v2824 = vpop.f32.mrf.mxu0
      %v2825 = vadd.f32 0.0, %v2824
      %v2826 = vpop.f32.mrf.mxu0
      %2827 = vmatprep.mubr.f32.mxu0 0.0
      %2828 = vmatmul.mubr.f32.gmra.mxu0 %v2661
      %v2829 = vpop.f32.mrf.mxu0
      %v2830 = vadd.f32 0.0, %v2829
      %v2831 = vpop.f32.mrf.mxu0
      %2832 = vmatprep.mubr.f32.mxu0 0.0
      %2833 = vmatmul.mubr.f32.gmra.mxu0 %v2664
      %v2834 = vpop.f32.mrf.mxu0
      %v2835 = vadd.f32 0.0, %v2834
      %v2836 = vpop.f32.mrf.mxu0
      %2837 = vmatprep.mubr.f32.mxu0 0.0
      %2838 = vmatmul.mubr.f32.gmra.mxu0 %v2667
      %v2839 = vpop.f32.mrf.mxu0
      %v2840 = vadd.f32 0.0, %v2839
      %v2841 = vpop.f32.mrf.mxu0
      %2842 = vmatprep.mubr.f32.mxu0 0.0
      %2843 = vmatmul.mubr.f32.gmra.mxu0 %v2670
      %v2844 = vpop.f32.mrf.mxu0
      %v2845 = vadd.f32 0.0, %v2844
      %v2846 = vpop.f32.mrf.mxu0
      %2847 = vmatprep.mubr.f32.mxu0 0.0
      %2848 = vmatmul.mubr.f32.gmra.mxu0 %v2673
      %v2849 = vpop.f32.mrf.mxu0
      %v2850 = vadd.f32 0.0, %v2849
      %v2851 = vpop.f32.mrf.mxu0
      %2852 = vmatprep.mubr.f32.mxu0 0.0
      %2853 = vmatmul.mubr.f32.gmra.mxu0 %v2676
      %v2854 = vpop.f32.mrf.mxu0
      %v2855 = vadd.f32 0.0, %v2854
      %v2856 = vpop.f32.mrf.mxu0
      %2857 = vmatprep.mubr.f32.mxu0 0.0
      %2858 = vmatmul.mubr.f32.gmra.mxu0 %v2679
      %v2859 = vpop.f32.mrf.mxu0
      %v2860 = vadd.f32 0.0, %v2859
      %v2861 = vpop.f32.mrf.mxu0
      %2862 = vmatprep.mubr.f32.mxu0 0.0
      %2863 = vmatmul.mubr.f32.gmra.mxu0 %v2682
      %v2864 = vpop.f32.mrf.mxu0
      %v2865 = vadd.f32 0.0, %v2864
      %v2866 = vpop.f32.mrf.mxu0
      %2867 = vmatprep.mubr.f32.mxu0 0.0
      %2868 = vmatmul.mubr.f32.gmra.mxu0 %v2685
      %v2869 = vpop.f32.mrf.mxu0
      %v2870 = vadd.f32 0.0, %v2869
      %v2871 = vpop.f32.mrf.mxu0
      %2872 = vmatprep.mubr.f32.mxu0 0.0
      %2873 = vmatmul.mubr.f32.gmra.mxu0 %v2688
      %v2874 = vpop.f32.mrf.mxu0
      %v2875 = vadd.f32 0.0, %v2874
      %v2876 = vpop.f32.mrf.mxu0
      %2877 = vmatprep.mubr.f32.mxu0 0.0
      %2878 = vmatmul.mubr.f32.gmra.mxu0 %v2691
      %v2879 = vpop.f32.mrf.mxu0
      %v2880 = vadd.f32 0.0, %v2879
      %v2881 = vpop.f32.mrf.mxu0
      %2882 = vmatprep.mubr.f32.mxu0 0.0
      %2883 = vmatmul.mubr.f32.gmra.mxu0 %v2694
      %v2884 = vpop.f32.mrf.mxu0
      %v2885 = vadd.f32 0.0, %v2884
      %v2886 = vpop.f32.mrf.mxu0
      %2887 = vmatprep.mubr.f32.mxu0 0.0
      %2888 = vmatmul.mubr.f32.gmra.mxu0 %v2697
      %v2889 = vpop.f32.mrf.mxu0
      %v2890 = vadd.f32 0.0, %v2889
      %v2891 = vpop.f32.mrf.mxu0
      %2892 = vmatprep.mubr.f32.mxu0 0.0
      %2893 = vmatmul.mubr.f32.gmra.mxu0 %v2700
      %v2894 = vpop.f32.mrf.mxu0
      %v2895 = vadd.f32 0.0, %v2894
      %v2896 = vpop.f32.mrf.mxu0
      %2897 = vmatprep.mubr.f32.mxu0 0.0
      %2898 = vmatmul.mubr.f32.gmra.mxu0 %v2703
      %v2899 = vpop.f32.mrf.mxu0
      %v2900 = vadd.f32 0.0, %v2899
      %v2901 = vpop.f32.mrf.mxu0
      %2902 = vmatprep.mubr.f32.mxu0 0.0
      %2903 = vmatmul.mubr.f32.gmra.mxu0 %v2706
      %v2904 = vpop.f32.mrf.mxu0
      %v2905 = vadd.f32 0.0, %v2904
      %v2906 = vpop.f32.mrf.mxu0
      %2907 = vmatprep.mubr.f32.mxu0 0.0
      %2908 = vmatmul.mubr.f32.gmra.mxu0 %v2709
      %v2909 = vpop.f32.mrf.mxu0
      %v2910 = vadd.f32 0.0, %v2909
      %v2911 = vpop.f32.mrf.mxu0
      %2912 = vmatprep.mubr.f32.mxu0 0.0
      %2913 = vmatmul.mubr.f32.gmra.mxu0 %v2712
      %v2914 = vpop.f32.mrf.mxu0
      %v2915 = vadd.f32 0.0, %v2914
      %v2916 = vpop.f32.mrf.mxu0
      %2917 = vmatprep.mubr.f32.mxu0 0.0
      %2918 = vmatmul.mubr.f32.gmra.mxu0 %v2715
      %v2919 = vpop.f32.mrf.mxu0
      %v2920 = vadd.f32 0.0, %v2919
      %v2921 = vpop.f32.mrf.mxu0
      %2922 = vmatprep.mubr.f32.mxu0 0.0
      %2923 = vmatmul.mubr.f32.gmra.mxu0 %v2718
      %v2924 = vpop.f32.mrf.mxu0
      %v2925 = vadd.f32 0.0, %v2924
      %v2926 = vpop.f32.mrf.mxu0
      %2927 = vmatprep.mubr.f32.mxu0 0.0
      %2928 = vmatmul.mubr.f32.gmra.mxu0 %v2721
      %v2929 = vpop.f32.mrf.mxu0
      %v2930 = vadd.f32 0.0, %v2929
      %v2931 = vpop.f32.mrf.mxu0
      %2932 = vmatprep.mubr.f32.mxu0 0.0
      %2933 = vmatmul.mubr.f32.gmra.mxu0 %v2724
      %v2934 = vpop.f32.mrf.mxu0
      %v2935 = vadd.f32 0.0, %v2934
      %v2936 = vpop.f32.mrf.mxu0
      %2937 = vmatprep.mubr.f32.mxu0 0.0
      %2938 = vmatmul.mubr.f32.gmra.mxu0 %v2727
      %v2939 = vpop.f32.mrf.mxu0
      %v2940 = vadd.f32 0.0, %v2939
      %v2941 = vpop.f32.mrf.mxu0
      %2942 = vmatprep.mubr.f32.mxu0 0.0
      %2943 = vmatmul.mubr.f32.gmra.mxu0 %v2730
      %v2944 = vpop.f32.mrf.mxu0
      %v2945 = vadd.f32 0.0, %v2944
      %v2946 = vpop.f32.mrf.mxu0
      %2947 = vmatprep.mubr.f32.mxu0 0.0
      %2948 = vmatmul.mubr.f32.gmra.mxu0 %v2733
      %v2949 = vpop.f32.mrf.mxu0
      %v2950 = vadd.f32 0.0, %v2949
      %v2951 = vpop.f32.mrf.mxu0
      %2952 = vmatprep.mubr.f32.mxu0 0.0
      %2953 = vmatmul.mubr.f32.gmra.mxu0 %v2736
      %v2954 = vpop.f32.mrf.mxu0
      %v2955 = vadd.f32 0.0, %v2954
      %v2956 = vpop.f32.mrf.mxu0
      %2957 = vmatprep.mubr.f32.mxu0 0.0
      %2958 = vmatmul.mubr.f32.gmra.mxu0 %v2739
      %v2959 = vpop.f32.mrf.mxu0
      %v2960 = vadd.f32 0.0, %v2959
      %v2961 = vpop.f32.mrf.mxu0
      %2962 = vmatprep.mubr.f32.mxu0 0.0
      %2963 = vmatmul.mubr.f32.gmra.mxu0 %v2742
      %v2964 = vpop.f32.mrf.mxu0
      %v2965 = vadd.f32 0.0, %v2964
      %v2966 = vpop.f32.mrf.mxu0
      %2967 = vmatprep.mubr.f32.mxu0 0.0
      %2968 = vmatmul.mubr.f32.gmra.mxu0 %v2745
      %v2969 = vpop.f32.mrf.mxu0
      %v2970 = vadd.f32 0.0, %v2969
      %v2971 = vpop.f32.mrf.mxu0
      %2972 = vmatprep.mubr.f32.mxu0 0.0
      %2973 = vmatmul.mubr.f32.gmra.mxu0 %v2748
      %v2974 = vpop.f32.mrf.mxu0
      %v2975 = vadd.f32 0.0, %v2974
      %v2976 = vpop.f32.mrf.mxu0
      %2977 = vdwg.mxu0
      %v2978 = vadd.f32 %v2588, %v2820
      %v2979 = vadd.f32 %v2589, %v2825
      %v2980 = vadd.f32 %v2590, %v2830
      %v2981 = vadd.f32 %v2591, %v2835
      %v2982 = vadd.f32 %v2592, %v2840
      %v2983 = vadd.f32 %v2593, %v2845
      %v2984 = vadd.f32 %v2594, %v2850
      %v2985 = vadd.f32 %v2595, %v2855
      %v2986 = vadd.f32 %v2596, %v2860
      %v2987 = vadd.f32 %v2597, %v2865
      %v2988 = vadd.f32 %v2598, %v2870
      %v2989 = vadd.f32 %v2599, %v2875
      %v2990 = vadd.f32 %v2600, %v2880
      %v2991 = vadd.f32 %v2601, %v2885
      %v2992 = vadd.f32 %v2602, %v2890
      %v2993 = vadd.f32 %v2603, %v2895
      %v2994 = vadd.f32 %v2604, %v2900
      %v2995 = vadd.f32 %v2605, %v2905
      %v2996 = vadd.f32 %v2606, %v2910
      %v2997 = vadd.f32 %v2607, %v2915
      %v2998 = vadd.f32 %v2608, %v2920
      %v2999 = vadd.f32 %v2609, %v2925
      %v3000 = vadd.f32 %v2610, %v2930
      %v3001 = vadd.f32 %v2611, %v2935
      %v3002 = vadd.f32 %v2612, %v2940
      %v3003 = vadd.f32 %v2613, %v2945
      %v3004 = vadd.f32 %v2614, %v2950
      %v3005 = vadd.f32 %v2615, %v2955
      %v3006 = vadd.f32 %v2616, %v2960
      %v3007 = vadd.f32 %v2617, %v2965
      %v3008 = vadd.f32 %v2618, %v2970
      %v3009 = vadd.f32 %v2619, %v2975
      %v3010 = vadd.f32 %v2978, %v1704
      %v3011 = vadd.f32 %v2979, %v1704
      %v3012 = vadd.f32 %v2980, %v1704
      %v3013 = vadd.f32 %v2981, %v1704
      %v3014 = vadd.f32 %v2982, %v1704
      %v3015 = vadd.f32 %v2983, %v1704
      %v3016 = vadd.f32 %v2984, %v1704
      %v3017 = vadd.f32 %v2985, %v1704
      %v3018 = vadd.f32 %v2986, %v1704
      %v3019 = vadd.f32 %v2987, %v1704
      %v3020 = vadd.f32 %v2988, %v1704
      %v3021 = vadd.f32 %v2989, %v1704
      %v3022 = vadd.f32 %v2990, %v1704
      %v3023 = vadd.f32 %v2991, %v1704
      %v3024 = vadd.f32 %v2992, %v1704
      %v3025 = vadd.f32 %v2993, %v1704
      %v3026 = vadd.f32 %v2994, %v1704
      %v3027 = vadd.f32 %v2995, %v1704
      %v3028 = vadd.f32 %v2996, %v1704
      %v3029 = vadd.f32 %v2997, %v1704
      %v3030 = vadd.f32 %v2998, %v1704
      %v3031 = vadd.f32 %v2999, %v1704
      %v3032 = vadd.f32 %v3000, %v1704
      %v3033 = vadd.f32 %v3001, %v1704
      %v3034 = vadd.f32 %v3002, %v1704
      %v3035 = vadd.f32 %v3003, %v1704
      %v3036 = vadd.f32 %v3004, %v1704
      %v3037 = vadd.f32 %v3005, %v1704
      %v3038 = vadd.f32 %v3006, %v1704
      %v3039 = vadd.f32 %v3007, %v1704
      %v3040 = vadd.f32 %v3008, %v1704
      %v3041 = vadd.f32 %v3009, %v1704
      %s3042 = scalar_lea.vmem %s194, 256
      %3043 = vst.msk [vmem:[%s3042] sm:$0xff] %vm267, %v3010
      %3044 = vst.msk [vmem:[%s3042 + $0x8] sm:$0xff] %vm267, %v3011
      %3045 = vst.msk [vmem:[%s3042 + $0x10] sm:$0xff] %vm267, %v3012
      %3046 = vst.msk [vmem:[%s3042 + $0x18] sm:$0xff] %vm267, %v3013
      %3047 = vst.msk [vmem:[%s3042 + $0x20] sm:$0xff] %vm267, %v3014
      %3048 = vst.msk [vmem:[%s3042 + $0x28] sm:$0xff] %vm267, %v3015
      %3049 = vst.msk [vmem:[%s3042 + $0x30] sm:$0xff] %vm267, %v3016
      %3050 = vst.msk [vmem:[%s3042 + $0x38] sm:$0xff] %vm267, %v3017
      %3051 = vst.msk [vmem:[%s3042 + $0x40] sm:$0xff] %vm267, %v3018
      %3052 = vst.msk [vmem:[%s3042 + $0x48] sm:$0xff] %vm267, %v3019
      %3053 = vst.msk [vmem:[%s3042 + $0x50] sm:$0xff] %vm267, %v3020
      %3054 = vst.msk [vmem:[%s3042 + $0x58] sm:$0xff] %vm267, %v3021
      %3055 = vst.msk [vmem:[%s3042 + $0x60] sm:$0xff] %vm267, %v3022
      %3056 = vst.msk [vmem:[%s3042 + $0x68] sm:$0xff] %vm267, %v3023
      %3057 = vst.msk [vmem:[%s3042 + $0x70] sm:$0xff] %vm267, %v3024
      %3058 = vst.msk [vmem:[%s3042 + $0x78] sm:$0xff] %vm267, %v3025
      %3059 = vst.msk [vmem:[%s3042 + $0x80] sm:$0xff] %vm267, %v3026
      %3060 = vst.msk [vmem:[%s3042 + $0x88] sm:$0xff] %vm267, %v3027
      %3061 = vst.msk [vmem:[%s3042 + $0x90] sm:$0xff] %vm267, %v3028
      %3062 = vst.msk [vmem:[%s3042 + $0x98] sm:$0xff] %vm267, %v3029
      %3063 = vst.msk [vmem:[%s3042 + $0xa0] sm:$0xff] %vm267, %v3030
      %3064 = vst.msk [vmem:[%s3042 + $0xa8] sm:$0xff] %vm267, %v3031
      %3065 = vst.msk [vmem:[%s3042 + $0xb0] sm:$0xff] %vm267, %v3032
      %3066 = vst.msk [vmem:[%s3042 + $0xb8] sm:$0xff] %vm267, %v3033
      %3067 = vst.msk [vmem:[%s3042 + $0xc0] sm:$0xff] %vm267, %v3034
      %3068 = vst.msk [vmem:[%s3042 + $0xc8] sm:$0xff] %vm267, %v3035
      %3069 = vst.msk [vmem:[%s3042 + $0xd0] sm:$0xff] %vm267, %v3036
      %3070 = vst.msk [vmem:[%s3042 + $0xd8] sm:$0xff] %vm267, %v3037
      %3071 = vst.msk [vmem:[%s3042 + $0xe0] sm:$0xff] %vm267, %v3038
      %3072 = vst.msk [vmem:[%s3042 + $0xe8] sm:$0xff] %vm267, %v3039
      %3073 = vst.msk [vmem:[%s3042 + $0xf0] sm:$0xff] %vm267, %v3040
      %3074 = vst.msk [vmem:[%s3042 + $0xf8] sm:$0xff] %vm267, %v3041
      %s3075 = scalar_lea.vmem %s1, 32
      %v3076 = vld [vmem:[%s3075] sm:$0xf]
      %s3077 = scalar_lea.vmem %s1, 36
      %v3078 = vld [vmem:[%s3077] sm:$0xf]
      %v3080 = vsel %vm364, %v3078, 0
      %3082 = vmatprep.subr.mxu0 0.0
      %3083 = vmatpush1.msra.mxu0 0.0
      %3084 = vmatprep.subr.mxu0 0.0
      %3085 = vmatpush1.msra.mxu0 0.0
      %3086 = vmatprep.subr.mxu0 0.0
      %3087 = vmatpush1.msra.mxu0 0.0
      %3088 = vmatprep.subr.mxu0 0.0
      %3089 = vmatpush1.msra.mxu0 0.0
      %3090 = vmatprep.subr.mxu0 0.0
      %3091 = vmatpush1.msra.mxu0 0.0
      %3092 = vmatprep.subr.mxu0 0.0
      %3093 = vmatpush1.msra.mxu0 0.0
      %3094 = vmatprep.subr.mxu0 0.0
      %3095 = vmatpush1.msra.mxu0 0.0
      %3096 = vmatprep.subr.mxu0 0.0
      %3097 = vmatpush1.msra.mxu0 0.0
      %3098 = vmatprep.subr.mxu0 0.0
      %3099 = vmatpush1.msra.mxu0 0.0
      %3100 = vmatprep.subr.mxu0 0.0
      %3101 = vmatpush1.msra.mxu0 0.0
      %3102 = vmatprep.subr.mxu0 0.0
      %3103 = vmatpush1.msra.mxu0 0.0
      %3104 = vmatprep.subr.mxu0 0.0
      %3105 = vmatpush1.msra.mxu0 0.0
      %3106 = vmatprep.subr.mxu0 0.0
      %3107 = vmatpush1.msra.mxu0 0.0
      %3108 = vmatprep.subr.mxu0 0.0
      %3109 = vmatpush1.msra.mxu0 0.0
      %3110 = vmatprep.subr.mxu0 0.0
      %3111 = vmatpush1.msra.mxu0 0.0
      %3112 = vmatprep.subr.mxu0 0.0
      %3113 = vmatpush1.msra.mxu0 %v3080
      %3114 = vmatprep.subr.mxu0 0.0
      %3115 = vmatpush2.msra.mxu0 0.0
      %3116 = vmatprep.subr.mxu0 0.0
      %3117 = vmatpush2.msra.mxu0 0.0
      %3118 = vmatprep.subr.mxu0 0.0
      %3119 = vmatpush2.msra.mxu0 0.0
      %3120 = vmatprep.subr.mxu0 0.0
      %3121 = vmatpush2.msra.mxu0 0.0
      %3122 = vmatprep.subr.mxu0 0.0
      %3123 = vmatpush2.msra.mxu0 0.0
      %3124 = vmatprep.subr.mxu0 0.0
      %3125 = vmatpush2.msra.mxu0 0.0
      %3126 = vmatprep.subr.mxu0 0.0
      %3127 = vmatpush2.msra.mxu0 0.0
      %3128 = vmatprep.subr.mxu0 0.0
      %3129 = vmatpush2.msra.mxu0 0.0
      %3130 = vmatprep.subr.mxu0 0.0
      %3131 = vmatpush2.msra.mxu0 0.0
      %3132 = vmatprep.subr.mxu0 0.0
      %3133 = vmatpush2.msra.mxu0 0.0
      %3134 = vmatprep.subr.mxu0 0.0
      %3135 = vmatpush2.msra.mxu0 0.0
      %3136 = vmatprep.subr.mxu0 0.0
      %3137 = vmatpush2.msra.mxu0 0.0
      %3138 = vmatprep.subr.mxu0 0.0
      %3139 = vmatpush2.msra.mxu0 0.0
      %3140 = vmatprep.subr.mxu0 0.0
      %3141 = vmatpush2.msra.mxu0 0.0
      %3142 = vmatprep.subr.mxu0 0.0
      %3143 = vmatpush2.msra.mxu0 0.0
      %3144 = vmatprep.subr.mxu0 0.0
      %3145 = vmatpush2.msra.mxu0 0.0
      %3146 = vmatprep.mubr.f32.mxu0 0.0
      %3147 = vmatmul.mubr.f32.gmra.mxu0 %v1345
      %v3148 = vpop.f32.mrf.mxu0
      %v3149 = vadd.f32 0.0, %v3148
      %v3150 = vpop.f32.mrf.mxu0
      %3151 = vmatprep.mubr.f32.mxu0 0.0
      %3152 = vmatmul.mubr.f32.gmra.mxu0 %v1348
      %v3153 = vpop.f32.mrf.mxu0
      %v3154 = vadd.f32 0.0, %v3153
      %v3155 = vpop.f32.mrf.mxu0
      %3156 = vmatprep.mubr.f32.mxu0 0.0
      %3157 = vmatmul.mubr.f32.gmra.mxu0 %v1351
      %v3158 = vpop.f32.mrf.mxu0
      %v3159 = vadd.f32 0.0, %v3158
      %v3160 = vpop.f32.mrf.mxu0
      %3161 = vmatprep.mubr.f32.mxu0 0.0
      %3162 = vmatmul.mubr.f32.gmra.mxu0 %v1354
      %v3163 = vpop.f32.mrf.mxu0
      %v3164 = vadd.f32 0.0, %v3163
      %v3165 = vpop.f32.mrf.mxu0
      %3166 = vmatprep.mubr.f32.mxu0 0.0
      %3167 = vmatmul.mubr.f32.gmra.mxu0 %v1357
      %v3168 = vpop.f32.mrf.mxu0
      %v3169 = vadd.f32 0.0, %v3168
      %v3170 = vpop.f32.mrf.mxu0
      %3171 = vmatprep.mubr.f32.mxu0 0.0
      %3172 = vmatmul.mubr.f32.gmra.mxu0 %v1360
      %v3173 = vpop.f32.mrf.mxu0
      %v3174 = vadd.f32 0.0, %v3173
      %v3175 = vpop.f32.mrf.mxu0
      %3176 = vmatprep.mubr.f32.mxu0 0.0
      %3177 = vmatmul.mubr.f32.gmra.mxu0 %v1363
      %v3178 = vpop.f32.mrf.mxu0
      %v3179 = vadd.f32 0.0, %v3178
      %v3180 = vpop.f32.mrf.mxu0
      %3181 = vmatprep.mubr.f32.mxu0 0.0
      %3182 = vmatmul.mubr.f32.gmra.mxu0 %v1366
      %v3183 = vpop.f32.mrf.mxu0
      %v3184 = vadd.f32 0.0, %v3183
      %v3185 = vpop.f32.mrf.mxu0
      %3186 = vmatprep.mubr.f32.mxu0 0.0
      %3187 = vmatmul.mubr.f32.gmra.mxu0 %v1369
      %v3188 = vpop.f32.mrf.mxu0
      %v3189 = vadd.f32 0.0, %v3188
      %v3190 = vpop.f32.mrf.mxu0
      %3191 = vmatprep.mubr.f32.mxu0 0.0
      %3192 = vmatmul.mubr.f32.gmra.mxu0 %v1372
      %v3193 = vpop.f32.mrf.mxu0
      %v3194 = vadd.f32 0.0, %v3193
      %v3195 = vpop.f32.mrf.mxu0
      %3196 = vmatprep.mubr.f32.mxu0 0.0
      %3197 = vmatmul.mubr.f32.gmra.mxu0 %v1375
      %v3198 = vpop.f32.mrf.mxu0
      %v3199 = vadd.f32 0.0, %v3198
      %v3200 = vpop.f32.mrf.mxu0
      %3201 = vmatprep.mubr.f32.mxu0 0.0
      %3202 = vmatmul.mubr.f32.gmra.mxu0 %v1378
      %v3203 = vpop.f32.mrf.mxu0
      %v3204 = vadd.f32 0.0, %v3203
      %v3205 = vpop.f32.mrf.mxu0
      %3206 = vmatprep.mubr.f32.mxu0 0.0
      %3207 = vmatmul.mubr.f32.gmra.mxu0 %v1381
      %v3208 = vpop.f32.mrf.mxu0
      %v3209 = vadd.f32 0.0, %v3208
      %v3210 = vpop.f32.mrf.mxu0
      %3211 = vmatprep.mubr.f32.mxu0 0.0
      %3212 = vmatmul.mubr.f32.gmra.mxu0 %v1384
      %v3213 = vpop.f32.mrf.mxu0
      %v3214 = vadd.f32 0.0, %v3213
      %v3215 = vpop.f32.mrf.mxu0
      %3216 = vmatprep.mubr.f32.mxu0 0.0
      %3217 = vmatmul.mubr.f32.gmra.mxu0 %v1387
      %v3218 = vpop.f32.mrf.mxu0
      %v3219 = vadd.f32 0.0, %v3218
      %v3220 = vpop.f32.mrf.mxu0
      %3221 = vmatprep.mubr.f32.mxu0 0.0
      %3222 = vmatmul.mubr.f32.gmra.mxu0 %v1390
      %v3223 = vpop.f32.mrf.mxu0
      %v3224 = vadd.f32 0.0, %v3223
      %v3225 = vpop.f32.mrf.mxu0
      %3226 = vmatprep.mubr.f32.mxu0 0.0
      %3227 = vmatmul.mubr.f32.gmra.mxu0 %v1393
      %v3228 = vpop.f32.mrf.mxu0
      %v3229 = vadd.f32 0.0, %v3228
      %v3230 = vpop.f32.mrf.mxu0
      %3231 = vmatprep.mubr.f32.mxu0 0.0
      %3232 = vmatmul.mubr.f32.gmra.mxu0 %v1396
      %v3233 = vpop.f32.mrf.mxu0
      %v3234 = vadd.f32 0.0, %v3233
      %v3235 = vpop.f32.mrf.mxu0
      %3236 = vmatprep.mubr.f32.mxu0 0.0
      %3237 = vmatmul.mubr.f32.gmra.mxu0 %v1399
      %v3238 = vpop.f32.mrf.mxu0
      %v3239 = vadd.f32 0.0, %v3238
      %v3240 = vpop.f32.mrf.mxu0
      %3241 = vmatprep.mubr.f32.mxu0 0.0
      %3242 = vmatmul.mubr.f32.gmra.mxu0 %v1402
      %v3243 = vpop.f32.mrf.mxu0
      %v3244 = vadd.f32 0.0, %v3243
      %v3245 = vpop.f32.mrf.mxu0
      %3246 = vmatprep.mubr.f32.mxu0 0.0
      %3247 = vmatmul.mubr.f32.gmra.mxu0 %v1405
      %v3248 = vpop.f32.mrf.mxu0
      %v3249 = vadd.f32 0.0, %v3248
      %v3250 = vpop.f32.mrf.mxu0
      %3251 = vmatprep.mubr.f32.mxu0 0.0
      %3252 = vmatmul.mubr.f32.gmra.mxu0 %v1408
      %v3253 = vpop.f32.mrf.mxu0
      %v3254 = vadd.f32 0.0, %v3253
      %v3255 = vpop.f32.mrf.mxu0
      %3256 = vmatprep.mubr.f32.mxu0 0.0
      %3257 = vmatmul.mubr.f32.gmra.mxu0 %v1411
      %v3258 = vpop.f32.mrf.mxu0
      %v3259 = vadd.f32 0.0, %v3258
      %v3260 = vpop.f32.mrf.mxu0
      %3261 = vmatprep.mubr.f32.mxu0 0.0
      %3262 = vmatmul.mubr.f32.gmra.mxu0 %v1414
      %v3263 = vpop.f32.mrf.mxu0
      %v3264 = vadd.f32 0.0, %v3263
      %v3265 = vpop.f32.mrf.mxu0
      %3266 = vmatprep.mubr.f32.mxu0 0.0
      %3267 = vmatmul.mubr.f32.gmra.mxu0 %v1417
      %v3268 = vpop.f32.mrf.mxu0
      %v3269 = vadd.f32 0.0, %v3268
      %v3270 = vpop.f32.mrf.mxu0
      %3271 = vmatprep.mubr.f32.mxu0 0.0
      %3272 = vmatmul.mubr.f32.gmra.mxu0 %v1420
      %v3273 = vpop.f32.mrf.mxu0
      %v3274 = vadd.f32 0.0, %v3273
      %v3275 = vpop.f32.mrf.mxu0
      %3276 = vmatprep.mubr.f32.mxu0 0.0
      %3277 = vmatmul.mubr.f32.gmra.mxu0 %v1423
      %v3278 = vpop.f32.mrf.mxu0
      %v3279 = vadd.f32 0.0, %v3278
      %v3280 = vpop.f32.mrf.mxu0
      %3281 = vmatprep.mubr.f32.mxu0 0.0
      %3282 = vmatmul.mubr.f32.gmra.mxu0 %v1426
      %v3283 = vpop.f32.mrf.mxu0
      %v3284 = vadd.f32 0.0, %v3283
      %v3285 = vpop.f32.mrf.mxu0
      %3286 = vmatprep.mubr.f32.mxu0 0.0
      %3287 = vmatmul.mubr.f32.gmra.mxu0 %v1429
      %v3288 = vpop.f32.mrf.mxu0
      %v3289 = vadd.f32 0.0, %v3288
      %v3290 = vpop.f32.mrf.mxu0
      %3291 = vmatprep.mubr.f32.mxu0 0.0
      %3292 = vmatmul.mubr.f32.gmra.mxu0 %v1432
      %v3293 = vpop.f32.mrf.mxu0
      %v3294 = vadd.f32 0.0, %v3293
      %v3295 = vpop.f32.mrf.mxu0
      %3296 = vmatprep.mubr.f32.mxu0 0.0
      %3297 = vmatmul.mubr.f32.gmra.mxu0 %v1435
      %v3298 = vpop.f32.mrf.mxu0
      %v3299 = vadd.f32 0.0, %v3298
      %v3300 = vpop.f32.mrf.mxu0
      %3301 = vmatprep.mubr.f32.mxu0 0.0
      %3302 = vmatmul.mubr.f32.gmra.mxu0 %v1438
      %v3303 = vpop.f32.mrf.mxu0
      %v3304 = vadd.f32 0.0, %v3303
      %v3305 = vpop.f32.mrf.mxu0
      %3306 = vdwg.mxu0
      %v3308 = vsel %vm364, %v3076, 0
      %3310 = vmatprep.subr.mxu0 0.0
      %3311 = vmatpush1.msra.mxu0 0.0
      %3312 = vmatprep.subr.mxu0 0.0
      %3313 = vmatpush1.msra.mxu0 0.0
      %3314 = vmatprep.subr.mxu0 0.0
      %3315 = vmatpush1.msra.mxu0 0.0
      %3316 = vmatprep.subr.mxu0 0.0
      %3317 = vmatpush1.msra.mxu0 0.0
      %3318 = vmatprep.subr.mxu0 0.0
      %3319 = vmatpush1.msra.mxu0 0.0
      %3320 = vmatprep.subr.mxu0 0.0
      %3321 = vmatpush1.msra.mxu0 0.0
      %3322 = vmatprep.subr.mxu0 0.0
      %3323 = vmatpush1.msra.mxu0 0.0
      %3324 = vmatprep.subr.mxu0 0.0
      %3325 = vmatpush1.msra.mxu0 0.0
      %3326 = vmatprep.subr.mxu0 0.0
      %3327 = vmatpush1.msra.mxu0 0.0
      %3328 = vmatprep.subr.mxu0 0.0
      %3329 = vmatpush1.msra.mxu0 0.0
      %3330 = vmatprep.subr.mxu0 0.0
      %3331 = vmatpush1.msra.mxu0 0.0
      %3332 = vmatprep.subr.mxu0 0.0
      %3333 = vmatpush1.msra.mxu0 0.0
      %3334 = vmatprep.subr.mxu0 0.0
      %3335 = vmatpush1.msra.mxu0 0.0
      %3336 = vmatprep.subr.mxu0 0.0
      %3337 = vmatpush1.msra.mxu0 0.0
      %3338 = vmatprep.subr.mxu0 0.0
      %3339 = vmatpush1.msra.mxu0 0.0
      %3340 = vmatprep.subr.mxu0 0.0
      %3341 = vmatpush1.msra.mxu0 %v3308
      %3342 = vmatprep.subr.mxu0 0.0
      %3343 = vmatpush2.msra.mxu0 0.0
      %3344 = vmatprep.subr.mxu0 0.0
      %3345 = vmatpush2.msra.mxu0 0.0
      %3346 = vmatprep.subr.mxu0 0.0
      %3347 = vmatpush2.msra.mxu0 0.0
      %3348 = vmatprep.subr.mxu0 0.0
      %3349 = vmatpush2.msra.mxu0 0.0
      %3350 = vmatprep.subr.mxu0 0.0
      %3351 = vmatpush2.msra.mxu0 0.0
      %3352 = vmatprep.subr.mxu0 0.0
      %3353 = vmatpush2.msra.mxu0 0.0
      %3354 = vmatprep.subr.mxu0 0.0
      %3355 = vmatpush2.msra.mxu0 0.0
      %3356 = vmatprep.subr.mxu0 0.0
      %3357 = vmatpush2.msra.mxu0 0.0
      %3358 = vmatprep.subr.mxu0 0.0
      %3359 = vmatpush2.msra.mxu0 0.0
      %3360 = vmatprep.subr.mxu0 0.0
      %3361 = vmatpush2.msra.mxu0 0.0
      %3362 = vmatprep.subr.mxu0 0.0
      %3363 = vmatpush2.msra.mxu0 0.0
      %3364 = vmatprep.subr.mxu0 0.0
      %3365 = vmatpush2.msra.mxu0 0.0
      %3366 = vmatprep.subr.mxu0 0.0
      %3367 = vmatpush2.msra.mxu0 0.0
      %3368 = vmatprep.subr.mxu0 0.0
      %3369 = vmatpush2.msra.mxu0 0.0
      %3370 = vmatprep.subr.mxu0 0.0
      %3371 = vmatpush2.msra.mxu0 0.0
      %3372 = vmatprep.subr.mxu0 0.0
      %3373 = vmatpush2.msra.mxu0 0.0
      %3374 = vmatprep.mubr.f32.mxu0 0.0
      %3375 = vmatmul.mubr.f32.gmra.mxu0 %v955
      %v3376 = vpop.f32.mrf.mxu0
      %v3377 = vadd.f32 %v3149, %v3376
      %v3378 = vpop.f32.mrf.mxu0
      %3379 = vmatprep.mubr.f32.mxu0 0.0
      %3380 = vmatmul.mubr.f32.gmra.mxu0 %v958
      %v3381 = vpop.f32.mrf.mxu0
      %v3382 = vadd.f32 %v3154, %v3381
      %v3383 = vpop.f32.mrf.mxu0
      %3384 = vmatprep.mubr.f32.mxu0 0.0
      %3385 = vmatmul.mubr.f32.gmra.mxu0 %v961
      %v3386 = vpop.f32.mrf.mxu0
      %v3387 = vadd.f32 %v3159, %v3386
      %v3388 = vpop.f32.mrf.mxu0
      %3389 = vmatprep.mubr.f32.mxu0 0.0
      %3390 = vmatmul.mubr.f32.gmra.mxu0 %v964
      %v3391 = vpop.f32.mrf.mxu0
      %v3392 = vadd.f32 %v3164, %v3391
      %v3393 = vpop.f32.mrf.mxu0
      %3394 = vmatprep.mubr.f32.mxu0 0.0
      %3395 = vmatmul.mubr.f32.gmra.mxu0 %v967
      %v3396 = vpop.f32.mrf.mxu0
      %v3397 = vadd.f32 %v3169, %v3396
      %v3398 = vpop.f32.mrf.mxu0
      %3399 = vmatprep.mubr.f32.mxu0 0.0
      %3400 = vmatmul.mubr.f32.gmra.mxu0 %v970
      %v3401 = vpop.f32.mrf.mxu0
      %v3402 = vadd.f32 %v3174, %v3401
      %v3403 = vpop.f32.mrf.mxu0
      %3404 = vmatprep.mubr.f32.mxu0 0.0
      %3405 = vmatmul.mubr.f32.gmra.mxu0 %v973
      %v3406 = vpop.f32.mrf.mxu0
      %v3407 = vadd.f32 %v3179, %v3406
      %v3408 = vpop.f32.mrf.mxu0
      %3409 = vmatprep.mubr.f32.mxu0 0.0
      %3410 = vmatmul.mubr.f32.gmra.mxu0 %v976
      %v3411 = vpop.f32.mrf.mxu0
      %v3412 = vadd.f32 %v3184, %v3411
      %v3413 = vpop.f32.mrf.mxu0
      %3414 = vmatprep.mubr.f32.mxu0 0.0
      %3415 = vmatmul.mubr.f32.gmra.mxu0 %v979
      %v3416 = vpop.f32.mrf.mxu0
      %v3417 = vadd.f32 %v3189, %v3416
      %v3418 = vpop.f32.mrf.mxu0
      %3419 = vmatprep.mubr.f32.mxu0 0.0
      %3420 = vmatmul.mubr.f32.gmra.mxu0 %v982
      %v3421 = vpop.f32.mrf.mxu0
      %v3422 = vadd.f32 %v3194, %v3421
      %v3423 = vpop.f32.mrf.mxu0
      %3424 = vmatprep.mubr.f32.mxu0 0.0
      %3425 = vmatmul.mubr.f32.gmra.mxu0 %v985
      %v3426 = vpop.f32.mrf.mxu0
      %v3427 = vadd.f32 %v3199, %v3426
      %v3428 = vpop.f32.mrf.mxu0
      %3429 = vmatprep.mubr.f32.mxu0 0.0
      %3430 = vmatmul.mubr.f32.gmra.mxu0 %v988
      %v3431 = vpop.f32.mrf.mxu0
      %v3432 = vadd.f32 %v3204, %v3431
      %v3433 = vpop.f32.mrf.mxu0
      %3434 = vmatprep.mubr.f32.mxu0 0.0
      %3435 = vmatmul.mubr.f32.gmra.mxu0 %v991
      %v3436 = vpop.f32.mrf.mxu0
      %v3437 = vadd.f32 %v3209, %v3436
      %v3438 = vpop.f32.mrf.mxu0
      %3439 = vmatprep.mubr.f32.mxu0 0.0
      %3440 = vmatmul.mubr.f32.gmra.mxu0 %v994
      %v3441 = vpop.f32.mrf.mxu0
      %v3442 = vadd.f32 %v3214, %v3441
      %v3443 = vpop.f32.mrf.mxu0
      %3444 = vmatprep.mubr.f32.mxu0 0.0
      %3445 = vmatmul.mubr.f32.gmra.mxu0 %v997
      %v3446 = vpop.f32.mrf.mxu0
      %v3447 = vadd.f32 %v3219, %v3446
      %v3448 = vpop.f32.mrf.mxu0
      %3449 = vmatprep.mubr.f32.mxu0 0.0
      %3450 = vmatmul.mubr.f32.gmra.mxu0 %v1000
      %v3451 = vpop.f32.mrf.mxu0
      %v3452 = vadd.f32 %v3224, %v3451
      %v3453 = vpop.f32.mrf.mxu0
      %3454 = vmatprep.mubr.f32.mxu0 0.0
      %3455 = vmatmul.mubr.f32.gmra.mxu0 %v1003
      %v3456 = vpop.f32.mrf.mxu0
      %v3457 = vadd.f32 %v3229, %v3456
      %v3458 = vpop.f32.mrf.mxu0
      %3459 = vmatprep.mubr.f32.mxu0 0.0
      %3460 = vmatmul.mubr.f32.gmra.mxu0 %v1006
      %v3461 = vpop.f32.mrf.mxu0
      %v3462 = vadd.f32 %v3234, %v3461
      %v3463 = vpop.f32.mrf.mxu0
      %3464 = vmatprep.mubr.f32.mxu0 0.0
      %3465 = vmatmul.mubr.f32.gmra.mxu0 %v1009
      %v3466 = vpop.f32.mrf.mxu0
      %v3467 = vadd.f32 %v3239, %v3466
      %v3468 = vpop.f32.mrf.mxu0
      %3469 = vmatprep.mubr.f32.mxu0 0.0
      %3470 = vmatmul.mubr.f32.gmra.mxu0 %v1012
      %v3471 = vpop.f32.mrf.mxu0
      %v3472 = vadd.f32 %v3244, %v3471
      %v3473 = vpop.f32.mrf.mxu0
      %3474 = vmatprep.mubr.f32.mxu0 0.0
      %3475 = vmatmul.mubr.f32.gmra.mxu0 %v1015
      %v3476 = vpop.f32.mrf.mxu0
      %v3477 = vadd.f32 %v3249, %v3476
      %v3478 = vpop.f32.mrf.mxu0
      %3479 = vmatprep.mubr.f32.mxu0 0.0
      %3480 = vmatmul.mubr.f32.gmra.mxu0 %v1018
      %v3481 = vpop.f32.mrf.mxu0
      %v3482 = vadd.f32 %v3254, %v3481
      %v3483 = vpop.f32.mrf.mxu0
      %3484 = vmatprep.mubr.f32.mxu0 0.0
      %3485 = vmatmul.mubr.f32.gmra.mxu0 %v1021
      %v3486 = vpop.f32.mrf.mxu0
      %v3487 = vadd.f32 %v3259, %v3486
      %v3488 = vpop.f32.mrf.mxu0
      %3489 = vmatprep.mubr.f32.mxu0 0.0
      %3490 = vmatmul.mubr.f32.gmra.mxu0 %v1024
      %v3491 = vpop.f32.mrf.mxu0
      %v3492 = vadd.f32 %v3264, %v3491
      %v3493 = vpop.f32.mrf.mxu0
      %3494 = vmatprep.mubr.f32.mxu0 0.0
      %3495 = vmatmul.mubr.f32.gmra.mxu0 %v1027
      %v3496 = vpop.f32.mrf.mxu0
      %v3497 = vadd.f32 %v3269, %v3496
      %v3498 = vpop.f32.mrf.mxu0
      %3499 = vmatprep.mubr.f32.mxu0 0.0
      %3500 = vmatmul.mubr.f32.gmra.mxu0 %v1030
      %v3501 = vpop.f32.mrf.mxu0
      %v3502 = vadd.f32 %v3274, %v3501
      %v3503 = vpop.f32.mrf.mxu0
      %3504 = vmatprep.mubr.f32.mxu0 0.0
      %3505 = vmatmul.mubr.f32.gmra.mxu0 %v1033
      %v3506 = vpop.f32.mrf.mxu0
      %v3507 = vadd.f32 %v3279, %v3506
      %v3508 = vpop.f32.mrf.mxu0
      %3509 = vmatprep.mubr.f32.mxu0 0.0
      %3510 = vmatmul.mubr.f32.gmra.mxu0 %v1036
      %v3511 = vpop.f32.mrf.mxu0
      %v3512 = vadd.f32 %v3284, %v3511
      %v3513 = vpop.f32.mrf.mxu0
      %3514 = vmatprep.mubr.f32.mxu0 0.0
      %3515 = vmatmul.mubr.f32.gmra.mxu0 %v1039
      %v3516 = vpop.f32.mrf.mxu0
      %v3517 = vadd.f32 %v3289, %v3516
      %v3518 = vpop.f32.mrf.mxu0
      %3519 = vmatprep.mubr.f32.mxu0 0.0
      %3520 = vmatmul.mubr.f32.gmra.mxu0 %v1042
      %v3521 = vpop.f32.mrf.mxu0
      %v3522 = vadd.f32 %v3294, %v3521
      %v3523 = vpop.f32.mrf.mxu0
      %3524 = vmatprep.mubr.f32.mxu0 0.0
      %3525 = vmatmul.mubr.f32.gmra.mxu0 %v1045
      %v3526 = vpop.f32.mrf.mxu0
      %v3527 = vadd.f32 %v3299, %v3526
      %v3528 = vpop.f32.mrf.mxu0
      %3529 = vmatprep.mubr.f32.mxu0 0.0
      %3530 = vmatmul.mubr.f32.gmra.mxu0 %v1048
      %v3531 = vpop.f32.mrf.mxu0
      %v3532 = vadd.f32 %v3304, %v3531
      %v3533 = vpop.f32.mrf.mxu0
      %3534 = vdwg.mxu0
      %s3535 = scalar_lea.vmem %s1, 40
      %v3536 = vld [vmem:[%s3535] sm:$0xf]
      %s3537 = sadd.s32 %s196, 2
      %s3538 = smul.u32 %s3537, 24
      %s3539 = scalar_lea.vmem %s184, %s3538
      %v3540 = vld [vmem:[%s3539] sm:$0xff]
      %v3541 = vld [vmem:[%s3539 + $0x8] sm:$0xff]
      %v3542 = vld [vmem:[%s3539 + $0x18] sm:$0xff]
      %v3543 = vld [vmem:[%s3539 + $0x20] sm:$0xff]
      %v3544 = vld [vmem:[%s3539 + $0x30] sm:$0xff]
      %v3545 = vld [vmem:[%s3539 + $0x38] sm:$0xff]
      %v3546 = vld [vmem:[%s3539 + $0x48] sm:$0xff]
      %v3547 = vld [vmem:[%s3539 + $0x50] sm:$0xff]
      %v3548 = vld [vmem:[%s3539 + $0x60] sm:$0xff]
      %v3549 = vld [vmem:[%s3539 + $0x68] sm:$0xff]
      %v3550 = vld [vmem:[%s3539 + $0x78] sm:$0xff]
      %v3551 = vld [vmem:[%s3539 + $0x80] sm:$0xff]
      %v3552 = vld [vmem:[%s3539 + $0x90] sm:$0xff]
      %v3553 = vld [vmem:[%s3539 + $0x98] sm:$0xff]
      %v3554 = vld [vmem:[%s3539 + $0xa8] sm:$0xff]
      %v3555 = vld [vmem:[%s3539 + $0xb0] sm:$0xff]
      %v3556 = vld [vmem:[%s3539 + $0xc0] sm:$0xff]
      %v3557 = vld [vmem:[%s3539 + $0xc8] sm:$0xff]
      %v3558 = vld [vmem:[%s3539 + $0xd8] sm:$0xff]
      %v3559 = vld [vmem:[%s3539 + $0xe0] sm:$0xff]
      %v3560 = vld [vmem:[%s3539 + $0xf0] sm:$0xff]
      %v3561 = vld [vmem:[%s3539 + $0xf8] sm:$0xff]
      %v3562 = vld [vmem:[%s3539 + $0x108] sm:$0xff]
      %v3563 = vld [vmem:[%s3539 + $0x110] sm:$0xff]
      %v3564 = vld [vmem:[%s3539 + $0x120] sm:$0xff]
      %v3565 = vld [vmem:[%s3539 + $0x128] sm:$0xff]
      %v3566 = vld [vmem:[%s3539 + $0x138] sm:$0xff]
      %v3567 = vld [vmem:[%s3539 + $0x140] sm:$0xff]
      %v3568 = vld [vmem:[%s3539 + $0x150] sm:$0xff]
      %v3569 = vld [vmem:[%s3539 + $0x158] sm:$0xff]
      %v3570 = vld [vmem:[%s3539 + $0x168] sm:$0xff]
      %v3571 = vld [vmem:[%s3539 + $0x170] sm:$0xff]
      %v3573 = vsel %vm267, %v3540, 0
      %v3576 = vsel %vm267, %v3541, 0
      %v3579 = vsel %vm267, %v3542, 0
      %v3582 = vsel %vm267, %v3543, 0
      %v3585 = vsel %vm267, %v3544, 0
      %v3588 = vsel %vm267, %v3545, 0
      %v3591 = vsel %vm267, %v3546, 0
      %v3594 = vsel %vm267, %v3547, 0
      %v3597 = vsel %vm267, %v3548, 0
      %v3600 = vsel %vm267, %v3549, 0
      %v3603 = vsel %vm267, %v3550, 0
      %v3606 = vsel %vm267, %v3551, 0
      %v3609 = vsel %vm267, %v3552, 0
      %v3612 = vsel %vm267, %v3553, 0
      %v3615 = vsel %vm267, %v3554, 0
      %v3618 = vsel %vm267, %v3555, 0
      %v3621 = vsel %vm267, %v3556, 0
      %v3624 = vsel %vm267, %v3557, 0
      %v3627 = vsel %vm267, %v3558, 0
      %v3630 = vsel %vm267, %v3559, 0
      %v3633 = vsel %vm267, %v3560, 0
      %v3636 = vsel %vm267, %v3561, 0
      %v3639 = vsel %vm267, %v3562, 0
      %v3642 = vsel %vm267, %v3563, 0
      %v3645 = vsel %vm267, %v3564, 0
      %v3648 = vsel %vm267, %v3565, 0
      %v3651 = vsel %vm267, %v3566, 0
      %v3654 = vsel %vm267, %v3567, 0
      %v3657 = vsel %vm267, %v3568, 0
      %v3660 = vsel %vm267, %v3569, 0
      %v3663 = vsel %vm267, %v3570, 0
      %v3666 = vsel %vm267, %v3571, 0
      %v3669 = vsel %vm364, %v3536, 0
      %3671 = vmatprep.subr.mxu0 0.0
      %3672 = vmatpush1.msra.mxu0 0.0
      %3673 = vmatprep.subr.mxu0 0.0
      %3674 = vmatpush1.msra.mxu0 0.0
      %3675 = vmatprep.subr.mxu0 0.0
      %3676 = vmatpush1.msra.mxu0 0.0
      %3677 = vmatprep.subr.mxu0 0.0
      %3678 = vmatpush1.msra.mxu0 0.0
      %3679 = vmatprep.subr.mxu0 0.0
      %3680 = vmatpush1.msra.mxu0 0.0
      %3681 = vmatprep.subr.mxu0 0.0
      %3682 = vmatpush1.msra.mxu0 0.0
      %3683 = vmatprep.subr.mxu0 0.0
      %3684 = vmatpush1.msra.mxu0 0.0
      %3685 = vmatprep.subr.mxu0 0.0
      %3686 = vmatpush1.msra.mxu0 0.0
      %3687 = vmatprep.subr.mxu0 0.0
      %3688 = vmatpush1.msra.mxu0 0.0
      %3689 = vmatprep.subr.mxu0 0.0
      %3690 = vmatpush1.msra.mxu0 0.0
      %3691 = vmatprep.subr.mxu0 0.0
      %3692 = vmatpush1.msra.mxu0 0.0
      %3693 = vmatprep.subr.mxu0 0.0
      %3694 = vmatpush1.msra.mxu0 0.0
      %3695 = vmatprep.subr.mxu0 0.0
      %3696 = vmatpush1.msra.mxu0 0.0
      %3697 = vmatprep.subr.mxu0 0.0
      %3698 = vmatpush1.msra.mxu0 0.0
      %3699 = vmatprep.subr.mxu0 0.0
      %3700 = vmatpush1.msra.mxu0 0.0
      %3701 = vmatprep.subr.mxu0 0.0
      %3702 = vmatpush1.msra.mxu0 %v3669
      %3703 = vmatprep.subr.mxu0 0.0
      %3704 = vmatpush2.msra.mxu0 0.0
      %3705 = vmatprep.subr.mxu0 0.0
      %3706 = vmatpush2.msra.mxu0 0.0
      %3707 = vmatprep.subr.mxu0 0.0
      %3708 = vmatpush2.msra.mxu0 0.0
      %3709 = vmatprep.subr.mxu0 0.0
      %3710 = vmatpush2.msra.mxu0 0.0
      %3711 = vmatprep.subr.mxu0 0.0
      %3712 = vmatpush2.msra.mxu0 0.0
      %3713 = vmatprep.subr.mxu0 0.0
      %3714 = vmatpush2.msra.mxu0 0.0
      %3715 = vmatprep.subr.mxu0 0.0
      %3716 = vmatpush2.msra.mxu0 0.0
      %3717 = vmatprep.subr.mxu0 0.0
      %3718 = vmatpush2.msra.mxu0 0.0
      %3719 = vmatprep.subr.mxu0 0.0
      %3720 = vmatpush2.msra.mxu0 0.0
      %3721 = vmatprep.subr.mxu0 0.0
      %3722 = vmatpush2.msra.mxu0 0.0
      %3723 = vmatprep.subr.mxu0 0.0
      %3724 = vmatpush2.msra.mxu0 0.0
      %3725 = vmatprep.subr.mxu0 0.0
      %3726 = vmatpush2.msra.mxu0 0.0
      %3727 = vmatprep.subr.mxu0 0.0
      %3728 = vmatpush2.msra.mxu0 0.0
      %3729 = vmatprep.subr.mxu0 0.0
      %3730 = vmatpush2.msra.mxu0 0.0
      %3731 = vmatprep.subr.mxu0 0.0
      %3732 = vmatpush2.msra.mxu0 0.0
      %3733 = vmatprep.subr.mxu0 0.0
      %3734 = vmatpush2.msra.mxu0 0.0
      %3735 = vmatprep.mubr.f32.mxu0 0.0
      %3736 = vmatmul.mubr.f32.gmra.mxu0 %v3573
      %v3737 = vpop.f32.mrf.mxu0
      %v3738 = vadd.f32 0.0, %v3737
      %v3739 = vpop.f32.mrf.mxu0
      %3740 = vmatprep.mubr.f32.mxu0 0.0
      %3741 = vmatmul.mubr.f32.gmra.mxu0 %v3576
      %v3742 = vpop.f32.mrf.mxu0
      %v3743 = vadd.f32 0.0, %v3742
      %v3744 = vpop.f32.mrf.mxu0
      %3745 = vmatprep.mubr.f32.mxu0 0.0
      %3746 = vmatmul.mubr.f32.gmra.mxu0 %v3579
      %v3747 = vpop.f32.mrf.mxu0
      %v3748 = vadd.f32 0.0, %v3747
      %v3749 = vpop.f32.mrf.mxu0
      %3750 = vmatprep.mubr.f32.mxu0 0.0
      %3751 = vmatmul.mubr.f32.gmra.mxu0 %v3582
      %v3752 = vpop.f32.mrf.mxu0
      %v3753 = vadd.f32 0.0, %v3752
      %v3754 = vpop.f32.mrf.mxu0
      %3755 = vmatprep.mubr.f32.mxu0 0.0
      %3756 = vmatmul.mubr.f32.gmra.mxu0 %v3585
      %v3757 = vpop.f32.mrf.mxu0
      %v3758 = vadd.f32 0.0, %v3757
      %v3759 = vpop.f32.mrf.mxu0
      %3760 = vmatprep.mubr.f32.mxu0 0.0
      %3761 = vmatmul.mubr.f32.gmra.mxu0 %v3588
      %v3762 = vpop.f32.mrf.mxu0
      %v3763 = vadd.f32 0.0, %v3762
      %v3764 = vpop.f32.mrf.mxu0
      %3765 = vmatprep.mubr.f32.mxu0 0.0
      %3766 = vmatmul.mubr.f32.gmra.mxu0 %v3591
      %v3767 = vpop.f32.mrf.mxu0
      %v3768 = vadd.f32 0.0, %v3767
      %v3769 = vpop.f32.mrf.mxu0
      %3770 = vmatprep.mubr.f32.mxu0 0.0
      %3771 = vmatmul.mubr.f32.gmra.mxu0 %v3594
      %v3772 = vpop.f32.mrf.mxu0
      %v3773 = vadd.f32 0.0, %v3772
      %v3774 = vpop.f32.mrf.mxu0
      %3775 = vmatprep.mubr.f32.mxu0 0.0
      %3776 = vmatmul.mubr.f32.gmra.mxu0 %v3597
      %v3777 = vpop.f32.mrf.mxu0
      %v3778 = vadd.f32 0.0, %v3777
      %v3779 = vpop.f32.mrf.mxu0
      %3780 = vmatprep.mubr.f32.mxu0 0.0
      %3781 = vmatmul.mubr.f32.gmra.mxu0 %v3600
      %v3782 = vpop.f32.mrf.mxu0
      %v3783 = vadd.f32 0.0, %v3782
      %v3784 = vpop.f32.mrf.mxu0
      %3785 = vmatprep.mubr.f32.mxu0 0.0
      %3786 = vmatmul.mubr.f32.gmra.mxu0 %v3603
      %v3787 = vpop.f32.mrf.mxu0
      %v3788 = vadd.f32 0.0, %v3787
      %v3789 = vpop.f32.mrf.mxu0
      %3790 = vmatprep.mubr.f32.mxu0 0.0
      %3791 = vmatmul.mubr.f32.gmra.mxu0 %v3606
      %v3792 = vpop.f32.mrf.mxu0
      %v3793 = vadd.f32 0.0, %v3792
      %v3794 = vpop.f32.mrf.mxu0
      %3795 = vmatprep.mubr.f32.mxu0 0.0
      %3796 = vmatmul.mubr.f32.gmra.mxu0 %v3609
      %v3797 = vpop.f32.mrf.mxu0
      %v3798 = vadd.f32 0.0, %v3797
      %v3799 = vpop.f32.mrf.mxu0
      %3800 = vmatprep.mubr.f32.mxu0 0.0
      %3801 = vmatmul.mubr.f32.gmra.mxu0 %v3612
      %v3802 = vpop.f32.mrf.mxu0
      %v3803 = vadd.f32 0.0, %v3802
      %v3804 = vpop.f32.mrf.mxu0
      %3805 = vmatprep.mubr.f32.mxu0 0.0
      %3806 = vmatmul.mubr.f32.gmra.mxu0 %v3615
      %v3807 = vpop.f32.mrf.mxu0
      %v3808 = vadd.f32 0.0, %v3807
      %v3809 = vpop.f32.mrf.mxu0
      %3810 = vmatprep.mubr.f32.mxu0 0.0
      %3811 = vmatmul.mubr.f32.gmra.mxu0 %v3618
      %v3812 = vpop.f32.mrf.mxu0
      %v3813 = vadd.f32 0.0, %v3812
      %v3814 = vpop.f32.mrf.mxu0
      %3815 = vmatprep.mubr.f32.mxu0 0.0
      %3816 = vmatmul.mubr.f32.gmra.mxu0 %v3621
      %v3817 = vpop.f32.mrf.mxu0
      %v3818 = vadd.f32 0.0, %v3817
      %v3819 = vpop.f32.mrf.mxu0
      %3820 = vmatprep.mubr.f32.mxu0 0.0
      %3821 = vmatmul.mubr.f32.gmra.mxu0 %v3624
      %v3822 = vpop.f32.mrf.mxu0
      %v3823 = vadd.f32 0.0, %v3822
      %v3824 = vpop.f32.mrf.mxu0
      %3825 = vmatprep.mubr.f32.mxu0 0.0
      %3826 = vmatmul.mubr.f32.gmra.mxu0 %v3627
      %v3827 = vpop.f32.mrf.mxu0
      %v3828 = vadd.f32 0.0, %v3827
      %v3829 = vpop.f32.mrf.mxu0
      %3830 = vmatprep.mubr.f32.mxu0 0.0
      %3831 = vmatmul.mubr.f32.gmra.mxu0 %v3630
      %v3832 = vpop.f32.mrf.mxu0
      %v3833 = vadd.f32 0.0, %v3832
      %v3834 = vpop.f32.mrf.mxu0
      %3835 = vmatprep.mubr.f32.mxu0 0.0
      %3836 = vmatmul.mubr.f32.gmra.mxu0 %v3633
      %v3837 = vpop.f32.mrf.mxu0
      %v3838 = vadd.f32 0.0, %v3837
      %v3839 = vpop.f32.mrf.mxu0
      %3840 = vmatprep.mubr.f32.mxu0 0.0
      %3841 = vmatmul.mubr.f32.gmra.mxu0 %v3636
      %v3842 = vpop.f32.mrf.mxu0
      %v3843 = vadd.f32 0.0, %v3842
      %v3844 = vpop.f32.mrf.mxu0
      %3845 = vmatprep.mubr.f32.mxu0 0.0
      %3846 = vmatmul.mubr.f32.gmra.mxu0 %v3639
      %v3847 = vpop.f32.mrf.mxu0
      %v3848 = vadd.f32 0.0, %v3847
      %v3849 = vpop.f32.mrf.mxu0
      %3850 = vmatprep.mubr.f32.mxu0 0.0
      %3851 = vmatmul.mubr.f32.gmra.mxu0 %v3642
      %v3852 = vpop.f32.mrf.mxu0
      %v3853 = vadd.f32 0.0, %v3852
      %v3854 = vpop.f32.mrf.mxu0
      %3855 = vmatprep.mubr.f32.mxu0 0.0
      %3856 = vmatmul.mubr.f32.gmra.mxu0 %v3645
      %v3857 = vpop.f32.mrf.mxu0
      %v3858 = vadd.f32 0.0, %v3857
      %v3859 = vpop.f32.mrf.mxu0
      %3860 = vmatprep.mubr.f32.mxu0 0.0
      %3861 = vmatmul.mubr.f32.gmra.mxu0 %v3648
      %v3862 = vpop.f32.mrf.mxu0
      %v3863 = vadd.f32 0.0, %v3862
      %v3864 = vpop.f32.mrf.mxu0
      %3865 = vmatprep.mubr.f32.mxu0 0.0
      %3866 = vmatmul.mubr.f32.gmra.mxu0 %v3651
      %v3867 = vpop.f32.mrf.mxu0
      %v3868 = vadd.f32 0.0, %v3867
      %v3869 = vpop.f32.mrf.mxu0
      %3870 = vmatprep.mubr.f32.mxu0 0.0
      %3871 = vmatmul.mubr.f32.gmra.mxu0 %v3654
      %v3872 = vpop.f32.mrf.mxu0
      %v3873 = vadd.f32 0.0, %v3872
      %v3874 = vpop.f32.mrf.mxu0
      %3875 = vmatprep.mubr.f32.mxu0 0.0
      %3876 = vmatmul.mubr.f32.gmra.mxu0 %v3657
      %v3877 = vpop.f32.mrf.mxu0
      %v3878 = vadd.f32 0.0, %v3877
      %v3879 = vpop.f32.mrf.mxu0
      %3880 = vmatprep.mubr.f32.mxu0 0.0
      %3881 = vmatmul.mubr.f32.gmra.mxu0 %v3660
      %v3882 = vpop.f32.mrf.mxu0
      %v3883 = vadd.f32 0.0, %v3882
      %v3884 = vpop.f32.mrf.mxu0
      %3885 = vmatprep.mubr.f32.mxu0 0.0
      %3886 = vmatmul.mubr.f32.gmra.mxu0 %v3663
      %v3887 = vpop.f32.mrf.mxu0
      %v3888 = vadd.f32 0.0, %v3887
      %v3889 = vpop.f32.mrf.mxu0
      %3890 = vmatprep.mubr.f32.mxu0 0.0
      %3891 = vmatmul.mubr.f32.gmra.mxu0 %v3666
      %v3892 = vpop.f32.mrf.mxu0
      %v3893 = vadd.f32 0.0, %v3892
      %v3894 = vpop.f32.mrf.mxu0
      %3895 = vdwg.mxu0
      %v3896 = vadd.f32 %v3377, %v3738
      %v3897 = vadd.f32 %v3382, %v3743
      %v3898 = vadd.f32 %v3387, %v3748
      %v3899 = vadd.f32 %v3392, %v3753
      %v3900 = vadd.f32 %v3397, %v3758
      %v3901 = vadd.f32 %v3402, %v3763
      %v3902 = vadd.f32 %v3407, %v3768
      %v3903 = vadd.f32 %v3412, %v3773
      %v3904 = vadd.f32 %v3417, %v3778
      %v3905 = vadd.f32 %v3422, %v3783
      %v3906 = vadd.f32 %v3427, %v3788
      %v3907 = vadd.f32 %v3432, %v3793
      %v3908 = vadd.f32 %v3437, %v3798
      %v3909 = vadd.f32 %v3442, %v3803
      %v3910 = vadd.f32 %v3447, %v3808
      %v3911 = vadd.f32 %v3452, %v3813
      %v3912 = vadd.f32 %v3457, %v3818
      %v3913 = vadd.f32 %v3462, %v3823
      %v3914 = vadd.f32 %v3467, %v3828
      %v3915 = vadd.f32 %v3472, %v3833
      %v3916 = vadd.f32 %v3477, %v3838
      %v3917 = vadd.f32 %v3482, %v3843
      %v3918 = vadd.f32 %v3487, %v3848
      %v3919 = vadd.f32 %v3492, %v3853
      %v3920 = vadd.f32 %v3497, %v3858
      %v3921 = vadd.f32 %v3502, %v3863
      %v3922 = vadd.f32 %v3507, %v3868
      %v3923 = vadd.f32 %v3512, %v3873
      %v3924 = vadd.f32 %v3517, %v3878
      %v3925 = vadd.f32 %v3522, %v3883
      %v3926 = vadd.f32 %v3527, %v3888
      %v3927 = vadd.f32 %v3532, %v3893
      %s3928 = scalar_lea.vmem %s1, 44
      %v3929 = vld [vmem:[%s3928] sm:$0xf]
      %v3930 = vld [vmem:[%s3539 + $0x1] sm:$0xff]
      %v3931 = vld [vmem:[%s3539 + $0x9] sm:$0xff]
      %v3932 = vld [vmem:[%s3539 + $0x19] sm:$0xff]
      %v3933 = vld [vmem:[%s3539 + $0x21] sm:$0xff]
      %v3934 = vld [vmem:[%s3539 + $0x31] sm:$0xff]
      %v3935 = vld [vmem:[%s3539 + $0x39] sm:$0xff]
      %v3936 = vld [vmem:[%s3539 + $0x49] sm:$0xff]
      %v3937 = vld [vmem:[%s3539 + $0x51] sm:$0xff]
      %v3938 = vld [vmem:[%s3539 + $0x61] sm:$0xff]
      %v3939 = vld [vmem:[%s3539 + $0x69] sm:$0xff]
      %v3940 = vld [vmem:[%s3539 + $0x79] sm:$0xff]
      %v3941 = vld [vmem:[%s3539 + $0x81] sm:$0xff]
      %v3942 = vld [vmem:[%s3539 + $0x91] sm:$0xff]
      %v3943 = vld [vmem:[%s3539 + $0x99] sm:$0xff]
      %v3944 = vld [vmem:[%s3539 + $0xa9] sm:$0xff]
      %v3945 = vld [vmem:[%s3539 + $0xb1] sm:$0xff]
      %v3946 = vld [vmem:[%s3539 + $0xc1] sm:$0xff]
      %v3947 = vld [vmem:[%s3539 + $0xc9] sm:$0xff]
      %v3948 = vld [vmem:[%s3539 + $0xd9] sm:$0xff]
      %v3949 = vld [vmem:[%s3539 + $0xe1] sm:$0xff]
      %v3950 = vld [vmem:[%s3539 + $0xf1] sm:$0xff]
      %v3951 = vld [vmem:[%s3539 + $0xf9] sm:$0xff]
      %v3952 = vld [vmem:[%s3539 + $0x109] sm:$0xff]
      %v3953 = vld [vmem:[%s3539 + $0x111] sm:$0xff]
      %v3954 = vld [vmem:[%s3539 + $0x121] sm:$0xff]
      %v3955 = vld [vmem:[%s3539 + $0x129] sm:$0xff]
      %v3956 = vld [vmem:[%s3539 + $0x139] sm:$0xff]
      %v3957 = vld [vmem:[%s3539 + $0x141] sm:$0xff]
      %v3958 = vld [vmem:[%s3539 + $0x151] sm:$0xff]
      %v3959 = vld [vmem:[%s3539 + $0x159] sm:$0xff]
      %v3960 = vld [vmem:[%s3539 + $0x169] sm:$0xff]
      %v3961 = vld [vmem:[%s3539 + $0x171] sm:$0xff]
      %v3963 = vsel %vm267, %v3930, 0
      %v3966 = vsel %vm267, %v3931, 0
      %v3969 = vsel %vm267, %v3932, 0
      %v3972 = vsel %vm267, %v3933, 0
      %v3975 = vsel %vm267, %v3934, 0
      %v3978 = vsel %vm267, %v3935, 0
      %v3981 = vsel %vm267, %v3936, 0
      %v3984 = vsel %vm267, %v3937, 0
      %v3987 = vsel %vm267, %v3938, 0
      %v3990 = vsel %vm267, %v3939, 0
      %v3993 = vsel %vm267, %v3940, 0
      %v3996 = vsel %vm267, %v3941, 0
      %v3999 = vsel %vm267, %v3942, 0
      %v4002 = vsel %vm267, %v3943, 0
      %v4005 = vsel %vm267, %v3944, 0
      %v4008 = vsel %vm267, %v3945, 0
      %v4011 = vsel %vm267, %v3946, 0
      %v4014 = vsel %vm267, %v3947, 0
      %v4017 = vsel %vm267, %v3948, 0
      %v4020 = vsel %vm267, %v3949, 0
      %v4023 = vsel %vm267, %v3950, 0
      %v4026 = vsel %vm267, %v3951, 0
      %v4029 = vsel %vm267, %v3952, 0
      %v4032 = vsel %vm267, %v3953, 0
      %v4035 = vsel %vm267, %v3954, 0
      %v4038 = vsel %vm267, %v3955, 0
      %v4041 = vsel %vm267, %v3956, 0
      %v4044 = vsel %vm267, %v3957, 0
      %v4047 = vsel %vm267, %v3958, 0
      %v4050 = vsel %vm267, %v3959, 0
      %v4053 = vsel %vm267, %v3960, 0
      %v4056 = vsel %vm267, %v3961, 0
      %v4059 = vsel %vm364, %v3929, 0
      %4061 = vmatprep.subr.mxu0 0.0
      %4062 = vmatpush1.msra.mxu0 0.0
      %4063 = vmatprep.subr.mxu0 0.0
      %4064 = vmatpush1.msra.mxu0 0.0
      %4065 = vmatprep.subr.mxu0 0.0
      %4066 = vmatpush1.msra.mxu0 0.0
      %4067 = vmatprep.subr.mxu0 0.0
      %4068 = vmatpush1.msra.mxu0 0.0
      %4069 = vmatprep.subr.mxu0 0.0
      %4070 = vmatpush1.msra.mxu0 0.0
      %4071 = vmatprep.subr.mxu0 0.0
      %4072 = vmatpush1.msra.mxu0 0.0
      %4073 = vmatprep.subr.mxu0 0.0
      %4074 = vmatpush1.msra.mxu0 0.0
      %4075 = vmatprep.subr.mxu0 0.0
      %4076 = vmatpush1.msra.mxu0 0.0
      %4077 = vmatprep.subr.mxu0 0.0
      %4078 = vmatpush1.msra.mxu0 0.0
      %4079 = vmatprep.subr.mxu0 0.0
      %4080 = vmatpush1.msra.mxu0 0.0
      %4081 = vmatprep.subr.mxu0 0.0
      %4082 = vmatpush1.msra.mxu0 0.0
      %4083 = vmatprep.subr.mxu0 0.0
      %4084 = vmatpush1.msra.mxu0 0.0
      %4085 = vmatprep.subr.mxu0 0.0
      %4086 = vmatpush1.msra.mxu0 0.0
      %4087 = vmatprep.subr.mxu0 0.0
      %4088 = vmatpush1.msra.mxu0 0.0
      %4089 = vmatprep.subr.mxu0 0.0
      %4090 = vmatpush1.msra.mxu0 0.0
      %4091 = vmatprep.subr.mxu0 0.0
      %4092 = vmatpush1.msra.mxu0 %v4059
      %4093 = vmatprep.subr.mxu0 0.0
      %4094 = vmatpush2.msra.mxu0 0.0
      %4095 = vmatprep.subr.mxu0 0.0
      %4096 = vmatpush2.msra.mxu0 0.0
      %4097 = vmatprep.subr.mxu0 0.0
      %4098 = vmatpush2.msra.mxu0 0.0
      %4099 = vmatprep.subr.mxu0 0.0
      %4100 = vmatpush2.msra.mxu0 0.0
      %4101 = vmatprep.subr.mxu0 0.0
      %4102 = vmatpush2.msra.mxu0 0.0
      %4103 = vmatprep.subr.mxu0 0.0
      %4104 = vmatpush2.msra.mxu0 0.0
      %4105 = vmatprep.subr.mxu0 0.0
      %4106 = vmatpush2.msra.mxu0 0.0
      %4107 = vmatprep.subr.mxu0 0.0
      %4108 = vmatpush2.msra.mxu0 0.0
      %4109 = vmatprep.subr.mxu0 0.0
      %4110 = vmatpush2.msra.mxu0 0.0
      %4111 = vmatprep.subr.mxu0 0.0
      %4112 = vmatpush2.msra.mxu0 0.0
      %4113 = vmatprep.subr.mxu0 0.0
      %4114 = vmatpush2.msra.mxu0 0.0
      %4115 = vmatprep.subr.mxu0 0.0
      %4116 = vmatpush2.msra.mxu0 0.0
      %4117 = vmatprep.subr.mxu0 0.0
      %4118 = vmatpush2.msra.mxu0 0.0
      %4119 = vmatprep.subr.mxu0 0.0
      %4120 = vmatpush2.msra.mxu0 0.0
      %4121 = vmatprep.subr.mxu0 0.0
      %4122 = vmatpush2.msra.mxu0 0.0
      %4123 = vmatprep.subr.mxu0 0.0
      %4124 = vmatpush2.msra.mxu0 0.0
      %4125 = vmatprep.mubr.f32.mxu0 0.0
      %4126 = vmatmul.mubr.f32.gmra.mxu0 %v3963
      %v4127 = vpop.f32.mrf.mxu0
      %v4128 = vadd.f32 0.0, %v4127
      %v4129 = vpop.f32.mrf.mxu0
      %4130 = vmatprep.mubr.f32.mxu0 0.0
      %4131 = vmatmul.mubr.f32.gmra.mxu0 %v3966
      %v4132 = vpop.f32.mrf.mxu0
      %v4133 = vadd.f32 0.0, %v4132
      %v4134 = vpop.f32.mrf.mxu0
      %4135 = vmatprep.mubr.f32.mxu0 0.0
      %4136 = vmatmul.mubr.f32.gmra.mxu0 %v3969
      %v4137 = vpop.f32.mrf.mxu0
      %v4138 = vadd.f32 0.0, %v4137
      %v4139 = vpop.f32.mrf.mxu0
      %4140 = vmatprep.mubr.f32.mxu0 0.0
      %4141 = vmatmul.mubr.f32.gmra.mxu0 %v3972
      %v4142 = vpop.f32.mrf.mxu0
      %v4143 = vadd.f32 0.0, %v4142
      %v4144 = vpop.f32.mrf.mxu0
      %4145 = vmatprep.mubr.f32.mxu0 0.0
      %4146 = vmatmul.mubr.f32.gmra.mxu0 %v3975
      %v4147 = vpop.f32.mrf.mxu0
      %v4148 = vadd.f32 0.0, %v4147
      %v4149 = vpop.f32.mrf.mxu0
      %4150 = vmatprep.mubr.f32.mxu0 0.0
      %4151 = vmatmul.mubr.f32.gmra.mxu0 %v3978
      %v4152 = vpop.f32.mrf.mxu0
      %v4153 = vadd.f32 0.0, %v4152
      %v4154 = vpop.f32.mrf.mxu0
      %4155 = vmatprep.mubr.f32.mxu0 0.0
      %4156 = vmatmul.mubr.f32.gmra.mxu0 %v3981
      %v4157 = vpop.f32.mrf.mxu0
      %v4158 = vadd.f32 0.0, %v4157
      %v4159 = vpop.f32.mrf.mxu0
      %4160 = vmatprep.mubr.f32.mxu0 0.0
      %4161 = vmatmul.mubr.f32.gmra.mxu0 %v3984
      %v4162 = vpop.f32.mrf.mxu0
      %v4163 = vadd.f32 0.0, %v4162
      %v4164 = vpop.f32.mrf.mxu0
      %4165 = vmatprep.mubr.f32.mxu0 0.0
      %4166 = vmatmul.mubr.f32.gmra.mxu0 %v3987
      %v4167 = vpop.f32.mrf.mxu0
      %v4168 = vadd.f32 0.0, %v4167
      %v4169 = vpop.f32.mrf.mxu0
      %4170 = vmatprep.mubr.f32.mxu0 0.0
      %4171 = vmatmul.mubr.f32.gmra.mxu0 %v3990
      %v4172 = vpop.f32.mrf.mxu0
      %v4173 = vadd.f32 0.0, %v4172
      %v4174 = vpop.f32.mrf.mxu0
      %4175 = vmatprep.mubr.f32.mxu0 0.0
      %4176 = vmatmul.mubr.f32.gmra.mxu0 %v3993
      %v4177 = vpop.f32.mrf.mxu0
      %v4178 = vadd.f32 0.0, %v4177
      %v4179 = vpop.f32.mrf.mxu0
      %4180 = vmatprep.mubr.f32.mxu0 0.0
      %4181 = vmatmul.mubr.f32.gmra.mxu0 %v3996
      %v4182 = vpop.f32.mrf.mxu0
      %v4183 = vadd.f32 0.0, %v4182
      %v4184 = vpop.f32.mrf.mxu0
      %4185 = vmatprep.mubr.f32.mxu0 0.0
      %4186 = vmatmul.mubr.f32.gmra.mxu0 %v3999
      %v4187 = vpop.f32.mrf.mxu0
      %v4188 = vadd.f32 0.0, %v4187
      %v4189 = vpop.f32.mrf.mxu0
      %4190 = vmatprep.mubr.f32.mxu0 0.0
      %4191 = vmatmul.mubr.f32.gmra.mxu0 %v4002
      %v4192 = vpop.f32.mrf.mxu0
      %v4193 = vadd.f32 0.0, %v4192
      %v4194 = vpop.f32.mrf.mxu0
      %4195 = vmatprep.mubr.f32.mxu0 0.0
      %4196 = vmatmul.mubr.f32.gmra.mxu0 %v4005
      %v4197 = vpop.f32.mrf.mxu0
      %v4198 = vadd.f32 0.0, %v4197
      %v4199 = vpop.f32.mrf.mxu0
      %4200 = vmatprep.mubr.f32.mxu0 0.0
      %4201 = vmatmul.mubr.f32.gmra.mxu0 %v4008
      %v4202 = vpop.f32.mrf.mxu0
      %v4203 = vadd.f32 0.0, %v4202
      %v4204 = vpop.f32.mrf.mxu0
      %4205 = vmatprep.mubr.f32.mxu0 0.0
      %4206 = vmatmul.mubr.f32.gmra.mxu0 %v4011
      %v4207 = vpop.f32.mrf.mxu0
      %v4208 = vadd.f32 0.0, %v4207
      %v4209 = vpop.f32.mrf.mxu0
      %4210 = vmatprep.mubr.f32.mxu0 0.0
      %4211 = vmatmul.mubr.f32.gmra.mxu0 %v4014
      %v4212 = vpop.f32.mrf.mxu0
      %v4213 = vadd.f32 0.0, %v4212
      %v4214 = vpop.f32.mrf.mxu0
      %4215 = vmatprep.mubr.f32.mxu0 0.0
      %4216 = vmatmul.mubr.f32.gmra.mxu0 %v4017
      %v4217 = vpop.f32.mrf.mxu0
      %v4218 = vadd.f32 0.0, %v4217
      %v4219 = vpop.f32.mrf.mxu0
      %4220 = vmatprep.mubr.f32.mxu0 0.0
      %4221 = vmatmul.mubr.f32.gmra.mxu0 %v4020
      %v4222 = vpop.f32.mrf.mxu0
      %v4223 = vadd.f32 0.0, %v4222
      %v4224 = vpop.f32.mrf.mxu0
      %4225 = vmatprep.mubr.f32.mxu0 0.0
      %4226 = vmatmul.mubr.f32.gmra.mxu0 %v4023
      %v4227 = vpop.f32.mrf.mxu0
      %v4228 = vadd.f32 0.0, %v4227
      %v4229 = vpop.f32.mrf.mxu0
      %4230 = vmatprep.mubr.f32.mxu0 0.0
      %4231 = vmatmul.mubr.f32.gmra.mxu0 %v4026
      %v4232 = vpop.f32.mrf.mxu0
      %v4233 = vadd.f32 0.0, %v4232
      %v4234 = vpop.f32.mrf.mxu0
      %4235 = vmatprep.mubr.f32.mxu0 0.0
      %4236 = vmatmul.mubr.f32.gmra.mxu0 %v4029
      %v4237 = vpop.f32.mrf.mxu0
      %v4238 = vadd.f32 0.0, %v4237
      %v4239 = vpop.f32.mrf.mxu0
      %4240 = vmatprep.mubr.f32.mxu0 0.0
      %4241 = vmatmul.mubr.f32.gmra.mxu0 %v4032
      %v4242 = vpop.f32.mrf.mxu0
      %v4243 = vadd.f32 0.0, %v4242
      %v4244 = vpop.f32.mrf.mxu0
      %4245 = vmatprep.mubr.f32.mxu0 0.0
      %4246 = vmatmul.mubr.f32.gmra.mxu0 %v4035
      %v4247 = vpop.f32.mrf.mxu0
      %v4248 = vadd.f32 0.0, %v4247
      %v4249 = vpop.f32.mrf.mxu0
      %4250 = vmatprep.mubr.f32.mxu0 0.0
      %4251 = vmatmul.mubr.f32.gmra.mxu0 %v4038
      %v4252 = vpop.f32.mrf.mxu0
      %v4253 = vadd.f32 0.0, %v4252
      %v4254 = vpop.f32.mrf.mxu0
      %4255 = vmatprep.mubr.f32.mxu0 0.0
      %4256 = vmatmul.mubr.f32.gmra.mxu0 %v4041
      %v4257 = vpop.f32.mrf.mxu0
      %v4258 = vadd.f32 0.0, %v4257
      %v4259 = vpop.f32.mrf.mxu0
      %4260 = vmatprep.mubr.f32.mxu0 0.0
      %4261 = vmatmul.mubr.f32.gmra.mxu0 %v4044
      %v4262 = vpop.f32.mrf.mxu0
      %v4263 = vadd.f32 0.0, %v4262
      %v4264 = vpop.f32.mrf.mxu0
      %4265 = vmatprep.mubr.f32.mxu0 0.0
      %4266 = vmatmul.mubr.f32.gmra.mxu0 %v4047
      %v4267 = vpop.f32.mrf.mxu0
      %v4268 = vadd.f32 0.0, %v4267
      %v4269 = vpop.f32.mrf.mxu0
      %4270 = vmatprep.mubr.f32.mxu0 0.0
      %4271 = vmatmul.mubr.f32.gmra.mxu0 %v4050
      %v4272 = vpop.f32.mrf.mxu0
      %v4273 = vadd.f32 0.0, %v4272
      %v4274 = vpop.f32.mrf.mxu0
      %4275 = vmatprep.mubr.f32.mxu0 0.0
      %4276 = vmatmul.mubr.f32.gmra.mxu0 %v4053
      %v4277 = vpop.f32.mrf.mxu0
      %v4278 = vadd.f32 0.0, %v4277
      %v4279 = vpop.f32.mrf.mxu0
      %4280 = vmatprep.mubr.f32.mxu0 0.0
      %4281 = vmatmul.mubr.f32.gmra.mxu0 %v4056
      %v4282 = vpop.f32.mrf.mxu0
      %v4283 = vadd.f32 0.0, %v4282
      %v4284 = vpop.f32.mrf.mxu0
      %4285 = vdwg.mxu0
      %v4286 = vadd.f32 %v3896, %v4128
      %v4287 = vadd.f32 %v3897, %v4133
      %v4288 = vadd.f32 %v3898, %v4138
      %v4289 = vadd.f32 %v3899, %v4143
      %v4290 = vadd.f32 %v3900, %v4148
      %v4291 = vadd.f32 %v3901, %v4153
      %v4292 = vadd.f32 %v3902, %v4158
      %v4293 = vadd.f32 %v3903, %v4163
      %v4294 = vadd.f32 %v3904, %v4168
      %v4295 = vadd.f32 %v3905, %v4173
      %v4296 = vadd.f32 %v3906, %v4178
      %v4297 = vadd.f32 %v3907, %v4183
      %v4298 = vadd.f32 %v3908, %v4188
      %v4299 = vadd.f32 %v3909, %v4193
      %v4300 = vadd.f32 %v3910, %v4198
      %v4301 = vadd.f32 %v3911, %v4203
      %v4302 = vadd.f32 %v3912, %v4208
      %v4303 = vadd.f32 %v3913, %v4213
      %v4304 = vadd.f32 %v3914, %v4218
      %v4305 = vadd.f32 %v3915, %v4223
      %v4306 = vadd.f32 %v3916, %v4228
      %v4307 = vadd.f32 %v3917, %v4233
      %v4308 = vadd.f32 %v3918, %v4238
      %v4309 = vadd.f32 %v3919, %v4243
      %v4310 = vadd.f32 %v3920, %v4248
      %v4311 = vadd.f32 %v3921, %v4253
      %v4312 = vadd.f32 %v3922, %v4258
      %v4313 = vadd.f32 %v3923, %v4263
      %v4314 = vadd.f32 %v3924, %v4268
      %v4315 = vadd.f32 %v3925, %v4273
      %v4316 = vadd.f32 %v3926, %v4278
      %v4317 = vadd.f32 %v3927, %v4283
      %v4318 = vadd.f32 %v4286, %v1704
      %v4319 = vadd.f32 %v4287, %v1704
      %v4320 = vadd.f32 %v4288, %v1704
      %v4321 = vadd.f32 %v4289, %v1704
      %v4322 = vadd.f32 %v4290, %v1704
      %v4323 = vadd.f32 %v4291, %v1704
      %v4324 = vadd.f32 %v4292, %v1704
      %v4325 = vadd.f32 %v4293, %v1704
      %v4326 = vadd.f32 %v4294, %v1704
      %v4327 = vadd.f32 %v4295, %v1704
      %v4328 = vadd.f32 %v4296, %v1704
      %v4329 = vadd.f32 %v4297, %v1704
      %v4330 = vadd.f32 %v4298, %v1704
      %v4331 = vadd.f32 %v4299, %v1704
      %v4332 = vadd.f32 %v4300, %v1704
      %v4333 = vadd.f32 %v4301, %v1704
      %v4334 = vadd.f32 %v4302, %v1704
      %v4335 = vadd.f32 %v4303, %v1704
      %v4336 = vadd.f32 %v4304, %v1704
      %v4337 = vadd.f32 %v4305, %v1704
      %v4338 = vadd.f32 %v4306, %v1704
      %v4339 = vadd.f32 %v4307, %v1704
      %v4340 = vadd.f32 %v4308, %v1704
      %v4341 = vadd.f32 %v4309, %v1704
      %v4342 = vadd.f32 %v4310, %v1704
      %v4343 = vadd.f32 %v4311, %v1704
      %v4344 = vadd.f32 %v4312, %v1704
      %v4345 = vadd.f32 %v4313, %v1704
      %v4346 = vadd.f32 %v4314, %v1704
      %v4347 = vadd.f32 %v4315, %v1704
      %v4348 = vadd.f32 %v4316, %v1704
      %v4349 = vadd.f32 %v4317, %v1704
      %s4350 = scalar_lea.vmem %s194, 512
      %4351 = vst.msk [vmem:[%s4350] sm:$0xff] %vm267, %v4318
      %4352 = vst.msk [vmem:[%s4350 + $0x8] sm:$0xff] %vm267, %v4319
      %4353 = vst.msk [vmem:[%s4350 + $0x10] sm:$0xff] %vm267, %v4320
      %4354 = vst.msk [vmem:[%s4350 + $0x18] sm:$0xff] %vm267, %v4321
      %4355 = vst.msk [vmem:[%s4350 + $0x20] sm:$0xff] %vm267, %v4322
      %4356 = vst.msk [vmem:[%s4350 + $0x28] sm:$0xff] %vm267, %v4323
      %4357 = vst.msk [vmem:[%s4350 + $0x30] sm:$0xff] %vm267, %v4324
      %4358 = vst.msk [vmem:[%s4350 + $0x38] sm:$0xff] %vm267, %v4325
      %4359 = vst.msk [vmem:[%s4350 + $0x40] sm:$0xff] %vm267, %v4326
      %4360 = vst.msk [vmem:[%s4350 + $0x48] sm:$0xff] %vm267, %v4327
      %4361 = vst.msk [vmem:[%s4350 + $0x50] sm:$0xff] %vm267, %v4328
      %4362 = vst.msk [vmem:[%s4350 + $0x58] sm:$0xff] %vm267, %v4329
      %4363 = vst.msk [vmem:[%s4350 + $0x60] sm:$0xff] %vm267, %v4330
      %4364 = vst.msk [vmem:[%s4350 + $0x68] sm:$0xff] %vm267, %v4331
      %4365 = vst.msk [vmem:[%s4350 + $0x70] sm:$0xff] %vm267, %v4332
      %4366 = vst.msk [vmem:[%s4350 + $0x78] sm:$0xff] %vm267, %v4333
      %4367 = vst.msk [vmem:[%s4350 + $0x80] sm:$0xff] %vm267, %v4334
      %4368 = vst.msk [vmem:[%s4350 + $0x88] sm:$0xff] %vm267, %v4335
      %4369 = vst.msk [vmem:[%s4350 + $0x90] sm:$0xff] %vm267, %v4336
      %4370 = vst.msk [vmem:[%s4350 + $0x98] sm:$0xff] %vm267, %v4337
      %4371 = vst.msk [vmem:[%s4350 + $0xa0] sm:$0xff] %vm267, %v4338
      %4372 = vst.msk [vmem:[%s4350 + $0xa8] sm:$0xff] %vm267, %v4339
      %4373 = vst.msk [vmem:[%s4350 + $0xb0] sm:$0xff] %vm267, %v4340
      %4374 = vst.msk [vmem:[%s4350 + $0xb8] sm:$0xff] %vm267, %v4341
      %4375 = vst.msk [vmem:[%s4350 + $0xc0] sm:$0xff] %vm267, %v4342
      %4376 = vst.msk [vmem:[%s4350 + $0xc8] sm:$0xff] %vm267, %v4343
      %4377 = vst.msk [vmem:[%s4350 + $0xd0] sm:$0xff] %vm267, %v4344
      %4378 = vst.msk [vmem:[%s4350 + $0xd8] sm:$0xff] %vm267, %v4345
      %4379 = vst.msk [vmem:[%s4350 + $0xe0] sm:$0xff] %vm267, %v4346
      %4380 = vst.msk [vmem:[%s4350 + $0xe8] sm:$0xff] %vm267, %v4347
      %4381 = vst.msk [vmem:[%s4350 + $0xf0] sm:$0xff] %vm267, %v4348
      %4382 = vst.msk [vmem:[%s4350 + $0xf8] sm:$0xff] %vm267, %v4349
      %s4383 = scalar_lea.vmem %s1, 48
      %v4384 = vld [vmem:[%s4383] sm:$0xf]
      %s4385 = scalar_lea.vmem %s1, 52
      %v4386 = vld [vmem:[%s4385] sm:$0xf]
      %v4388 = vsel %vm364, %v4386, 0
      %4390 = vmatprep.subr.mxu0 0.0
      %4391 = vmatpush1.msra.mxu0 0.0
      %4392 = vmatprep.subr.mxu0 0.0
      %4393 = vmatpush1.msra.mxu0 0.0
      %4394 = vmatprep.subr.mxu0 0.0
      %4395 = vmatpush1.msra.mxu0 0.0
      %4396 = vmatprep.subr.mxu0 0.0
      %4397 = vmatpush1.msra.mxu0 0.0
      %4398 = vmatprep.subr.mxu0 0.0
      %4399 = vmatpush1.msra.mxu0 0.0
      %4400 = vmatprep.subr.mxu0 0.0
      %4401 = vmatpush1.msra.mxu0 0.0
      %4402 = vmatprep.subr.mxu0 0.0
      %4403 = vmatpush1.msra.mxu0 0.0
      %4404 = vmatprep.subr.mxu0 0.0
      %4405 = vmatpush1.msra.mxu0 0.0
      %4406 = vmatprep.subr.mxu0 0.0
      %4407 = vmatpush1.msra.mxu0 0.0
      %4408 = vmatprep.subr.mxu0 0.0
      %4409 = vmatpush1.msra.mxu0 0.0
      %4410 = vmatprep.subr.mxu0 0.0
      %4411 = vmatpush1.msra.mxu0 0.0
      %4412 = vmatprep.subr.mxu0 0.0
      %4413 = vmatpush1.msra.mxu0 0.0
      %4414 = vmatprep.subr.mxu0 0.0
      %4415 = vmatpush1.msra.mxu0 0.0
      %4416 = vmatprep.subr.mxu0 0.0
      %4417 = vmatpush1.msra.mxu0 0.0
      %4418 = vmatprep.subr.mxu0 0.0
      %4419 = vmatpush1.msra.mxu0 0.0
      %4420 = vmatprep.subr.mxu0 0.0
      %4421 = vmatpush1.msra.mxu0 %v4388
      %4422 = vmatprep.subr.mxu0 0.0
      %4423 = vmatpush2.msra.mxu0 0.0
      %4424 = vmatprep.subr.mxu0 0.0
      %4425 = vmatpush2.msra.mxu0 0.0
      %4426 = vmatprep.subr.mxu0 0.0
      %4427 = vmatpush2.msra.mxu0 0.0
      %4428 = vmatprep.subr.mxu0 0.0
      %4429 = vmatpush2.msra.mxu0 0.0
      %4430 = vmatprep.subr.mxu0 0.0
      %4431 = vmatpush2.msra.mxu0 0.0
      %4432 = vmatprep.subr.mxu0 0.0
      %4433 = vmatpush2.msra.mxu0 0.0
      %4434 = vmatprep.subr.mxu0 0.0
      %4435 = vmatpush2.msra.mxu0 0.0
      %4436 = vmatprep.subr.mxu0 0.0
      %4437 = vmatpush2.msra.mxu0 0.0
      %4438 = vmatprep.subr.mxu0 0.0
      %4439 = vmatpush2.msra.mxu0 0.0
      %4440 = vmatprep.subr.mxu0 0.0
      %4441 = vmatpush2.msra.mxu0 0.0
      %4442 = vmatprep.subr.mxu0 0.0
      %4443 = vmatpush2.msra.mxu0 0.0
      %4444 = vmatprep.subr.mxu0 0.0
      %4445 = vmatpush2.msra.mxu0 0.0
      %4446 = vmatprep.subr.mxu0 0.0
      %4447 = vmatpush2.msra.mxu0 0.0
      %4448 = vmatprep.subr.mxu0 0.0
      %4449 = vmatpush2.msra.mxu0 0.0
      %4450 = vmatprep.subr.mxu0 0.0
      %4451 = vmatpush2.msra.mxu0 0.0
      %4452 = vmatprep.subr.mxu0 0.0
      %4453 = vmatpush2.msra.mxu0 0.0
      %4454 = vmatprep.mubr.f32.mxu0 0.0
      %4455 = vmatmul.mubr.f32.gmra.mxu0 %v2655
      %v4456 = vpop.f32.mrf.mxu0
      %v4457 = vadd.f32 0.0, %v4456
      %v4458 = vpop.f32.mrf.mxu0
      %4459 = vmatprep.mubr.f32.mxu0 0.0
      %4460 = vmatmul.mubr.f32.gmra.mxu0 %v2658
      %v4461 = vpop.f32.mrf.mxu0
      %v4462 = vadd.f32 0.0, %v4461
      %v4463 = vpop.f32.mrf.mxu0
      %4464 = vmatprep.mubr.f32.mxu0 0.0
      %4465 = vmatmul.mubr.f32.gmra.mxu0 %v2661
      %v4466 = vpop.f32.mrf.mxu0
      %v4467 = vadd.f32 0.0, %v4466
      %v4468 = vpop.f32.mrf.mxu0
      %4469 = vmatprep.mubr.f32.mxu0 0.0
      %4470 = vmatmul.mubr.f32.gmra.mxu0 %v2664
      %v4471 = vpop.f32.mrf.mxu0
      %v4472 = vadd.f32 0.0, %v4471
      %v4473 = vpop.f32.mrf.mxu0
      %4474 = vmatprep.mubr.f32.mxu0 0.0
      %4475 = vmatmul.mubr.f32.gmra.mxu0 %v2667
      %v4476 = vpop.f32.mrf.mxu0
      %v4477 = vadd.f32 0.0, %v4476
      %v4478 = vpop.f32.mrf.mxu0
      %4479 = vmatprep.mubr.f32.mxu0 0.0
      %4480 = vmatmul.mubr.f32.gmra.mxu0 %v2670
      %v4481 = vpop.f32.mrf.mxu0
      %v4482 = vadd.f32 0.0, %v4481
      %v4483 = vpop.f32.mrf.mxu0
      %4484 = vmatprep.mubr.f32.mxu0 0.0
      %4485 = vmatmul.mubr.f32.gmra.mxu0 %v2673
      %v4486 = vpop.f32.mrf.mxu0
      %v4487 = vadd.f32 0.0, %v4486
      %v4488 = vpop.f32.mrf.mxu0
      %4489 = vmatprep.mubr.f32.mxu0 0.0
      %4490 = vmatmul.mubr.f32.gmra.mxu0 %v2676
      %v4491 = vpop.f32.mrf.mxu0
      %v4492 = vadd.f32 0.0, %v4491
      %v4493 = vpop.f32.mrf.mxu0
      %4494 = vmatprep.mubr.f32.mxu0 0.0
      %4495 = vmatmul.mubr.f32.gmra.mxu0 %v2679
      %v4496 = vpop.f32.mrf.mxu0
      %v4497 = vadd.f32 0.0, %v4496
      %v4498 = vpop.f32.mrf.mxu0
      %4499 = vmatprep.mubr.f32.mxu0 0.0
      %4500 = vmatmul.mubr.f32.gmra.mxu0 %v2682
      %v4501 = vpop.f32.mrf.mxu0
      %v4502 = vadd.f32 0.0, %v4501
      %v4503 = vpop.f32.mrf.mxu0
      %4504 = vmatprep.mubr.f32.mxu0 0.0
      %4505 = vmatmul.mubr.f32.gmra.mxu0 %v2685
      %v4506 = vpop.f32.mrf.mxu0
      %v4507 = vadd.f32 0.0, %v4506
      %v4508 = vpop.f32.mrf.mxu0
      %4509 = vmatprep.mubr.f32.mxu0 0.0
      %4510 = vmatmul.mubr.f32.gmra.mxu0 %v2688
      %v4511 = vpop.f32.mrf.mxu0
      %v4512 = vadd.f32 0.0, %v4511
      %v4513 = vpop.f32.mrf.mxu0
      %4514 = vmatprep.mubr.f32.mxu0 0.0
      %4515 = vmatmul.mubr.f32.gmra.mxu0 %v2691
      %v4516 = vpop.f32.mrf.mxu0
      %v4517 = vadd.f32 0.0, %v4516
      %v4518 = vpop.f32.mrf.mxu0
      %4519 = vmatprep.mubr.f32.mxu0 0.0
      %4520 = vmatmul.mubr.f32.gmra.mxu0 %v2694
      %v4521 = vpop.f32.mrf.mxu0
      %v4522 = vadd.f32 0.0, %v4521
      %v4523 = vpop.f32.mrf.mxu0
      %4524 = vmatprep.mubr.f32.mxu0 0.0
      %4525 = vmatmul.mubr.f32.gmra.mxu0 %v2697
      %v4526 = vpop.f32.mrf.mxu0
      %v4527 = vadd.f32 0.0, %v4526
      %v4528 = vpop.f32.mrf.mxu0
      %4529 = vmatprep.mubr.f32.mxu0 0.0
      %4530 = vmatmul.mubr.f32.gmra.mxu0 %v2700
      %v4531 = vpop.f32.mrf.mxu0
      %v4532 = vadd.f32 0.0, %v4531
      %v4533 = vpop.f32.mrf.mxu0
      %4534 = vmatprep.mubr.f32.mxu0 0.0
      %4535 = vmatmul.mubr.f32.gmra.mxu0 %v2703
      %v4536 = vpop.f32.mrf.mxu0
      %v4537 = vadd.f32 0.0, %v4536
      %v4538 = vpop.f32.mrf.mxu0
      %4539 = vmatprep.mubr.f32.mxu0 0.0
      %4540 = vmatmul.mubr.f32.gmra.mxu0 %v2706
      %v4541 = vpop.f32.mrf.mxu0
      %v4542 = vadd.f32 0.0, %v4541
      %v4543 = vpop.f32.mrf.mxu0
      %4544 = vmatprep.mubr.f32.mxu0 0.0
      %4545 = vmatmul.mubr.f32.gmra.mxu0 %v2709
      %v4546 = vpop.f32.mrf.mxu0
      %v4547 = vadd.f32 0.0, %v4546
      %v4548 = vpop.f32.mrf.mxu0
      %4549 = vmatprep.mubr.f32.mxu0 0.0
      %4550 = vmatmul.mubr.f32.gmra.mxu0 %v2712
      %v4551 = vpop.f32.mrf.mxu0
      %v4552 = vadd.f32 0.0, %v4551
      %v4553 = vpop.f32.mrf.mxu0
      %4554 = vmatprep.mubr.f32.mxu0 0.0
      %4555 = vmatmul.mubr.f32.gmra.mxu0 %v2715
      %v4556 = vpop.f32.mrf.mxu0
      %v4557 = vadd.f32 0.0, %v4556
      %v4558 = vpop.f32.mrf.mxu0
      %4559 = vmatprep.mubr.f32.mxu0 0.0
      %4560 = vmatmul.mubr.f32.gmra.mxu0 %v2718
      %v4561 = vpop.f32.mrf.mxu0
      %v4562 = vadd.f32 0.0, %v4561
      %v4563 = vpop.f32.mrf.mxu0
      %4564 = vmatprep.mubr.f32.mxu0 0.0
      %4565 = vmatmul.mubr.f32.gmra.mxu0 %v2721
      %v4566 = vpop.f32.mrf.mxu0
      %v4567 = vadd.f32 0.0, %v4566
      %v4568 = vpop.f32.mrf.mxu0
      %4569 = vmatprep.mubr.f32.mxu0 0.0
      %4570 = vmatmul.mubr.f32.gmra.mxu0 %v2724
      %v4571 = vpop.f32.mrf.mxu0
      %v4572 = vadd.f32 0.0, %v4571
      %v4573 = vpop.f32.mrf.mxu0
      %4574 = vmatprep.mubr.f32.mxu0 0.0
      %4575 = vmatmul.mubr.f32.gmra.mxu0 %v2727
      %v4576 = vpop.f32.mrf.mxu0
      %v4577 = vadd.f32 0.0, %v4576
      %v4578 = vpop.f32.mrf.mxu0
      %4579 = vmatprep.mubr.f32.mxu0 0.0
      %4580 = vmatmul.mubr.f32.gmra.mxu0 %v2730
      %v4581 = vpop.f32.mrf.mxu0
      %v4582 = vadd.f32 0.0, %v4581
      %v4583 = vpop.f32.mrf.mxu0
      %4584 = vmatprep.mubr.f32.mxu0 0.0
      %4585 = vmatmul.mubr.f32.gmra.mxu0 %v2733
      %v4586 = vpop.f32.mrf.mxu0
      %v4587 = vadd.f32 0.0, %v4586
      %v4588 = vpop.f32.mrf.mxu0
      %4589 = vmatprep.mubr.f32.mxu0 0.0
      %4590 = vmatmul.mubr.f32.gmra.mxu0 %v2736
      %v4591 = vpop.f32.mrf.mxu0
      %v4592 = vadd.f32 0.0, %v4591
      %v4593 = vpop.f32.mrf.mxu0
      %4594 = vmatprep.mubr.f32.mxu0 0.0
      %4595 = vmatmul.mubr.f32.gmra.mxu0 %v2739
      %v4596 = vpop.f32.mrf.mxu0
      %v4597 = vadd.f32 0.0, %v4596
      %v4598 = vpop.f32.mrf.mxu0
      %4599 = vmatprep.mubr.f32.mxu0 0.0
      %4600 = vmatmul.mubr.f32.gmra.mxu0 %v2742
      %v4601 = vpop.f32.mrf.mxu0
      %v4602 = vadd.f32 0.0, %v4601
      %v4603 = vpop.f32.mrf.mxu0
      %4604 = vmatprep.mubr.f32.mxu0 0.0
      %4605 = vmatmul.mubr.f32.gmra.mxu0 %v2745
      %v4606 = vpop.f32.mrf.mxu0
      %v4607 = vadd.f32 0.0, %v4606
      %v4608 = vpop.f32.mrf.mxu0
      %4609 = vmatprep.mubr.f32.mxu0 0.0
      %4610 = vmatmul.mubr.f32.gmra.mxu0 %v2748
      %v4611 = vpop.f32.mrf.mxu0
      %v4612 = vadd.f32 0.0, %v4611
      %v4613 = vpop.f32.mrf.mxu0
      %4614 = vdwg.mxu0
      %v4616 = vsel %vm364, %v4384, 0
      %4618 = vmatprep.subr.mxu0 0.0
      %4619 = vmatpush1.msra.mxu0 0.0
      %4620 = vmatprep.subr.mxu0 0.0
      %4621 = vmatpush1.msra.mxu0 0.0
      %4622 = vmatprep.subr.mxu0 0.0
      %4623 = vmatpush1.msra.mxu0 0.0
      %4624 = vmatprep.subr.mxu0 0.0
      %4625 = vmatpush1.msra.mxu0 0.0
      %4626 = vmatprep.subr.mxu0 0.0
      %4627 = vmatpush1.msra.mxu0 0.0
      %4628 = vmatprep.subr.mxu0 0.0
      %4629 = vmatpush1.msra.mxu0 0.0
      %4630 = vmatprep.subr.mxu0 0.0
      %4631 = vmatpush1.msra.mxu0 0.0
      %4632 = vmatprep.subr.mxu0 0.0
      %4633 = vmatpush1.msra.mxu0 0.0
      %4634 = vmatprep.subr.mxu0 0.0
      %4635 = vmatpush1.msra.mxu0 0.0
      %4636 = vmatprep.subr.mxu0 0.0
      %4637 = vmatpush1.msra.mxu0 0.0
      %4638 = vmatprep.subr.mxu0 0.0
      %4639 = vmatpush1.msra.mxu0 0.0
      %4640 = vmatprep.subr.mxu0 0.0
      %4641 = vmatpush1.msra.mxu0 0.0
      %4642 = vmatprep.subr.mxu0 0.0
      %4643 = vmatpush1.msra.mxu0 0.0
      %4644 = vmatprep.subr.mxu0 0.0
      %4645 = vmatpush1.msra.mxu0 0.0
      %4646 = vmatprep.subr.mxu0 0.0
      %4647 = vmatpush1.msra.mxu0 0.0
      %4648 = vmatprep.subr.mxu0 0.0
      %4649 = vmatpush1.msra.mxu0 %v4616
      %4650 = vmatprep.subr.mxu0 0.0
      %4651 = vmatpush2.msra.mxu0 0.0
      %4652 = vmatprep.subr.mxu0 0.0
      %4653 = vmatpush2.msra.mxu0 0.0
      %4654 = vmatprep.subr.mxu0 0.0
      %4655 = vmatpush2.msra.mxu0 0.0
      %4656 = vmatprep.subr.mxu0 0.0
      %4657 = vmatpush2.msra.mxu0 0.0
      %4658 = vmatprep.subr.mxu0 0.0
      %4659 = vmatpush2.msra.mxu0 0.0
      %4660 = vmatprep.subr.mxu0 0.0
      %4661 = vmatpush2.msra.mxu0 0.0
      %4662 = vmatprep.subr.mxu0 0.0
      %4663 = vmatpush2.msra.mxu0 0.0
      %4664 = vmatprep.subr.mxu0 0.0
      %4665 = vmatpush2.msra.mxu0 0.0
      %4666 = vmatprep.subr.mxu0 0.0
      %4667 = vmatpush2.msra.mxu0 0.0
      %4668 = vmatprep.subr.mxu0 0.0
      %4669 = vmatpush2.msra.mxu0 0.0
      %4670 = vmatprep.subr.mxu0 0.0
      %4671 = vmatpush2.msra.mxu0 0.0
      %4672 = vmatprep.subr.mxu0 0.0
      %4673 = vmatpush2.msra.mxu0 0.0
      %4674 = vmatprep.subr.mxu0 0.0
      %4675 = vmatpush2.msra.mxu0 0.0
      %4676 = vmatprep.subr.mxu0 0.0
      %4677 = vmatpush2.msra.mxu0 0.0
      %4678 = vmatprep.subr.mxu0 0.0
      %4679 = vmatpush2.msra.mxu0 0.0
      %4680 = vmatprep.subr.mxu0 0.0
      %4681 = vmatpush2.msra.mxu0 0.0
      %4682 = vmatprep.mubr.f32.mxu0 0.0
      %4683 = vmatmul.mubr.f32.gmra.mxu0 %v1345
      %v4684 = vpop.f32.mrf.mxu0
      %v4685 = vadd.f32 %v4457, %v4684
      %v4686 = vpop.f32.mrf.mxu0
      %4687 = vmatprep.mubr.f32.mxu0 0.0
      %4688 = vmatmul.mubr.f32.gmra.mxu0 %v1348
      %v4689 = vpop.f32.mrf.mxu0
      %v4690 = vadd.f32 %v4462, %v4689
      %v4691 = vpop.f32.mrf.mxu0
      %4692 = vmatprep.mubr.f32.mxu0 0.0
      %4693 = vmatmul.mubr.f32.gmra.mxu0 %v1351
      %v4694 = vpop.f32.mrf.mxu0
      %v4695 = vadd.f32 %v4467, %v4694
      %v4696 = vpop.f32.mrf.mxu0
      %4697 = vmatprep.mubr.f32.mxu0 0.0
      %4698 = vmatmul.mubr.f32.gmra.mxu0 %v1354
      %v4699 = vpop.f32.mrf.mxu0
      %v4700 = vadd.f32 %v4472, %v4699
      %v4701 = vpop.f32.mrf.mxu0
      %4702 = vmatprep.mubr.f32.mxu0 0.0
      %4703 = vmatmul.mubr.f32.gmra.mxu0 %v1357
      %v4704 = vpop.f32.mrf.mxu0
      %v4705 = vadd.f32 %v4477, %v4704
      %v4706 = vpop.f32.mrf.mxu0
      %4707 = vmatprep.mubr.f32.mxu0 0.0
      %4708 = vmatmul.mubr.f32.gmra.mxu0 %v1360
      %v4709 = vpop.f32.mrf.mxu0
      %v4710 = vadd.f32 %v4482, %v4709
      %v4711 = vpop.f32.mrf.mxu0
      %4712 = vmatprep.mubr.f32.mxu0 0.0
      %4713 = vmatmul.mubr.f32.gmra.mxu0 %v1363
      %v4714 = vpop.f32.mrf.mxu0
      %v4715 = vadd.f32 %v4487, %v4714
      %v4716 = vpop.f32.mrf.mxu0
      %4717 = vmatprep.mubr.f32.mxu0 0.0
      %4718 = vmatmul.mubr.f32.gmra.mxu0 %v1366
      %v4719 = vpop.f32.mrf.mxu0
      %v4720 = vadd.f32 %v4492, %v4719
      %v4721 = vpop.f32.mrf.mxu0
      %4722 = vmatprep.mubr.f32.mxu0 0.0
      %4723 = vmatmul.mubr.f32.gmra.mxu0 %v1369
      %v4724 = vpop.f32.mrf.mxu0
      %v4725 = vadd.f32 %v4497, %v4724
      %v4726 = vpop.f32.mrf.mxu0
      %4727 = vmatprep.mubr.f32.mxu0 0.0
      %4728 = vmatmul.mubr.f32.gmra.mxu0 %v1372
      %v4729 = vpop.f32.mrf.mxu0
      %v4730 = vadd.f32 %v4502, %v4729
      %v4731 = vpop.f32.mrf.mxu0
      %4732 = vmatprep.mubr.f32.mxu0 0.0
      %4733 = vmatmul.mubr.f32.gmra.mxu0 %v1375
      %v4734 = vpop.f32.mrf.mxu0
      %v4735 = vadd.f32 %v4507, %v4734
      %v4736 = vpop.f32.mrf.mxu0
      %4737 = vmatprep.mubr.f32.mxu0 0.0
      %4738 = vmatmul.mubr.f32.gmra.mxu0 %v1378
      %v4739 = vpop.f32.mrf.mxu0
      %v4740 = vadd.f32 %v4512, %v4739
      %v4741 = vpop.f32.mrf.mxu0
      %4742 = vmatprep.mubr.f32.mxu0 0.0
      %4743 = vmatmul.mubr.f32.gmra.mxu0 %v1381
      %v4744 = vpop.f32.mrf.mxu0
      %v4745 = vadd.f32 %v4517, %v4744
      %v4746 = vpop.f32.mrf.mxu0
      %4747 = vmatprep.mubr.f32.mxu0 0.0
      %4748 = vmatmul.mubr.f32.gmra.mxu0 %v1384
      %v4749 = vpop.f32.mrf.mxu0
      %v4750 = vadd.f32 %v4522, %v4749
      %v4751 = vpop.f32.mrf.mxu0
      %4752 = vmatprep.mubr.f32.mxu0 0.0
      %4753 = vmatmul.mubr.f32.gmra.mxu0 %v1387
      %v4754 = vpop.f32.mrf.mxu0
      %v4755 = vadd.f32 %v4527, %v4754
      %v4756 = vpop.f32.mrf.mxu0
      %4757 = vmatprep.mubr.f32.mxu0 0.0
      %4758 = vmatmul.mubr.f32.gmra.mxu0 %v1390
      %v4759 = vpop.f32.mrf.mxu0
      %v4760 = vadd.f32 %v4532, %v4759
      %v4761 = vpop.f32.mrf.mxu0
      %4762 = vmatprep.mubr.f32.mxu0 0.0
      %4763 = vmatmul.mubr.f32.gmra.mxu0 %v1393
      %v4764 = vpop.f32.mrf.mxu0
      %v4765 = vadd.f32 %v4537, %v4764
      %v4766 = vpop.f32.mrf.mxu0
      %4767 = vmatprep.mubr.f32.mxu0 0.0
      %4768 = vmatmul.mubr.f32.gmra.mxu0 %v1396
      %v4769 = vpop.f32.mrf.mxu0
      %v4770 = vadd.f32 %v4542, %v4769
      %v4771 = vpop.f32.mrf.mxu0
      %4772 = vmatprep.mubr.f32.mxu0 0.0
      %4773 = vmatmul.mubr.f32.gmra.mxu0 %v1399
      %v4774 = vpop.f32.mrf.mxu0
      %v4775 = vadd.f32 %v4547, %v4774
      %v4776 = vpop.f32.mrf.mxu0
      %4777 = vmatprep.mubr.f32.mxu0 0.0
      %4778 = vmatmul.mubr.f32.gmra.mxu0 %v1402
      %v4779 = vpop.f32.mrf.mxu0
      %v4780 = vadd.f32 %v4552, %v4779
      %v4781 = vpop.f32.mrf.mxu0
      %4782 = vmatprep.mubr.f32.mxu0 0.0
      %4783 = vmatmul.mubr.f32.gmra.mxu0 %v1405
      %v4784 = vpop.f32.mrf.mxu0
      %v4785 = vadd.f32 %v4557, %v4784
      %v4786 = vpop.f32.mrf.mxu0
      %4787 = vmatprep.mubr.f32.mxu0 0.0
      %4788 = vmatmul.mubr.f32.gmra.mxu0 %v1408
      %v4789 = vpop.f32.mrf.mxu0
      %v4790 = vadd.f32 %v4562, %v4789
      %v4791 = vpop.f32.mrf.mxu0
      %4792 = vmatprep.mubr.f32.mxu0 0.0
      %4793 = vmatmul.mubr.f32.gmra.mxu0 %v1411
      %v4794 = vpop.f32.mrf.mxu0
      %v4795 = vadd.f32 %v4567, %v4794
      %v4796 = vpop.f32.mrf.mxu0
      %4797 = vmatprep.mubr.f32.mxu0 0.0
      %4798 = vmatmul.mubr.f32.gmra.mxu0 %v1414
      %v4799 = vpop.f32.mrf.mxu0
      %v4800 = vadd.f32 %v4572, %v4799
      %v4801 = vpop.f32.mrf.mxu0
      %4802 = vmatprep.mubr.f32.mxu0 0.0
      %4803 = vmatmul.mubr.f32.gmra.mxu0 %v1417
      %v4804 = vpop.f32.mrf.mxu0
      %v4805 = vadd.f32 %v4577, %v4804
      %v4806 = vpop.f32.mrf.mxu0
      %4807 = vmatprep.mubr.f32.mxu0 0.0
      %4808 = vmatmul.mubr.f32.gmra.mxu0 %v1420
      %v4809 = vpop.f32.mrf.mxu0
      %v4810 = vadd.f32 %v4582, %v4809
      %v4811 = vpop.f32.mrf.mxu0
      %4812 = vmatprep.mubr.f32.mxu0 0.0
      %4813 = vmatmul.mubr.f32.gmra.mxu0 %v1423
      %v4814 = vpop.f32.mrf.mxu0
      %v4815 = vadd.f32 %v4587, %v4814
      %v4816 = vpop.f32.mrf.mxu0
      %4817 = vmatprep.mubr.f32.mxu0 0.0
      %4818 = vmatmul.mubr.f32.gmra.mxu0 %v1426
      %v4819 = vpop.f32.mrf.mxu0
      %v4820 = vadd.f32 %v4592, %v4819
      %v4821 = vpop.f32.mrf.mxu0
      %4822 = vmatprep.mubr.f32.mxu0 0.0
      %4823 = vmatmul.mubr.f32.gmra.mxu0 %v1429
      %v4824 = vpop.f32.mrf.mxu0
      %v4825 = vadd.f32 %v4597, %v4824
      %v4826 = vpop.f32.mrf.mxu0
      %4827 = vmatprep.mubr.f32.mxu0 0.0
      %4828 = vmatmul.mubr.f32.gmra.mxu0 %v1432
      %v4829 = vpop.f32.mrf.mxu0
      %v4830 = vadd.f32 %v4602, %v4829
      %v4831 = vpop.f32.mrf.mxu0
      %4832 = vmatprep.mubr.f32.mxu0 0.0
      %4833 = vmatmul.mubr.f32.gmra.mxu0 %v1435
      %v4834 = vpop.f32.mrf.mxu0
      %v4835 = vadd.f32 %v4607, %v4834
      %v4836 = vpop.f32.mrf.mxu0
      %4837 = vmatprep.mubr.f32.mxu0 0.0
      %4838 = vmatmul.mubr.f32.gmra.mxu0 %v1438
      %v4839 = vpop.f32.mrf.mxu0
      %v4840 = vadd.f32 %v4612, %v4839
      %v4841 = vpop.f32.mrf.mxu0
      %4842 = vdwg.mxu0
      %s4843 = scalar_lea.vmem %s1, 56
      %v4844 = vld [vmem:[%s4843] sm:$0xf]
      %v4846 = vsel %vm364, %v4844, 0
      %4848 = vmatprep.subr.mxu0 0.0
      %4849 = vmatpush1.msra.mxu0 0.0
      %4850 = vmatprep.subr.mxu0 0.0
      %4851 = vmatpush1.msra.mxu0 0.0
      %4852 = vmatprep.subr.mxu0 0.0
      %4853 = vmatpush1.msra.mxu0 0.0
      %4854 = vmatprep.subr.mxu0 0.0
      %4855 = vmatpush1.msra.mxu0 0.0
      %4856 = vmatprep.subr.mxu0 0.0
      %4857 = vmatpush1.msra.mxu0 0.0
      %4858 = vmatprep.subr.mxu0 0.0
      %4859 = vmatpush1.msra.mxu0 0.0
      %4860 = vmatprep.subr.mxu0 0.0
      %4861 = vmatpush1.msra.mxu0 0.0
      %4862 = vmatprep.subr.mxu0 0.0
      %4863 = vmatpush1.msra.mxu0 0.0
      %4864 = vmatprep.subr.mxu0 0.0
      %4865 = vmatpush1.msra.mxu0 0.0
      %4866 = vmatprep.subr.mxu0 0.0
      %4867 = vmatpush1.msra.mxu0 0.0
      %4868 = vmatprep.subr.mxu0 0.0
      %4869 = vmatpush1.msra.mxu0 0.0
      %4870 = vmatprep.subr.mxu0 0.0
      %4871 = vmatpush1.msra.mxu0 0.0
      %4872 = vmatprep.subr.mxu0 0.0
      %4873 = vmatpush1.msra.mxu0 0.0
      %4874 = vmatprep.subr.mxu0 0.0
      %4875 = vmatpush1.msra.mxu0 0.0
      %4876 = vmatprep.subr.mxu0 0.0
      %4877 = vmatpush1.msra.mxu0 0.0
      %4878 = vmatprep.subr.mxu0 0.0
      %4879 = vmatpush1.msra.mxu0 %v4846
      %4880 = vmatprep.subr.mxu0 0.0
      %4881 = vmatpush2.msra.mxu0 0.0
      %4882 = vmatprep.subr.mxu0 0.0
      %4883 = vmatpush2.msra.mxu0 0.0
      %4884 = vmatprep.subr.mxu0 0.0
      %4885 = vmatpush2.msra.mxu0 0.0
      %4886 = vmatprep.subr.mxu0 0.0
      %4887 = vmatpush2.msra.mxu0 0.0
      %4888 = vmatprep.subr.mxu0 0.0
      %4889 = vmatpush2.msra.mxu0 0.0
      %4890 = vmatprep.subr.mxu0 0.0
      %4891 = vmatpush2.msra.mxu0 0.0
      %4892 = vmatprep.subr.mxu0 0.0
      %4893 = vmatpush2.msra.mxu0 0.0
      %4894 = vmatprep.subr.mxu0 0.0
      %4895 = vmatpush2.msra.mxu0 0.0
      %4896 = vmatprep.subr.mxu0 0.0
      %4897 = vmatpush2.msra.mxu0 0.0
      %4898 = vmatprep.subr.mxu0 0.0
      %4899 = vmatpush2.msra.mxu0 0.0
      %4900 = vmatprep.subr.mxu0 0.0
      %4901 = vmatpush2.msra.mxu0 0.0
      %4902 = vmatprep.subr.mxu0 0.0
      %4903 = vmatpush2.msra.mxu0 0.0
      %4904 = vmatprep.subr.mxu0 0.0
      %4905 = vmatpush2.msra.mxu0 0.0
      %4906 = vmatprep.subr.mxu0 0.0
      %4907 = vmatpush2.msra.mxu0 0.0
      %4908 = vmatprep.subr.mxu0 0.0
      %4909 = vmatpush2.msra.mxu0 0.0
      %4910 = vmatprep.subr.mxu0 0.0
      %4911 = vmatpush2.msra.mxu0 0.0
      %4912 = vmatprep.mubr.f32.mxu0 0.0
      %4913 = vmatmul.mubr.f32.gmra.mxu0 %v3963
      %v4914 = vpop.f32.mrf.mxu0
      %v4915 = vadd.f32 0.0, %v4914
      %v4916 = vpop.f32.mrf.mxu0
      %4917 = vmatprep.mubr.f32.mxu0 0.0
      %4918 = vmatmul.mubr.f32.gmra.mxu0 %v3966
      %v4919 = vpop.f32.mrf.mxu0
      %v4920 = vadd.f32 0.0, %v4919
      %v4921 = vpop.f32.mrf.mxu0
      %4922 = vmatprep.mubr.f32.mxu0 0.0
      %4923 = vmatmul.mubr.f32.gmra.mxu0 %v3969
      %v4924 = vpop.f32.mrf.mxu0
      %v4925 = vadd.f32 0.0, %v4924
      %v4926 = vpop.f32.mrf.mxu0
      %4927 = vmatprep.mubr.f32.mxu0 0.0
      %4928 = vmatmul.mubr.f32.gmra.mxu0 %v3972
      %v4929 = vpop.f32.mrf.mxu0
      %v4930 = vadd.f32 0.0, %v4929
      %v4931 = vpop.f32.mrf.mxu0
      %4932 = vmatprep.mubr.f32.mxu0 0.0
      %4933 = vmatmul.mubr.f32.gmra.mxu0 %v3975
      %v4934 = vpop.f32.mrf.mxu0
      %v4935 = vadd.f32 0.0, %v4934
      %v4936 = vpop.f32.mrf.mxu0
      %4937 = vmatprep.mubr.f32.mxu0 0.0
      %4938 = vmatmul.mubr.f32.gmra.mxu0 %v3978
      %v4939 = vpop.f32.mrf.mxu0
      %v4940 = vadd.f32 0.0, %v4939
      %v4941 = vpop.f32.mrf.mxu0
      %4942 = vmatprep.mubr.f32.mxu0 0.0
      %4943 = vmatmul.mubr.f32.gmra.mxu0 %v3981
      %v4944 = vpop.f32.mrf.mxu0
      %v4945 = vadd.f32 0.0, %v4944
      %v4946 = vpop.f32.mrf.mxu0
      %4947 = vmatprep.mubr.f32.mxu0 0.0
      %4948 = vmatmul.mubr.f32.gmra.mxu0 %v3984
      %v4949 = vpop.f32.mrf.mxu0
      %v4950 = vadd.f32 0.0, %v4949
      %v4951 = vpop.f32.mrf.mxu0
      %4952 = vmatprep.mubr.f32.mxu0 0.0
      %4953 = vmatmul.mubr.f32.gmra.mxu0 %v3987
      %v4954 = vpop.f32.mrf.mxu0
      %v4955 = vadd.f32 0.0, %v4954
      %v4956 = vpop.f32.mrf.mxu0
      %4957 = vmatprep.mubr.f32.mxu0 0.0
      %4958 = vmatmul.mubr.f32.gmra.mxu0 %v3990
      %v4959 = vpop.f32.mrf.mxu0
      %v4960 = vadd.f32 0.0, %v4959
      %v4961 = vpop.f32.mrf.mxu0
      %4962 = vmatprep.mubr.f32.mxu0 0.0
      %4963 = vmatmul.mubr.f32.gmra.mxu0 %v3993
      %v4964 = vpop.f32.mrf.mxu0
      %v4965 = vadd.f32 0.0, %v4964
      %v4966 = vpop.f32.mrf.mxu0
      %4967 = vmatprep.mubr.f32.mxu0 0.0
      %4968 = vmatmul.mubr.f32.gmra.mxu0 %v3996
      %v4969 = vpop.f32.mrf.mxu0
      %v4970 = vadd.f32 0.0, %v4969
      %v4971 = vpop.f32.mrf.mxu0
      %4972 = vmatprep.mubr.f32.mxu0 0.0
      %4973 = vmatmul.mubr.f32.gmra.mxu0 %v3999
      %v4974 = vpop.f32.mrf.mxu0
      %v4975 = vadd.f32 0.0, %v4974
      %v4976 = vpop.f32.mrf.mxu0
      %4977 = vmatprep.mubr.f32.mxu0 0.0
      %4978 = vmatmul.mubr.f32.gmra.mxu0 %v4002
      %v4979 = vpop.f32.mrf.mxu0
      %v4980 = vadd.f32 0.0, %v4979
      %v4981 = vpop.f32.mrf.mxu0
      %4982 = vmatprep.mubr.f32.mxu0 0.0
      %4983 = vmatmul.mubr.f32.gmra.mxu0 %v4005
      %v4984 = vpop.f32.mrf.mxu0
      %v4985 = vadd.f32 0.0, %v4984
      %v4986 = vpop.f32.mrf.mxu0
      %4987 = vmatprep.mubr.f32.mxu0 0.0
      %4988 = vmatmul.mubr.f32.gmra.mxu0 %v4008
      %v4989 = vpop.f32.mrf.mxu0
      %v4990 = vadd.f32 0.0, %v4989
      %v4991 = vpop.f32.mrf.mxu0
      %4992 = vmatprep.mubr.f32.mxu0 0.0
      %4993 = vmatmul.mubr.f32.gmra.mxu0 %v4011
      %v4994 = vpop.f32.mrf.mxu0
      %v4995 = vadd.f32 0.0, %v4994
      %v4996 = vpop.f32.mrf.mxu0
      %4997 = vmatprep.mubr.f32.mxu0 0.0
      %4998 = vmatmul.mubr.f32.gmra.mxu0 %v4014
      %v4999 = vpop.f32.mrf.mxu0
      %v5000 = vadd.f32 0.0, %v4999
      %v5001 = vpop.f32.mrf.mxu0
      %5002 = vmatprep.mubr.f32.mxu0 0.0
      %5003 = vmatmul.mubr.f32.gmra.mxu0 %v4017
      %v5004 = vpop.f32.mrf.mxu0
      %v5005 = vadd.f32 0.0, %v5004
      %v5006 = vpop.f32.mrf.mxu0
      %5007 = vmatprep.mubr.f32.mxu0 0.0
      %5008 = vmatmul.mubr.f32.gmra.mxu0 %v4020
      %v5009 = vpop.f32.mrf.mxu0
      %v5010 = vadd.f32 0.0, %v5009
      %v5011 = vpop.f32.mrf.mxu0
      %5012 = vmatprep.mubr.f32.mxu0 0.0
      %5013 = vmatmul.mubr.f32.gmra.mxu0 %v4023
      %v5014 = vpop.f32.mrf.mxu0
      %v5015 = vadd.f32 0.0, %v5014
      %v5016 = vpop.f32.mrf.mxu0
      %5017 = vmatprep.mubr.f32.mxu0 0.0
      %5018 = vmatmul.mubr.f32.gmra.mxu0 %v4026
      %v5019 = vpop.f32.mrf.mxu0
      %v5020 = vadd.f32 0.0, %v5019
      %v5021 = vpop.f32.mrf.mxu0
      %5022 = vmatprep.mubr.f32.mxu0 0.0
      %5023 = vmatmul.mubr.f32.gmra.mxu0 %v4029
      %v5024 = vpop.f32.mrf.mxu0
      %v5025 = vadd.f32 0.0, %v5024
      %v5026 = vpop.f32.mrf.mxu0
      %5027 = vmatprep.mubr.f32.mxu0 0.0
      %5028 = vmatmul.mubr.f32.gmra.mxu0 %v4032
      %v5029 = vpop.f32.mrf.mxu0
      %v5030 = vadd.f32 0.0, %v5029
      %v5031 = vpop.f32.mrf.mxu0
      %5032 = vmatprep.mubr.f32.mxu0 0.0
      %5033 = vmatmul.mubr.f32.gmra.mxu0 %v4035
      %v5034 = vpop.f32.mrf.mxu0
      %v5035 = vadd.f32 0.0, %v5034
      %v5036 = vpop.f32.mrf.mxu0
      %5037 = vmatprep.mubr.f32.mxu0 0.0
      %5038 = vmatmul.mubr.f32.gmra.mxu0 %v4038
      %v5039 = vpop.f32.mrf.mxu0
      %v5040 = vadd.f32 0.0, %v5039
      %v5041 = vpop.f32.mrf.mxu0
      %5042 = vmatprep.mubr.f32.mxu0 0.0
      %5043 = vmatmul.mubr.f32.gmra.mxu0 %v4041
      %v5044 = vpop.f32.mrf.mxu0
      %v5045 = vadd.f32 0.0, %v5044
      %v5046 = vpop.f32.mrf.mxu0
      %5047 = vmatprep.mubr.f32.mxu0 0.0
      %5048 = vmatmul.mubr.f32.gmra.mxu0 %v4044
      %v5049 = vpop.f32.mrf.mxu0
      %v5050 = vadd.f32 0.0, %v5049
      %v5051 = vpop.f32.mrf.mxu0
      %5052 = vmatprep.mubr.f32.mxu0 0.0
      %5053 = vmatmul.mubr.f32.gmra.mxu0 %v4047
      %v5054 = vpop.f32.mrf.mxu0
      %v5055 = vadd.f32 0.0, %v5054
      %v5056 = vpop.f32.mrf.mxu0
      %5057 = vmatprep.mubr.f32.mxu0 0.0
      %5058 = vmatmul.mubr.f32.gmra.mxu0 %v4050
      %v5059 = vpop.f32.mrf.mxu0
      %v5060 = vadd.f32 0.0, %v5059
      %v5061 = vpop.f32.mrf.mxu0
      %5062 = vmatprep.mubr.f32.mxu0 0.0
      %5063 = vmatmul.mubr.f32.gmra.mxu0 %v4053
      %v5064 = vpop.f32.mrf.mxu0
      %v5065 = vadd.f32 0.0, %v5064
      %v5066 = vpop.f32.mrf.mxu0
      %5067 = vmatprep.mubr.f32.mxu0 0.0
      %5068 = vmatmul.mubr.f32.gmra.mxu0 %v4056
      %v5069 = vpop.f32.mrf.mxu0
      %v5070 = vadd.f32 0.0, %v5069
      %v5071 = vpop.f32.mrf.mxu0
      %5072 = vdwg.mxu0
      %v5073 = vadd.f32 %v4685, %v4915
      %v5074 = vadd.f32 %v4690, %v4920
      %v5075 = vadd.f32 %v4695, %v4925
      %v5076 = vadd.f32 %v4700, %v4930
      %v5077 = vadd.f32 %v4705, %v4935
      %v5078 = vadd.f32 %v4710, %v4940
      %v5079 = vadd.f32 %v4715, %v4945
      %v5080 = vadd.f32 %v4720, %v4950
      %v5081 = vadd.f32 %v4725, %v4955
      %v5082 = vadd.f32 %v4730, %v4960
      %v5083 = vadd.f32 %v4735, %v4965
      %v5084 = vadd.f32 %v4740, %v4970
      %v5085 = vadd.f32 %v4745, %v4975
      %v5086 = vadd.f32 %v4750, %v4980
      %v5087 = vadd.f32 %v4755, %v4985
      %v5088 = vadd.f32 %v4760, %v4990
      %v5089 = vadd.f32 %v4765, %v4995
      %v5090 = vadd.f32 %v4770, %v5000
      %v5091 = vadd.f32 %v4775, %v5005
      %v5092 = vadd.f32 %v4780, %v5010
      %v5093 = vadd.f32 %v4785, %v5015
      %v5094 = vadd.f32 %v4790, %v5020
      %v5095 = vadd.f32 %v4795, %v5025
      %v5096 = vadd.f32 %v4800, %v5030
      %v5097 = vadd.f32 %v4805, %v5035
      %v5098 = vadd.f32 %v4810, %v5040
      %v5099 = vadd.f32 %v4815, %v5045
      %v5100 = vadd.f32 %v4820, %v5050
      %v5101 = vadd.f32 %v4825, %v5055
      %v5102 = vadd.f32 %v4830, %v5060
      %v5103 = vadd.f32 %v4835, %v5065
      %v5104 = vadd.f32 %v4840, %v5070
      %s5105 = scalar_lea.vmem %s1, 60
      %v5106 = vld [vmem:[%s5105] sm:$0xf]
      %v5107 = vld [vmem:[%s3539 + $0x2] sm:$0xff]
      %v5108 = vld [vmem:[%s3539 + $0xa] sm:$0xff]
      %v5109 = vld [vmem:[%s3539 + $0x1a] sm:$0xff]
      %v5110 = vld [vmem:[%s3539 + $0x22] sm:$0xff]
      %v5111 = vld [vmem:[%s3539 + $0x32] sm:$0xff]
      %v5112 = vld [vmem:[%s3539 + $0x3a] sm:$0xff]
      %v5113 = vld [vmem:[%s3539 + $0x4a] sm:$0xff]
      %v5114 = vld [vmem:[%s3539 + $0x52] sm:$0xff]
      %v5115 = vld [vmem:[%s3539 + $0x62] sm:$0xff]
      %v5116 = vld [vmem:[%s3539 + $0x6a] sm:$0xff]
      %v5117 = vld [vmem:[%s3539 + $0x7a] sm:$0xff]
      %v5118 = vld [vmem:[%s3539 + $0x82] sm:$0xff]
      %v5119 = vld [vmem:[%s3539 + $0x92] sm:$0xff]
      %v5120 = vld [vmem:[%s3539 + $0x9a] sm:$0xff]
      %v5121 = vld [vmem:[%s3539 + $0xaa] sm:$0xff]
      %v5122 = vld [vmem:[%s3539 + $0xb2] sm:$0xff]
      %v5123 = vld [vmem:[%s3539 + $0xc2] sm:$0xff]
      %v5124 = vld [vmem:[%s3539 + $0xca] sm:$0xff]
      %v5125 = vld [vmem:[%s3539 + $0xda] sm:$0xff]
      %v5126 = vld [vmem:[%s3539 + $0xe2] sm:$0xff]
      %v5127 = vld [vmem:[%s3539 + $0xf2] sm:$0xff]
      %v5128 = vld [vmem:[%s3539 + $0xfa] sm:$0xff]
      %v5129 = vld [vmem:[%s3539 + $0x10a] sm:$0xff]
      %v5130 = vld [vmem:[%s3539 + $0x112] sm:$0xff]
      %v5131 = vld [vmem:[%s3539 + $0x122] sm:$0xff]
      %v5132 = vld [vmem:[%s3539 + $0x12a] sm:$0xff]
      %v5133 = vld [vmem:[%s3539 + $0x13a] sm:$0xff]
      %v5134 = vld [vmem:[%s3539 + $0x142] sm:$0xff]
      %v5135 = vld [vmem:[%s3539 + $0x152] sm:$0xff]
      %v5136 = vld [vmem:[%s3539 + $0x15a] sm:$0xff]
      %v5137 = vld [vmem:[%s3539 + $0x16a] sm:$0xff]
      %v5138 = vld [vmem:[%s3539 + $0x172] sm:$0xff]
      %v5140 = vsel %vm267, %v5107, 0
      %v5143 = vsel %vm267, %v5108, 0
      %v5146 = vsel %vm267, %v5109, 0
      %v5149 = vsel %vm267, %v5110, 0
      %v5152 = vsel %vm267, %v5111, 0
      %v5155 = vsel %vm267, %v5112, 0
      %v5158 = vsel %vm267, %v5113, 0
      %v5161 = vsel %vm267, %v5114, 0
      %v5164 = vsel %vm267, %v5115, 0
      %v5167 = vsel %vm267, %v5116, 0
      %v5170 = vsel %vm267, %v5117, 0
      %v5173 = vsel %vm267, %v5118, 0
      %v5176 = vsel %vm267, %v5119, 0
      %v5179 = vsel %vm267, %v5120, 0
      %v5182 = vsel %vm267, %v5121, 0
      %v5185 = vsel %vm267, %v5122, 0
      %v5188 = vsel %vm267, %v5123, 0
      %v5191 = vsel %vm267, %v5124, 0
      %v5194 = vsel %vm267, %v5125, 0
      %v5197 = vsel %vm267, %v5126, 0
      %v5200 = vsel %vm267, %v5127, 0
      %v5203 = vsel %vm267, %v5128, 0
      %v5206 = vsel %vm267, %v5129, 0
      %v5209 = vsel %vm267, %v5130, 0
      %v5212 = vsel %vm267, %v5131, 0
      %v5215 = vsel %vm267, %v5132, 0
      %v5218 = vsel %vm267, %v5133, 0
      %v5221 = vsel %vm267, %v5134, 0
      %v5224 = vsel %vm267, %v5135, 0
      %v5227 = vsel %vm267, %v5136, 0
      %v5230 = vsel %vm267, %v5137, 0
      %v5233 = vsel %vm267, %v5138, 0
      %v5236 = vsel %vm364, %v5106, 0
      %5238 = vmatprep.subr.mxu0 0.0
      %5239 = vmatpush1.msra.mxu0 0.0
      %5240 = vmatprep.subr.mxu0 0.0
      %5241 = vmatpush1.msra.mxu0 0.0
      %5242 = vmatprep.subr.mxu0 0.0
      %5243 = vmatpush1.msra.mxu0 0.0
      %5244 = vmatprep.subr.mxu0 0.0
      %5245 = vmatpush1.msra.mxu0 0.0
      %5246 = vmatprep.subr.mxu0 0.0
      %5247 = vmatpush1.msra.mxu0 0.0
      %5248 = vmatprep.subr.mxu0 0.0
      %5249 = vmatpush1.msra.mxu0 0.0
      %5250 = vmatprep.subr.mxu0 0.0
      %5251 = vmatpush1.msra.mxu0 0.0
      %5252 = vmatprep.subr.mxu0 0.0
      %5253 = vmatpush1.msra.mxu0 0.0
      %5254 = vmatprep.subr.mxu0 0.0
      %5255 = vmatpush1.msra.mxu0 0.0
      %5256 = vmatprep.subr.mxu0 0.0
      %5257 = vmatpush1.msra.mxu0 0.0
      %5258 = vmatprep.subr.mxu0 0.0
      %5259 = vmatpush1.msra.mxu0 0.0
      %5260 = vmatprep.subr.mxu0 0.0
      %5261 = vmatpush1.msra.mxu0 0.0
      %5262 = vmatprep.subr.mxu0 0.0
      %5263 = vmatpush1.msra.mxu0 0.0
      %5264 = vmatprep.subr.mxu0 0.0
      %5265 = vmatpush1.msra.mxu0 0.0
      %5266 = vmatprep.subr.mxu0 0.0
      %5267 = vmatpush1.msra.mxu0 0.0
      %5268 = vmatprep.subr.mxu0 0.0
      %5269 = vmatpush1.msra.mxu0 %v5236
      %5270 = vmatprep.subr.mxu0 0.0
      %5271 = vmatpush2.msra.mxu0 0.0
      %5272 = vmatprep.subr.mxu0 0.0
      %5273 = vmatpush2.msra.mxu0 0.0
      %5274 = vmatprep.subr.mxu0 0.0
      %5275 = vmatpush2.msra.mxu0 0.0
      %5276 = vmatprep.subr.mxu0 0.0
      %5277 = vmatpush2.msra.mxu0 0.0
      %5278 = vmatprep.subr.mxu0 0.0
      %5279 = vmatpush2.msra.mxu0 0.0
      %5280 = vmatprep.subr.mxu0 0.0
      %5281 = vmatpush2.msra.mxu0 0.0
      %5282 = vmatprep.subr.mxu0 0.0
      %5283 = vmatpush2.msra.mxu0 0.0
      %5284 = vmatprep.subr.mxu0 0.0
      %5285 = vmatpush2.msra.mxu0 0.0
      %5286 = vmatprep.subr.mxu0 0.0
      %5287 = vmatpush2.msra.mxu0 0.0
      %5288 = vmatprep.subr.mxu0 0.0
      %5289 = vmatpush2.msra.mxu0 0.0
      %5290 = vmatprep.subr.mxu0 0.0
      %5291 = vmatpush2.msra.mxu0 0.0
      %5292 = vmatprep.subr.mxu0 0.0
      %5293 = vmatpush2.msra.mxu0 0.0
      %5294 = vmatprep.subr.mxu0 0.0
      %5295 = vmatpush2.msra.mxu0 0.0
      %5296 = vmatprep.subr.mxu0 0.0
      %5297 = vmatpush2.msra.mxu0 0.0
      %5298 = vmatprep.subr.mxu0 0.0
      %5299 = vmatpush2.msra.mxu0 0.0
      %5300 = vmatprep.subr.mxu0 0.0
      %5301 = vmatpush2.msra.mxu0 0.0
      %5302 = vmatprep.mubr.f32.mxu0 0.0
      %5303 = vmatmul.mubr.f32.gmra.mxu0 %v5140
      %v5304 = vpop.f32.mrf.mxu0
      %v5305 = vadd.f32 0.0, %v5304
      %v5306 = vpop.f32.mrf.mxu0
      %5307 = vmatprep.mubr.f32.mxu0 0.0
      %5308 = vmatmul.mubr.f32.gmra.mxu0 %v5143
      %v5309 = vpop.f32.mrf.mxu0
      %v5310 = vadd.f32 0.0, %v5309
      %v5311 = vpop.f32.mrf.mxu0
      %5312 = vmatprep.mubr.f32.mxu0 0.0
      %5313 = vmatmul.mubr.f32.gmra.mxu0 %v5146
      %v5314 = vpop.f32.mrf.mxu0
      %v5315 = vadd.f32 0.0, %v5314
      %v5316 = vpop.f32.mrf.mxu0
      %5317 = vmatprep.mubr.f32.mxu0 0.0
      %5318 = vmatmul.mubr.f32.gmra.mxu0 %v5149
      %v5319 = vpop.f32.mrf.mxu0
      %v5320 = vadd.f32 0.0, %v5319
      %v5321 = vpop.f32.mrf.mxu0
      %5322 = vmatprep.mubr.f32.mxu0 0.0
      %5323 = vmatmul.mubr.f32.gmra.mxu0 %v5152
      %v5324 = vpop.f32.mrf.mxu0
      %v5325 = vadd.f32 0.0, %v5324
      %v5326 = vpop.f32.mrf.mxu0
      %5327 = vmatprep.mubr.f32.mxu0 0.0
      %5328 = vmatmul.mubr.f32.gmra.mxu0 %v5155
      %v5329 = vpop.f32.mrf.mxu0
      %v5330 = vadd.f32 0.0, %v5329
      %v5331 = vpop.f32.mrf.mxu0
      %5332 = vmatprep.mubr.f32.mxu0 0.0
      %5333 = vmatmul.mubr.f32.gmra.mxu0 %v5158
      %v5334 = vpop.f32.mrf.mxu0
      %v5335 = vadd.f32 0.0, %v5334
      %v5336 = vpop.f32.mrf.mxu0
      %5337 = vmatprep.mubr.f32.mxu0 0.0
      %5338 = vmatmul.mubr.f32.gmra.mxu0 %v5161
      %v5339 = vpop.f32.mrf.mxu0
      %v5340 = vadd.f32 0.0, %v5339
      %v5341 = vpop.f32.mrf.mxu0
      %5342 = vmatprep.mubr.f32.mxu0 0.0
      %5343 = vmatmul.mubr.f32.gmra.mxu0 %v5164
      %v5344 = vpop.f32.mrf.mxu0
      %v5345 = vadd.f32 0.0, %v5344
      %v5346 = vpop.f32.mrf.mxu0
      %5347 = vmatprep.mubr.f32.mxu0 0.0
      %5348 = vmatmul.mubr.f32.gmra.mxu0 %v5167
      %v5349 = vpop.f32.mrf.mxu0
      %v5350 = vadd.f32 0.0, %v5349
      %v5351 = vpop.f32.mrf.mxu0
      %5352 = vmatprep.mubr.f32.mxu0 0.0
      %5353 = vmatmul.mubr.f32.gmra.mxu0 %v5170
      %v5354 = vpop.f32.mrf.mxu0
      %v5355 = vadd.f32 0.0, %v5354
      %v5356 = vpop.f32.mrf.mxu0
      %5357 = vmatprep.mubr.f32.mxu0 0.0
      %5358 = vmatmul.mubr.f32.gmra.mxu0 %v5173
      %v5359 = vpop.f32.mrf.mxu0
      %v5360 = vadd.f32 0.0, %v5359
      %v5361 = vpop.f32.mrf.mxu0
      %5362 = vmatprep.mubr.f32.mxu0 0.0
      %5363 = vmatmul.mubr.f32.gmra.mxu0 %v5176
      %v5364 = vpop.f32.mrf.mxu0
      %v5365 = vadd.f32 0.0, %v5364
      %v5366 = vpop.f32.mrf.mxu0
      %5367 = vmatprep.mubr.f32.mxu0 0.0
      %5368 = vmatmul.mubr.f32.gmra.mxu0 %v5179
      %v5369 = vpop.f32.mrf.mxu0
      %v5370 = vadd.f32 0.0, %v5369
      %v5371 = vpop.f32.mrf.mxu0
      %5372 = vmatprep.mubr.f32.mxu0 0.0
      %5373 = vmatmul.mubr.f32.gmra.mxu0 %v5182
      %v5374 = vpop.f32.mrf.mxu0
      %v5375 = vadd.f32 0.0, %v5374
      %v5376 = vpop.f32.mrf.mxu0
      %5377 = vmatprep.mubr.f32.mxu0 0.0
      %5378 = vmatmul.mubr.f32.gmra.mxu0 %v5185
      %v5379 = vpop.f32.mrf.mxu0
      %v5380 = vadd.f32 0.0, %v5379
      %v5381 = vpop.f32.mrf.mxu0
      %5382 = vmatprep.mubr.f32.mxu0 0.0
      %5383 = vmatmul.mubr.f32.gmra.mxu0 %v5188
      %v5384 = vpop.f32.mrf.mxu0
      %v5385 = vadd.f32 0.0, %v5384
      %v5386 = vpop.f32.mrf.mxu0
      %5387 = vmatprep.mubr.f32.mxu0 0.0
      %5388 = vmatmul.mubr.f32.gmra.mxu0 %v5191
      %v5389 = vpop.f32.mrf.mxu0
      %v5390 = vadd.f32 0.0, %v5389
      %v5391 = vpop.f32.mrf.mxu0
      %5392 = vmatprep.mubr.f32.mxu0 0.0
      %5393 = vmatmul.mubr.f32.gmra.mxu0 %v5194
      %v5394 = vpop.f32.mrf.mxu0
      %v5395 = vadd.f32 0.0, %v5394
      %v5396 = vpop.f32.mrf.mxu0
      %5397 = vmatprep.mubr.f32.mxu0 0.0
      %5398 = vmatmul.mubr.f32.gmra.mxu0 %v5197
      %v5399 = vpop.f32.mrf.mxu0
      %v5400 = vadd.f32 0.0, %v5399
      %v5401 = vpop.f32.mrf.mxu0
      %5402 = vmatprep.mubr.f32.mxu0 0.0
      %5403 = vmatmul.mubr.f32.gmra.mxu0 %v5200
      %v5404 = vpop.f32.mrf.mxu0
      %v5405 = vadd.f32 0.0, %v5404
      %v5406 = vpop.f32.mrf.mxu0
      %5407 = vmatprep.mubr.f32.mxu0 0.0
      %5408 = vmatmul.mubr.f32.gmra.mxu0 %v5203
      %v5409 = vpop.f32.mrf.mxu0
      %v5410 = vadd.f32 0.0, %v5409
      %v5411 = vpop.f32.mrf.mxu0
      %5412 = vmatprep.mubr.f32.mxu0 0.0
      %5413 = vmatmul.mubr.f32.gmra.mxu0 %v5206
      %v5414 = vpop.f32.mrf.mxu0
      %v5415 = vadd.f32 0.0, %v5414
      %v5416 = vpop.f32.mrf.mxu0
      %5417 = vmatprep.mubr.f32.mxu0 0.0
      %5418 = vmatmul.mubr.f32.gmra.mxu0 %v5209
      %v5419 = vpop.f32.mrf.mxu0
      %v5420 = vadd.f32 0.0, %v5419
      %v5421 = vpop.f32.mrf.mxu0
      %5422 = vmatprep.mubr.f32.mxu0 0.0
      %5423 = vmatmul.mubr.f32.gmra.mxu0 %v5212
      %v5424 = vpop.f32.mrf.mxu0
      %v5425 = vadd.f32 0.0, %v5424
      %v5426 = vpop.f32.mrf.mxu0
      %5427 = vmatprep.mubr.f32.mxu0 0.0
      %5428 = vmatmul.mubr.f32.gmra.mxu0 %v5215
      %v5429 = vpop.f32.mrf.mxu0
      %v5430 = vadd.f32 0.0, %v5429
      %v5431 = vpop.f32.mrf.mxu0
      %5432 = vmatprep.mubr.f32.mxu0 0.0
      %5433 = vmatmul.mubr.f32.gmra.mxu0 %v5218
      %v5434 = vpop.f32.mrf.mxu0
      %v5435 = vadd.f32 0.0, %v5434
      %v5436 = vpop.f32.mrf.mxu0
      %5437 = vmatprep.mubr.f32.mxu0 0.0
      %5438 = vmatmul.mubr.f32.gmra.mxu0 %v5221
      %v5439 = vpop.f32.mrf.mxu0
      %v5440 = vadd.f32 0.0, %v5439
      %v5441 = vpop.f32.mrf.mxu0
      %5442 = vmatprep.mubr.f32.mxu0 0.0
      %5443 = vmatmul.mubr.f32.gmra.mxu0 %v5224
      %v5444 = vpop.f32.mrf.mxu0
      %v5445 = vadd.f32 0.0, %v5444
      %v5446 = vpop.f32.mrf.mxu0
      %5447 = vmatprep.mubr.f32.mxu0 0.0
      %5448 = vmatmul.mubr.f32.gmra.mxu0 %v5227
      %v5449 = vpop.f32.mrf.mxu0
      %v5450 = vadd.f32 0.0, %v5449
      %v5451 = vpop.f32.mrf.mxu0
      %5452 = vmatprep.mubr.f32.mxu0 0.0
      %5453 = vmatmul.mubr.f32.gmra.mxu0 %v5230
      %v5454 = vpop.f32.mrf.mxu0
      %v5455 = vadd.f32 0.0, %v5454
      %v5456 = vpop.f32.mrf.mxu0
      %5457 = vmatprep.mubr.f32.mxu0 0.0
      %5458 = vmatmul.mubr.f32.gmra.mxu0 %v5233
      %v5459 = vpop.f32.mrf.mxu0
      %v5460 = vadd.f32 0.0, %v5459
      %v5461 = vpop.f32.mrf.mxu0
      %5462 = vdwg.mxu0
      %v5463 = vadd.f32 %v5073, %v5305
      %v5464 = vadd.f32 %v5074, %v5310
      %v5465 = vadd.f32 %v5075, %v5315
      %v5466 = vadd.f32 %v5076, %v5320
      %v5467 = vadd.f32 %v5077, %v5325
      %v5468 = vadd.f32 %v5078, %v5330
      %v5469 = vadd.f32 %v5079, %v5335
      %v5470 = vadd.f32 %v5080, %v5340
      %v5471 = vadd.f32 %v5081, %v5345
      %v5472 = vadd.f32 %v5082, %v5350
      %v5473 = vadd.f32 %v5083, %v5355
      %v5474 = vadd.f32 %v5084, %v5360
      %v5475 = vadd.f32 %v5085, %v5365
      %v5476 = vadd.f32 %v5086, %v5370
      %v5477 = vadd.f32 %v5087, %v5375
      %v5478 = vadd.f32 %v5088, %v5380
      %v5479 = vadd.f32 %v5089, %v5385
      %v5480 = vadd.f32 %v5090, %v5390
      %v5481 = vadd.f32 %v5091, %v5395
      %v5482 = vadd.f32 %v5092, %v5400
      %v5483 = vadd.f32 %v5093, %v5405
      %v5484 = vadd.f32 %v5094, %v5410
      %v5485 = vadd.f32 %v5095, %v5415
      %v5486 = vadd.f32 %v5096, %v5420
      %v5487 = vadd.f32 %v5097, %v5425
      %v5488 = vadd.f32 %v5098, %v5430
      %v5489 = vadd.f32 %v5099, %v5435
      %v5490 = vadd.f32 %v5100, %v5440
      %v5491 = vadd.f32 %v5101, %v5445
      %v5492 = vadd.f32 %v5102, %v5450
      %v5493 = vadd.f32 %v5103, %v5455
      %v5494 = vadd.f32 %v5104, %v5460
      %v5495 = vadd.f32 %v5463, %v1704
      %v5496 = vadd.f32 %v5464, %v1704
      %v5497 = vadd.f32 %v5465, %v1704
      %v5498 = vadd.f32 %v5466, %v1704
      %v5499 = vadd.f32 %v5467, %v1704
      %v5500 = vadd.f32 %v5468, %v1704
      %v5501 = vadd.f32 %v5469, %v1704
      %v5502 = vadd.f32 %v5470, %v1704
      %v5503 = vadd.f32 %v5471, %v1704
      %v5504 = vadd.f32 %v5472, %v1704
      %v5505 = vadd.f32 %v5473, %v1704
      %v5506 = vadd.f32 %v5474, %v1704
      %v5507 = vadd.f32 %v5475, %v1704
      %v5508 = vadd.f32 %v5476, %v1704
      %v5509 = vadd.f32 %v5477, %v1704
      %v5510 = vadd.f32 %v5478, %v1704
      %v5511 = vadd.f32 %v5479, %v1704
      %v5512 = vadd.f32 %v5480, %v1704
      %v5513 = vadd.f32 %v5481, %v1704
      %v5514 = vadd.f32 %v5482, %v1704
      %v5515 = vadd.f32 %v5483, %v1704
      %v5516 = vadd.f32 %v5484, %v1704
      %v5517 = vadd.f32 %v5485, %v1704
      %v5518 = vadd.f32 %v5486, %v1704
      %v5519 = vadd.f32 %v5487, %v1704
      %v5520 = vadd.f32 %v5488, %v1704
      %v5521 = vadd.f32 %v5489, %v1704
      %v5522 = vadd.f32 %v5490, %v1704
      %v5523 = vadd.f32 %v5491, %v1704
      %v5524 = vadd.f32 %v5492, %v1704
      %v5525 = vadd.f32 %v5493, %v1704
      %v5526 = vadd.f32 %v5494, %v1704
      %s5527 = scalar_lea.vmem %s194, 768
      %5528 = vst.msk [vmem:[%s5527] sm:$0xff] %vm267, %v5495
      %5529 = vst.msk [vmem:[%s5527 + $0x8] sm:$0xff] %vm267, %v5496
      %5530 = vst.msk [vmem:[%s5527 + $0x10] sm:$0xff] %vm267, %v5497
      %5531 = vst.msk [vmem:[%s5527 + $0x18] sm:$0xff] %vm267, %v5498
      %5532 = vst.msk [vmem:[%s5527 + $0x20] sm:$0xff] %vm267, %v5499
      %5533 = vst.msk [vmem:[%s5527 + $0x28] sm:$0xff] %vm267, %v5500
      %5534 = vst.msk [vmem:[%s5527 + $0x30] sm:$0xff] %vm267, %v5501
      %5535 = vst.msk [vmem:[%s5527 + $0x38] sm:$0xff] %vm267, %v5502
      %5536 = vst.msk [vmem:[%s5527 + $0x40] sm:$0xff] %vm267, %v5503
      %5537 = vst.msk [vmem:[%s5527 + $0x48] sm:$0xff] %vm267, %v5504
      %5538 = vst.msk [vmem:[%s5527 + $0x50] sm:$0xff] %vm267, %v5505
      %5539 = vst.msk [vmem:[%s5527 + $0x58] sm:$0xff] %vm267, %v5506
      %5540 = vst.msk [vmem:[%s5527 + $0x60] sm:$0xff] %vm267, %v5507
      %5541 = vst.msk [vmem:[%s5527 + $0x68] sm:$0xff] %vm267, %v5508
      %5542 = vst.msk [vmem:[%s5527 + $0x70] sm:$0xff] %vm267, %v5509
      %5543 = vst.msk [vmem:[%s5527 + $0x78] sm:$0xff] %vm267, %v5510
      %5544 = vst.msk [vmem:[%s5527 + $0x80] sm:$0xff] %vm267, %v5511
      %5545 = vst.msk [vmem:[%s5527 + $0x88] sm:$0xff] %vm267, %v5512
      %5546 = vst.msk [vmem:[%s5527 + $0x90] sm:$0xff] %vm267, %v5513
      %5547 = vst.msk [vmem:[%s5527 + $0x98] sm:$0xff] %vm267, %v5514
      %5548 = vst.msk [vmem:[%s5527 + $0xa0] sm:$0xff] %vm267, %v5515
      %5549 = vst.msk [vmem:[%s5527 + $0xa8] sm:$0xff] %vm267, %v5516
      %5550 = vst.msk [vmem:[%s5527 + $0xb0] sm:$0xff] %vm267, %v5517
      %5551 = vst.msk [vmem:[%s5527 + $0xb8] sm:$0xff] %vm267, %v5518
      %5552 = vst.msk [vmem:[%s5527 + $0xc0] sm:$0xff] %vm267, %v5519
      %5553 = vst.msk [vmem:[%s5527 + $0xc8] sm:$0xff] %vm267, %v5520
      %5554 = vst.msk [vmem:[%s5527 + $0xd0] sm:$0xff] %vm267, %v5521
      %5555 = vst.msk [vmem:[%s5527 + $0xd8] sm:$0xff] %vm267, %v5522
      %5556 = vst.msk [vmem:[%s5527 + $0xe0] sm:$0xff] %vm267, %v5523
      %5557 = vst.msk [vmem:[%s5527 + $0xe8] sm:$0xff] %vm267, %v5524
      %5558 = vst.msk [vmem:[%s5527 + $0xf0] sm:$0xff] %vm267, %v5525
      %5559 = vst.msk [vmem:[%s5527 + $0xf8] sm:$0xff] %vm267, %v5526
      %s5560 = smul.u32 16, %s19
      %p5561 = scmp.lt.s32.totalorder %s18, 1
      %s5562 = scalar_select %p5561, %s18, 1
      %p5563 = scmp.lt.s32.totalorder %s5560, 15
      %s5564 = scalar_select %p5563, %s5560, 15
      %s5565 = smul.addr %s5564, 2
      %s5566 = smul.addr %s5562, 128
      %s5567 = sadd.s32 %s5565, %s5566
      %s5568 = smul.addr %s5567, 8
      %s5569 = scalar_lea.vmem %s3, %s5568
      // Predicated region
      $region33: #{upsample_forward.1} parent=31 // pred_check
        %p5570 = pneg %p114
      $region34: #{upsample_forward.1} parent=31 // pred_check_branch
        %5572 = sbr.rel (%p5570) target = $region36
      $region35: #{upsample_forward.1} parent=31 // pred_region
        %s5573 = smul.u32 16, %s19
      $region36: #{upsample_forward.1} parent=31 // pred_fallthru
        _
    $region32: #{upsample_forward.1} parent=5 // pred_fallthru
      _
    %p5574 = scmp.le.s32.totalorder 2, %s9
    // Predicated region
    $region37: #{upsample_forward.1} parent=5 // pred_check
      %p5575 = pneg %p5574
    $region38: #{upsample_forward.1} parent=5 // pred_check_branch
      %5577 = sbr.rel (%p5575) target = $region40
    $region39: #{upsample_forward.1} parent=5 // pred_region
      %s5578 = ssub.s32 %s9, 2
      // Predicated region
      $region41: #{upsample_forward.1} parent=39 // pred_check
        %p5579 = pneg %p120
      $region42: #{upsample_forward.1} parent=39 // pred_check_branch
        %5581 = sbr.rel (%p5579) target = $region44
      $region43: #{upsample_forward.1} parent=39 // pred_region
        %s5582 = smul.u32 16, %s21
        %p5583 = scmp.lt.s32.totalorder %s20, 1
        %s5584 = scalar_select %p5583, %s20, 1
        %p5585 = scmp.lt.s32.totalorder %s5582, 15
        %s5586 = scalar_select %p5585, %s5582, 15
        %s5587 = smul.addr %s5586, 2
        %s5588 = smul.addr %s5584, 128
        %s5589 = sadd.s32 %s5587, %s5588
        %s5590 = smul.addr %s5589, 8
        %s5591 = scalar_lea.vmem %s3, %s5590
      $region44: #{upsample_forward.1} parent=39 // pred_fallthru
        _
    $region40: #{upsample_forward.1} parent=5 // pred_fallthru
      _
  $region6: #{upsample_forward.1} parent=0 // loop_footer
    %s13 = sadd.s32 1, %s9
  $region7: #{upsample_forward.1} parent=0 // loop_footer_branch
    %8 = sbr.rel target = $region3
  $region8: #{upsample_forward.1} parent=0 // loop_exit
    _

</llo_original>
